<compile_context>
chip_gen: v5e
topology: v5e:2x2
jax: 0.10.0
libtpu: 0.0.40
codegen_flags: <defaults>
</compile_context>

<pallas_src>
import jax
import jax.numpy as jnp
from jax.experimental import pallas as pl
from jax.experimental.pallas import tpu as pltpu


def _round_up(n, m):
    return (n + m - 1) // m * m


def _ae_kernel(x_ref, we_ref, be_ref, wd_ref, bd_ref, code_ref, dec_ref):
    """Single-step kernel: everything resident in VMEM.

    we_ref: (F_pad, L_pad)  = w_enc.T (pre-transposed offline)
    wd_ref: (L_pad, F_pad)  = w_dec.T (pre-transposed offline)
    """
    # Encoder: code = x @ w_enc.T + b_enc   (standard (M,K)x(K,N), f32 accum)
    code = jnp.dot(x_ref[...], we_ref[...],
                   preferred_element_type=jnp.float32) + be_ref[...]
    code_ref[...] = code

    # Decoder: decode = code @ w_dec.T + b_dec   (code cast to bf16 once)
    dec = jnp.dot(code.astype(jnp.bfloat16), wd_ref[...],
                  preferred_element_type=jnp.float32) + bd_ref[...]
    dec_ref[...] = dec


def prepare_params(w_enc, b_enc, w_dec, b_dec):
    """One-time (non-hot-path) prep: bf16 weights, pre-transposed, 128-padded."""
    L, F = w_enc.shape                       # encoder: (latent, feature)
    F_pad, L_pad = _round_up(F, 128), _round_up(L, 128)
    # Pre-transpose so the kernel contracts (M,K)x(K,N) with no relayout.
    we = jnp.zeros((F_pad, L_pad), jnp.bfloat16).at[:F, :L].set(
        w_enc.T.astype(jnp.bfloat16))
    wd = jnp.zeros((L_pad, F_pad), jnp.bfloat16).at[:L, :F].set(
        w_dec.T.astype(jnp.bfloat16))
    be = jnp.zeros((1, L_pad), jnp.float32).at[0, :L].set(b_enc.astype(jnp.float32))
    bd = jnp.zeros((1, F_pad), jnp.float32).at[0, :F].set(b_dec.astype(jnp.float32))
    return dict(we=we, be=be, wd=wd, bd=bd, F=F, L=L, F_pad=F_pad, L_pad=L_pad)


def auto_encoder_forward(x, params):
    """x: (B, F) float.  Returns (code, decode) like the PyTorch forward."""
    we, be, wd, bd = params["we"], params["be"], params["wd"], params["bd"]
    F, L = params["F"], params["L"]
    F_pad, L_pad = params["F_pad"], params["L_pad"]
    B = x.shape[0]

    x_pad = jnp.zeros((B, F_pad), jnp.bfloat16).at[:, :F].set(x.astype(jnp.bfloat16))

    code_pad, dec_pad = pl.pallas_call(
        _ae_kernel,
        out_shape=(jax.ShapeDtypeStruct((B, L_pad), jnp.float32),
                   jax.ShapeDtypeStruct((B, F_pad), jnp.float32)),
        grid=(1,),
        in_specs=[
            pl.BlockSpec((B, F_pad),     lambda i: (0, 0)),   # x
            pl.BlockSpec((F_pad, L_pad), lambda i: (0, 0)),   # w_enc.T
            pl.BlockSpec((1, L_pad),     lambda i: (0, 0)),   # b_enc
            pl.BlockSpec((L_pad, F_pad), lambda i: (0, 0)),   # w_dec.T
            pl.BlockSpec((1, F_pad),     lambda i: (0, 0)),   # b_dec
        ],
        out_specs=(
            pl.BlockSpec((B, L_pad), lambda i: (0, 0)),       # code
            pl.BlockSpec((B, F_pad), lambda i: (0, 0)),       # decode
        ),
        compiler_params=pltpu.CompilerParams(
            dimension_semantics=("arbitrary",),
            vmem_limit_bytes=16 << 20,
        ),
    )(x_pad, we, be, wd, bd)

    return code_pad[:, :L], dec_pad[:, :F]


if __name__ == "__main__":
    feature_dim, latent_dim, batch = 784, 1000, 8

    key = jax.random.PRNGKey(0)
    kx, k1, k2, k3, k4 = jax.random.split(key, 5)
    x = jax.random.normal(kx, (batch, feature_dim), jnp.float32)

    bound_e = 1.0 / feature_dim ** 0.5
    bound_d = 1.0 / latent_dim ** 0.5
    w_enc = jax.random.uniform(k1, (latent_dim, feature_dim), jnp.float32,
                               -bound_e, bound_e)
    b_enc = jax.random.uniform(k2, (latent_dim,), jnp.float32, -bound_e, bound_e)
    w_dec = jax.random.uniform(k3, (feature_dim, latent_dim), jnp.float32,
                               -bound_d, bound_d)
    b_dec = jax.random.uniform(k4, (feature_dim,), jnp.float32, -bound_d, bound_d)

    params = prepare_params(w_enc, b_enc, w_dec, b_dec)
    fwd = jax.jit(lambda xx: auto_encoder_forward(xx, params))
    code, decode = jax.block_until_ready(fwd(x))

    # Reference with the same bf16 quantization the kernel applies.
    xq = x.astype(jnp.bfloat16).astype(jnp.float32)
    weq = w_enc.astype(jnp.bfloat16).astype(jnp.float32)
    wdq = w_dec.astype(jnp.bfloat16).astype(jnp.float32)
    code_ref = xq @ weq.T + b_enc
    dec_ref = code_ref.astype(jnp.bfloat16).astype(jnp.float32) @ wdq.T + b_dec

    assert code.shape == (batch, latent_dim)
    assert decode.shape == (batch, feature_dim)
    assert jnp.allclose(code, code_ref, atol=5e-3, rtol=5e-3), \
        float(jnp.max(jnp.abs(code - code_ref)))
    assert jnp.allclose(decode, dec_ref, atol=5e-3, rtol=5e-3), \
        float(jnp.max(jnp.abs(decode - dec_ref)))

    print("KERNEL_OK")
</pallas_src>

<mosaic_0001>
module attributes {stable_mosaic.version = 11 : i64} {
  func.func @_ae_kernel(%arg0: i32, %arg1: memref<8x896xbf16, #tpu.memory_space<vmem>>, %arg2: memref<896x1024xbf16, #tpu.memory_space<vmem>>, %arg3: memref<1x1024xf32, #tpu.memory_space<vmem>>, %arg4: memref<1024x896xbf16, #tpu.memory_space<vmem>>, %arg5: memref<1x896xf32, #tpu.memory_space<vmem>>, %arg6: memref<8x1024xf32, #tpu.memory_space<vmem>>, %arg7: memref<8x896xf32, #tpu.memory_space<vmem>>) attributes {dimension_semantics = [#tpu.dimension_semantics<arbitrary>], iteration_bounds = array<i64: 1>, scalar_prefetch = 0 : i64, scratch_operands = 0 : i64, tpu.core_type = #tpu.core_type<tc>, window_params = [{pipeline_mode = #tpu.pipeline_mode<synchronous>, transform_indices = @transform_0, window_bounds = array<i64: 8, 896>}, {pipeline_mode = #tpu.pipeline_mode<synchronous>, transform_indices = @transform_1, window_bounds = array<i64: 896, 1024>}, {pipeline_mode = #tpu.pipeline_mode<synchronous>, transform_indices = @transform_2, window_bounds = array<i64: 1, 1024>}, {pipeline_mode = #tpu.pipeline_mode<synchronous>, transform_indices = @transform_3, window_bounds = array<i64: 1024, 896>}, {pipeline_mode = #tpu.pipeline_mode<synchronous>, transform_indices = @transform_4, window_bounds = array<i64: 1, 896>}, {pipeline_mode = #tpu.pipeline_mode<synchronous>, transform_indices = @transform_5, window_bounds = array<i64: 8, 1024>}, {pipeline_mode = #tpu.pipeline_mode<synchronous>, transform_indices = @transform_6, window_bounds = array<i64: 8, 896>}]} {
    %c0 = arith.constant 0 : index
    %c0_0 = arith.constant 0 : index
    %0 = vector.load %arg1[%c0, %c0_0] : memref<8x896xbf16, #tpu.memory_space<vmem>>, vector<8x896xbf16>
    %c0_1 = arith.constant 0 : index
    %c0_2 = arith.constant 0 : index
    %1 = vector.load %arg2[%c0_1, %c0_2] : memref<896x1024xbf16, #tpu.memory_space<vmem>>, vector<896x1024xbf16>
    %cst = arith.constant dense<0.000000e+00> : vector<8x1024xf32>
    %2 = tpu.matmul %0, %1, %cst {dimension_numbers = #tpu.dot_dimension_numbers<[1], [0], [0], [1], [0, 0, 1, 1], [], []>} : vector<8x896xbf16>, vector<896x1024xbf16>, vector<8x1024xf32> -> vector<8x1024xf32>
    %c0_3 = arith.constant 0 : index
    %c0_4 = arith.constant 0 : index
    %3 = vector.load %arg3[%c0_3, %c0_4] : memref<1x1024xf32, #tpu.memory_space<vmem>>, vector<1x1024xf32>
    %4 = vector.broadcast %3 : vector<1x1024xf32> to vector<8x1024xf32>
    %5 = arith.addf %2, %4 : vector<8x1024xf32>
    %c0_5 = arith.constant 0 : index
    %c0_6 = arith.constant 0 : index
    %6 = vector.load %arg6[%c0_5, %c0_6] : memref<8x1024xf32, #tpu.memory_space<vmem>>, vector<8x1024xf32>
    tpu.vector_store %arg6[%c0_5, %c0_6], %5 {strides = array<i32>} : memref<8x1024xf32, #tpu.memory_space<vmem>>, vector<8x1024xf32>,
    %7 = arith.truncf %5 : vector<8x1024xf32> to vector<8x1024xbf16>
    %c0_7 = arith.constant 0 : index
    %c0_8 = arith.constant 0 : index
    %8 = vector.load %arg4[%c0_7, %c0_8] : memref<1024x896xbf16, #tpu.memory_space<vmem>>, vector<1024x896xbf16>
    %cst_9 = arith.constant dense<0.000000e+00> : vector<8x896xf32>
    %9 = tpu.matmul %7, %8, %cst_9 {dimension_numbers = #tpu.dot_dimension_numbers<[1], [0], [0], [1], [0, 0, 1, 1], [], []>} : vector<8x1024xbf16>, vector<1024x896xbf16>, vector<8x896xf32> -> vector<8x896xf32>
    %c0_10 = arith.constant 0 : index
    %c0_11 = arith.constant 0 : index
    %10 = vector.load %arg5[%c0_10, %c0_11] : memref<1x896xf32, #tpu.memory_space<vmem>>, vector<1x896xf32>
    %11 = vector.broadcast %10 : vector<1x896xf32> to vector<8x896xf32>
    %12 = arith.addf %9, %11 : vector<8x896xf32>
    %c0_12 = arith.constant 0 : index
    %c0_13 = arith.constant 0 : index
    %13 = vector.load %arg7[%c0_12, %c0_13] : memref<8x896xf32, #tpu.memory_space<vmem>>, vector<8x896xf32>
    tpu.vector_store %arg7[%c0_12, %c0_13], %12 {strides = array<i32>} : memref<8x896xf32, #tpu.memory_space<vmem>>, vector<8x896xf32>,
    return
  }
  func.func @transform_0(%arg0: i32) -> (i32, i32) {
    %c0_i32 = arith.constant 0 : i32
    %c0_i32_0 = arith.constant 0 : i32
    %c0_i32_1 = arith.constant 0 : i32
    return %c0_i32, %c0_i32_0 : i32, i32
  }
  func.func @transform_1(%arg0: i32) -> (i32, i32) {
    %c0_i32 = arith.constant 0 : i32
    %c0_i32_0 = arith.constant 0 : i32
    %c0_i32_1 = arith.constant 0 : i32
    return %c0_i32, %c0_i32_0 : i32, i32
  }
  func.func @transform_2(%arg0: i32) -> (i32, i32) {
    %c0_i32 = arith.constant 0 : i32
    %c0_i32_0 = arith.constant 0 : i32
    %c0_i32_1 = arith.constant 0 : i32
    return %c0_i32, %c0_i32_0 : i32, i32
  }
  func.func @transform_3(%arg0: i32) -> (i32, i32) {
    %c0_i32 = arith.constant 0 : i32
    %c0_i32_0 = arith.constant 0 : i32
    %c0_i32_1 = arith.constant 0 : i32
    return %c0_i32, %c0_i32_0 : i32, i32
  }
  func.func @transform_4(%arg0: i32) -> (i32, i32) {
    %c0_i32 = arith.constant 0 : i32
    %c0_i32_0 = arith.constant 0 : i32
    %c0_i32_1 = arith.constant 0 : i32
    return %c0_i32, %c0_i32_0 : i32, i32
  }
  func.func @transform_5(%arg0: i32) -> (i32, i32) {
    %c0_i32 = arith.constant 0 : i32
    %c0_i32_0 = arith.constant 0 : i32
    %c0_i32_1 = arith.constant 0 : i32
    return %c0_i32, %c0_i32_0 : i32, i32
  }
  func.func @transform_6(%arg0: i32) -> (i32, i32) {
    %c0_i32 = arith.constant 0 : i32
    %c0_i32_0 = arith.constant 0 : i32
    %c0_i32_1 = arith.constant 0 : i32
    return %c0_i32, %c0_i32_0 : i32, i32
  }
}

</mosaic_0001>

<llo_original>
// kernel: _lambda_.1
$region0: #{_lambda_.1}
  #allocation0 [shape = 'u32[]', space=smem, size = 0x4, offset = 0x4, fixed_abs, tag = 'smem constant byte address 0x4 - core index']
  #allocation1 [shape = 'u32[72,128]{1,0:T(1,128)}', space=vmem, size = 0x9000, scoped, tag = 'internal scratch']
  %s0 = inlined_call_operand.vmem [shape: bf16[8,896], index: 0, kind: input, shape index: {}]
  %s1 = inlined_call_operand.hbm [shape: bf16[896,1024], index: 1, kind: input, shape index: {}]
  %s2 = inlined_call_operand.hbm [shape: f32[1,1024], index: 2, kind: input, shape index: {}]
  %s3 = inlined_call_operand.hbm [shape: bf16[1024,896], index: 3, kind: input, shape index: {}]
  %s4 = inlined_call_operand.hbm [shape: f32[1,896], index: 4, kind: input, shape index: {}]
  %s5 = inlined_call_operand.hbm [shape: f32[8,1024], index: 5, kind: output, shape index: {0}]
  %s6 = inlined_call_operand.hbm [shape: f32[8,896], index: 6, kind: output, shape index: {1}]
  %7 = xla_tuple %s5, %s6
  %s8 = sld [smem:[#allocation0]]
  $region54: #{_lambda_.1} parent=0
    _
  %s10 = ssub.s32 1, %s8
  %s11 = scalar_select 0, %s10, %s8
  $region1: #{_lambda_.1} parent=0
    #allocation2 [shape = 'u8[1835008]{0}', space=vmem, size = 0x1c0000, scoped, tag = 'input window, operand 1, single buffered']
    #allocation3 [shape = 's32[1]{0}', space=sflag, size = 0x4, scoped, tag = 'scoped memory for _lambda_.1']
    #allocation4 [shape = 's32[1]{0}', space=sflag, size = 0x4, scoped, tag = 'scoped memory for _lambda_.1']
    #allocation5 [shape = 'u8[4096]{0}', space=vmem, size = 0x1000, scoped, tag = 'input window, operand 2, single buffered']
    #allocation6 [shape = 's32[1]{0}', space=sflag, size = 0x4, scoped, tag = 'scoped memory for _lambda_.1']
    #allocation7 [shape = 'u8[1835008]{0}', space=vmem, size = 0x1c0000, scoped, tag = 'input window, operand 3, single buffered']
    #allocation8 [shape = 'u8[3584]{0}', space=vmem, size = 0x1000, scoped, tag = 'input window, operand 4, single buffered']
    #allocation9 [shape = 's32[1]{0}', space=sflag, size = 0x4, scoped, tag = 'scoped memory for _lambda_.1']
    #allocation10 [shape = 'u8[32768]{0}', space=vmem, size = 0x8000, scoped, tag = 'output window, operand 0, single buffered']
    #allocation11 [shape = 'u8[28672]{0}', space=vmem, size = 0x7000, scoped, tag = 'output window, operand 1, single buffered']
    #allocation12 [shape = 's32[1]{0}', space=sflag, size = 0x4, scoped, tag = 'scoped memory for _lambda_.1']
    %12 = vsyncpa [#allocation3], 0
    %13 = vsyncpa [#allocation6], 0
    %14 = vsyncpa [#allocation9], 0
    %15 = vsyncpa [#allocation4], 0
    %16 = vsyncpa [#allocation12], 0
    // Predicated region
    $region2: #{_lambda_.1} parent=1 // pred_check
      _
    $region3: #{_lambda_.1} parent=1 // pred_check_branch
      %18 = sbr.rel (0) target = $region5
    $region4: #{_lambda_.1} parent=1 // pred_region
      _
    $region5: #{_lambda_.1} parent=1 // pred_fallthru
      _
    // Predicated region
    $region6: #{_lambda_.1} parent=1 // pred_check
      _
    $region7: #{_lambda_.1} parent=1 // pred_check_branch
      %20 = sbr.rel (0) target = $region9
    $region8: #{_lambda_.1} parent=1 // pred_region
      %22 = vsyncadd [#allocation3], 0
      %s23 = sshll.u32 %s1, 4
      %s24 = int_to_ptr.hbm [resolvable:$true] %s23
      %s25 = sshll.u32 [#allocation2], 4
      %s26 = int_to_ptr.vmem [resolvable:$true] %s25
      %31 = dma.hbm_to_vmem [thread:$0]  %s24, 57344, %s26, [#allocation3], 512, 512, 32
    $region9: #{_lambda_.1} parent=1 // pred_fallthru
      _
    // Predicated region
    $region10: #{_lambda_.1} parent=1 // pred_check
      _
    $region11: #{_lambda_.1} parent=1 // pred_check_branch
      %33 = sbr.rel (0) target = $region13
    $region12: #{_lambda_.1} parent=1 // pred_region
      %35 = vsyncadd [#allocation6], 0
      %s37 = sshll.u32 %s2, 4
      %s38 = int_to_ptr.hbm [resolvable:$true] %s37
      %s39 = sshll.u32 [#allocation5], 4
      %s40 = int_to_ptr.vmem [resolvable:$true] %s39
      %42 = dma.hbm_to_vmem [thread:$0]  %s38, 128, %s40, [#allocation6]
    $region13: #{_lambda_.1} parent=1 // pred_fallthru
      _
    // Predicated region
    $region14: #{_lambda_.1} parent=1 // pred_check
      _
    $region15: #{_lambda_.1} parent=1 // pred_check_branch
      %44 = sbr.rel (0) target = $region17
    $region16: #{_lambda_.1} parent=1 // pred_region
      %46 = vsyncadd [#allocation6], 0
      %s47 = sshll.u32 %s3, 4
      %s48 = int_to_ptr.hbm [resolvable:$true] %s47
      %s49 = sshll.u32 [#allocation7], 4
      %s50 = int_to_ptr.vmem [resolvable:$true] %s49
      %55 = dma.hbm_to_vmem [thread:$0]  %s48, 57344, %s50, [#allocation6], 448, 448, 28
    $region17: #{_lambda_.1} parent=1 // pred_fallthru
      _
    // Predicated region
    $region18: #{_lambda_.1} parent=1 // pred_check
      _
    $region19: #{_lambda_.1} parent=1 // pred_check_branch
      %57 = sbr.rel (0) target = $region21
    $region20: #{_lambda_.1} parent=1 // pred_region
      %59 = vsyncadd [#allocation9], 0
      %s61 = sshll.u32 %s4, 4
      %s62 = int_to_ptr.hbm [resolvable:$true] %s61
      %s63 = sshll.u32 [#allocation8], 4
      %s64 = int_to_ptr.vmem [resolvable:$true] %s63
      %66 = dma.hbm_to_vmem [thread:$0]  %s62, 112, %s64, [#allocation9]
    $region21: #{_lambda_.1} parent=1 // pred_fallthru
      _
    // Predicated region
    $region22: #{_lambda_.1} parent=1 // pred_check
      _
    $region23: #{_lambda_.1} parent=1 // pred_check_branch
      %68 = sbr.rel (0) target = $region25
    $region24: #{_lambda_.1} parent=1 // pred_region
      %70 = dma.done [#allocation3], 57344
    $region25: #{_lambda_.1} parent=1 // pred_fallthru
      _
    // Predicated region
    $region26: #{_lambda_.1} parent=1 // pred_check
      _
    $region27: #{_lambda_.1} parent=1 // pred_check_branch
      %72 = sbr.rel (0) target = $region29
    $region28: #{_lambda_.1} parent=1 // pred_region
      %74 = dma.done [#allocation6], 128
    $region29: #{_lambda_.1} parent=1 // pred_fallthru
      _
    // Predicated region
    $region30: #{_lambda_.1} parent=1 // pred_check
      _
    $region31: #{_lambda_.1} parent=1 // pred_check_branch
      %76 = sbr.rel (0) target = $region33
    $region32: #{_lambda_.1} parent=1 // pred_region
      %78 = dma.done [#allocation6], 57344
    $region33: #{_lambda_.1} parent=1 // pred_fallthru
      _
    // Predicated region
    $region34: #{_lambda_.1} parent=1 // pred_check
      _
    $region35: #{_lambda_.1} parent=1 // pred_check_branch
      %80 = sbr.rel (0) target = $region37
    $region36: #{_lambda_.1} parent=1 // pred_region
      %82 = dma.done [#allocation9], 112
    $region37: #{_lambda_.1} parent=1 // pred_fallthru
      _
    %v83 = vld [vmem:[%s0] sm:$0xff]
    %v84 = vld [vmem:[%s0 + $0x8] sm:$0xff]
    %v85 = vld [vmem:[%s0 + $0x10] sm:$0xff]
    %v86 = vld [vmem:[%s0 + $0x18] sm:$0xf]
    %v87 = vld [vmem:[#allocation2] sm:$0xff]
    %v88 = vld [vmem:[#allocation2 + $0x8] sm:$0xff]
    %v89 = vld [vmem:[#allocation2 + $0x10] sm:$0xff]
    %v90 = vld [vmem:[#allocation2 + $0x18] sm:$0xff]
    %v91 = vld [vmem:[#allocation2 + $0x20] sm:$0xff]
    %v92 = vld [vmem:[#allocation2 + $0x28] sm:$0xff]
    %v93 = vld [vmem:[#allocation2 + $0x30] sm:$0xff]
    %v94 = vld [vmem:[#allocation2 + $0x38] sm:$0xff]
    %v95 = vld [vmem:[#allocation2 + $0x40] sm:$0xff]
    %v96 = vld [vmem:[#allocation2 + $0x48] sm:$0xff]
    %v97 = vld [vmem:[#allocation2 + $0x50] sm:$0xff]
    %v98 = vld [vmem:[#allocation2 + $0x58] sm:$0xff]
    %v99 = vld [vmem:[#allocation2 + $0x60] sm:$0xff]
    %v100 = vld [vmem:[#allocation2 + $0x68] sm:$0xff]
    %v101 = vld [vmem:[#allocation2 + $0x70] sm:$0xff]
    %v102 = vld [vmem:[#allocation2 + $0x78] sm:$0xff]
    %v103 = vld [vmem:[#allocation2 + $0x80] sm:$0xff]
    %v104 = vld [vmem:[#allocation2 + $0x88] sm:$0xff]
    %v105 = vld [vmem:[#allocation2 + $0x90] sm:$0xff]
    %v106 = vld [vmem:[#allocation2 + $0x98] sm:$0xff]
    %v107 = vld [vmem:[#allocation2 + $0xa0] sm:$0xff]
    %v108 = vld [vmem:[#allocation2 + $0xa8] sm:$0xff]
    %v109 = vld [vmem:[#allocation2 + $0xb0] sm:$0xff]
    %v110 = vld [vmem:[#allocation2 + $0xb8] sm:$0xff]
    %v111 = vld [vmem:[#allocation2 + $0xc0] sm:$0xff]
    %v112 = vld [vmem:[#allocation2 + $0xc8] sm:$0xff]
    %v113 = vld [vmem:[#allocation2 + $0xd0] sm:$0xff]
    %v114 = vld [vmem:[#allocation2 + $0xd8] sm:$0xff]
    %v115 = vld [vmem:[#allocation2 + $0xe0] sm:$0xff]
    %v116 = vld [vmem:[#allocation2 + $0xe8] sm:$0xff]
    %v117 = vld [vmem:[#allocation2 + $0xf0] sm:$0xff]
    %v118 = vld [vmem:[#allocation2 + $0xf8] sm:$0xff]
    %v119 = vld [vmem:[#allocation2 + $0x100] sm:$0xff]
    %v120 = vld [vmem:[#allocation2 + $0x108] sm:$0xff]
    %v121 = vld [vmem:[#allocation2 + $0x110] sm:$0xff]
    %v122 = vld [vmem:[#allocation2 + $0x118] sm:$0xff]
    %v123 = vld [vmem:[#allocation2 + $0x120] sm:$0xff]
    %v124 = vld [vmem:[#allocation2 + $0x128] sm:$0xff]
    %v125 = vld [vmem:[#allocation2 + $0x130] sm:$0xff]
    %v126 = vld [vmem:[#allocation2 + $0x138] sm:$0xff]
    %v127 = vld [vmem:[#allocation2 + $0x140] sm:$0xff]
    %v128 = vld [vmem:[#allocation2 + $0x148] sm:$0xff]
    %v129 = vld [vmem:[#allocation2 + $0x150] sm:$0xff]
    %v130 = vld [vmem:[#allocation2 + $0x158] sm:$0xff]
    %v131 = vld [vmem:[#allocation2 + $0x160] sm:$0xff]
    %v132 = vld [vmem:[#allocation2 + $0x168] sm:$0xff]
    %v133 = vld [vmem:[#allocation2 + $0x170] sm:$0xff]
    %v134 = vld [vmem:[#allocation2 + $0x178] sm:$0xff]
    %v135 = vld [vmem:[#allocation2 + $0x180] sm:$0xff]
    %v136 = vld [vmem:[#allocation2 + $0x188] sm:$0xff]
    %v137 = vld [vmem:[#allocation2 + $0x190] sm:$0xff]
    %v138 = vld [vmem:[#allocation2 + $0x198] sm:$0xff]
    %v139 = vld [vmem:[#allocation2 + $0x1a0] sm:$0xff]
    %v140 = vld [vmem:[#allocation2 + $0x1a8] sm:$0xff]
    %v141 = vld [vmem:[#allocation2 + $0x1b0] sm:$0xff]
    %v142 = vld [vmem:[#allocation2 + $0x1b8] sm:$0xff]
    %v143 = vld [vmem:[#allocation2 + $0x1c0] sm:$0xff]
    %v144 = vld [vmem:[#allocation2 + $0x1c8] sm:$0xff]
    %v145 = vld [vmem:[#allocation2 + $0x1d0] sm:$0xff]
    %v146 = vld [vmem:[#allocation2 + $0x1d8] sm:$0xff]
    %v147 = vld [vmem:[#allocation2 + $0x1e0] sm:$0xff]
    %v148 = vld [vmem:[#allocation2 + $0x1e8] sm:$0xff]
    %v149 = vld [vmem:[#allocation2 + $0x1f0] sm:$0xff]
    %v150 = vld [vmem:[#allocation2 + $0x1f8] sm:$0xff]
    %v151 = vld [vmem:[#allocation2 + $0x200] sm:$0xff]
    %v152 = vld [vmem:[#allocation2 + $0x208] sm:$0xff]
    %v153 = vld [vmem:[#allocation2 + $0x210] sm:$0xff]
    %v154 = vld [vmem:[#allocation2 + $0x218] sm:$0xff]
    %v155 = vld [vmem:[#allocation2 + $0x220] sm:$0xff]
    %v156 = vld [vmem:[#allocation2 + $0x228] sm:$0xff]
    %v157 = vld [vmem:[#allocation2 + $0x230] sm:$0xff]
    %v158 = vld [vmem:[#allocation2 + $0x238] sm:$0xff]
    %v159 = vld [vmem:[#allocation2 + $0x240] sm:$0xff]
    %v160 = vld [vmem:[#allocation2 + $0x248] sm:$0xff]
    %v161 = vld [vmem:[#allocation2 + $0x250] sm:$0xff]
    %v162 = vld [vmem:[#allocation2 + $0x258] sm:$0xff]
    %v163 = vld [vmem:[#allocation2 + $0x260] sm:$0xff]
    %v164 = vld [vmem:[#allocation2 + $0x268] sm:$0xff]
    %v165 = vld [vmem:[#allocation2 + $0x270] sm:$0xff]
    %v166 = vld [vmem:[#allocation2 + $0x278] sm:$0xff]
    %v167 = vld [vmem:[#allocation2 + $0x280] sm:$0xff]
    %v168 = vld [vmem:[#allocation2 + $0x288] sm:$0xff]
    %v169 = vld [vmem:[#allocation2 + $0x290] sm:$0xff]
    %v170 = vld [vmem:[#allocation2 + $0x298] sm:$0xff]
    %v171 = vld [vmem:[#allocation2 + $0x2a0] sm:$0xff]
    %v172 = vld [vmem:[#allocation2 + $0x2a8] sm:$0xff]
    %v173 = vld [vmem:[#allocation2 + $0x2b0] sm:$0xff]
    %v174 = vld [vmem:[#allocation2 + $0x2b8] sm:$0xff]
    %v175 = vld [vmem:[#allocation2 + $0x2c0] sm:$0xff]
    %v176 = vld [vmem:[#allocation2 + $0x2c8] sm:$0xff]
    %v177 = vld [vmem:[#allocation2 + $0x2d0] sm:$0xff]
    %v178 = vld [vmem:[#allocation2 + $0x2d8] sm:$0xff]
    %v179 = vld [vmem:[#allocation2 + $0x2e0] sm:$0xff]
    %v180 = vld [vmem:[#allocation2 + $0x2e8] sm:$0xff]
    %v181 = vld [vmem:[#allocation2 + $0x2f0] sm:$0xff]
    %v182 = vld [vmem:[#allocation2 + $0x2f8] sm:$0xff]
    %v183 = vld [vmem:[#allocation2 + $0x300] sm:$0xff]
    %v184 = vld [vmem:[#allocation2 + $0x308] sm:$0xff]
    %v185 = vld [vmem:[#allocation2 + $0x310] sm:$0xff]
    %v186 = vld [vmem:[#allocation2 + $0x318] sm:$0xff]
    %v187 = vld [vmem:[#allocation2 + $0x320] sm:$0xff]
    %v188 = vld [vmem:[#allocation2 + $0x328] sm:$0xff]
    %v189 = vld [vmem:[#allocation2 + $0x330] sm:$0xff]
    %v190 = vld [vmem:[#allocation2 + $0x338] sm:$0xff]
    %v191 = vld [vmem:[#allocation2 + $0x340] sm:$0xff]
    %v192 = vld [vmem:[#allocation2 + $0x348] sm:$0xff]
    %v193 = vld [vmem:[#allocation2 + $0x350] sm:$0xff]
    %v194 = vld [vmem:[#allocation2 + $0x358] sm:$0xff]
    %v195 = vld [vmem:[#allocation2 + $0x360] sm:$0xff]
    %v196 = vld [vmem:[#allocation2 + $0x368] sm:$0xff]
    %v197 = vld [vmem:[#allocation2 + $0x370] sm:$0xff]
    %v198 = vld [vmem:[#allocation2 + $0x378] sm:$0xff]
    %v199 = vld [vmem:[#allocation2 + $0x380] sm:$0xff]
    %v200 = vld [vmem:[#allocation2 + $0x388] sm:$0xff]
    %v201 = vld [vmem:[#allocation2 + $0x390] sm:$0xff]
    %v202 = vld [vmem:[#allocation2 + $0x398] sm:$0xff]
    %v203 = vld [vmem:[#allocation2 + $0x3a0] sm:$0xff]
    %v204 = vld [vmem:[#allocation2 + $0x3a8] sm:$0xff]
    %v205 = vld [vmem:[#allocation2 + $0x3b0] sm:$0xff]
    %v206 = vld [vmem:[#allocation2 + $0x3b8] sm:$0xff]
    %v207 = vld [vmem:[#allocation2 + $0x3c0] sm:$0xff]
    %v208 = vld [vmem:[#allocation2 + $0x3c8] sm:$0xff]
    %v209 = vld [vmem:[#allocation2 + $0x3d0] sm:$0xff]
    %v210 = vld [vmem:[#allocation2 + $0x3d8] sm:$0xff]
    %v211 = vld [vmem:[#allocation2 + $0x3e0] sm:$0xff]
    %v212 = vld [vmem:[#allocation2 + $0x3e8] sm:$0xff]
    %v213 = vld [vmem:[#allocation2 + $0x3f0] sm:$0xff]
    %v214 = vld [vmem:[#allocation2 + $0x3f8] sm:$0xff]
    %v215 = vld [vmem:[#allocation2 + $0x400] sm:$0xff]
    %v216 = vld [vmem:[#allocation2 + $0x408] sm:$0xff]
    %v217 = vld [vmem:[#allocation2 + $0x410] sm:$0xff]
    %v218 = vld [vmem:[#allocation2 + $0x418] sm:$0xff]
    %v219 = vld [vmem:[#allocation2 + $0x420] sm:$0xff]
    %v220 = vld [vmem:[#allocation2 + $0x428] sm:$0xff]
    %v221 = vld [vmem:[#allocation2 + $0x430] sm:$0xff]
    %v222 = vld [vmem:[#allocation2 + $0x438] sm:$0xff]
    %v223 = vld [vmem:[#allocation2 + $0x440] sm:$0xff]
    %v224 = vld [vmem:[#allocation2 + $0x448] sm:$0xff]
    %v225 = vld [vmem:[#allocation2 + $0x450] sm:$0xff]
    %v226 = vld [vmem:[#allocation2 + $0x458] sm:$0xff]
    %v227 = vld [vmem:[#allocation2 + $0x460] sm:$0xff]
    %v228 = vld [vmem:[#allocation2 + $0x468] sm:$0xff]
    %v229 = vld [vmem:[#allocation2 + $0x470] sm:$0xff]
    %v230 = vld [vmem:[#allocation2 + $0x478] sm:$0xff]
    %v231 = vld [vmem:[#allocation2 + $0x480] sm:$0xff]
    %v232 = vld [vmem:[#allocation2 + $0x488] sm:$0xff]
    %v233 = vld [vmem:[#allocation2 + $0x490] sm:$0xff]
    %v234 = vld [vmem:[#allocation2 + $0x498] sm:$0xff]
    %v235 = vld [vmem:[#allocation2 + $0x4a0] sm:$0xff]
    %v236 = vld [vmem:[#allocation2 + $0x4a8] sm:$0xff]
    %v237 = vld [vmem:[#allocation2 + $0x4b0] sm:$0xff]
    %v238 = vld [vmem:[#allocation2 + $0x4b8] sm:$0xff]
    %v239 = vld [vmem:[#allocation2 + $0x4c0] sm:$0xff]
    %v240 = vld [vmem:[#allocation2 + $0x4c8] sm:$0xff]
    %v241 = vld [vmem:[#allocation2 + $0x4d0] sm:$0xff]
    %v242 = vld [vmem:[#allocation2 + $0x4d8] sm:$0xff]
    %v243 = vld [vmem:[#allocation2 + $0x4e0] sm:$0xff]
    %v244 = vld [vmem:[#allocation2 + $0x4e8] sm:$0xff]
    %v245 = vld [vmem:[#allocation2 + $0x4f0] sm:$0xff]
    %v246 = vld [vmem:[#allocation2 + $0x4f8] sm:$0xff]
    %v247 = vld [vmem:[#allocation2 + $0x500] sm:$0xff]
    %v248 = vld [vmem:[#allocation2 + $0x508] sm:$0xff]
    %v249 = vld [vmem:[#allocation2 + $0x510] sm:$0xff]
    %v250 = vld [vmem:[#allocation2 + $0x518] sm:$0xff]
    %v251 = vld [vmem:[#allocation2 + $0x520] sm:$0xff]
    %v252 = vld [vmem:[#allocation2 + $0x528] sm:$0xff]
    %v253 = vld [vmem:[#allocation2 + $0x530] sm:$0xff]
    %v254 = vld [vmem:[#allocation2 + $0x538] sm:$0xff]
    %v255 = vld [vmem:[#allocation2 + $0x540] sm:$0xff]
    %v256 = vld [vmem:[#allocation2 + $0x548] sm:$0xff]
    %v257 = vld [vmem:[#allocation2 + $0x550] sm:$0xff]
    %v258 = vld [vmem:[#allocation2 + $0x558] sm:$0xff]
    %v259 = vld [vmem:[#allocation2 + $0x560] sm:$0xff]
    %v260 = vld [vmem:[#allocation2 + $0x568] sm:$0xff]
    %v261 = vld [vmem:[#allocation2 + $0x570] sm:$0xff]
    %v262 = vld [vmem:[#allocation2 + $0x578] sm:$0xff]
    %v263 = vld [vmem:[#allocation2 + $0x580] sm:$0xff]
    %v264 = vld [vmem:[#allocation2 + $0x588] sm:$0xff]
    %v265 = vld [vmem:[#allocation2 + $0x590] sm:$0xff]
    %v266 = vld [vmem:[#allocation2 + $0x598] sm:$0xff]
    %v267 = vld [vmem:[#allocation2 + $0x5a0] sm:$0xff]
    %v268 = vld [vmem:[#allocation2 + $0x5a8] sm:$0xff]
    %v269 = vld [vmem:[#allocation2 + $0x5b0] sm:$0xff]
    %v270 = vld [vmem:[#allocation2 + $0x5b8] sm:$0xff]
    %v271 = vld [vmem:[#allocation2 + $0x5c0] sm:$0xff]
    %v272 = vld [vmem:[#allocation2 + $0x5c8] sm:$0xff]
    %v273 = vld [vmem:[#allocation2 + $0x5d0] sm:$0xff]
    %v274 = vld [vmem:[#allocation2 + $0x5d8] sm:$0xff]
    %v275 = vld [vmem:[#allocation2 + $0x5e0] sm:$0xff]
    %v276 = vld [vmem:[#allocation2 + $0x5e8] sm:$0xff]
    %v277 = vld [vmem:[#allocation2 + $0x5f0] sm:$0xff]
    %v278 = vld [vmem:[#allocation2 + $0x5f8] sm:$0xff]
    %v279 = vld [vmem:[#allocation2 + $0x600] sm:$0xff]
    %v280 = vld [vmem:[#allocation2 + $0x608] sm:$0xff]
    %v281 = vld [vmem:[#allocation2 + $0x610] sm:$0xff]
    %v282 = vld [vmem:[#allocation2 + $0x618] sm:$0xff]
    %v283 = vld [vmem:[#allocation2 + $0x620] sm:$0xff]
    %v284 = vld [vmem:[#allocation2 + $0x628] sm:$0xff]
    %v285 = vld [vmem:[#allocation2 + $0x630] sm:$0xff]
    %v286 = vld [vmem:[#allocation2 + $0x638] sm:$0xff]
    %v287 = vld [vmem:[#allocation2 + $0x640] sm:$0xff]
    %v288 = vld [vmem:[#allocation2 + $0x648] sm:$0xff]
    %v289 = vld [vmem:[#allocation2 + $0x650] sm:$0xff]
    %v290 = vld [vmem:[#allocation2 + $0x658] sm:$0xff]
    %v291 = vld [vmem:[#allocation2 + $0x660] sm:$0xff]
    %v292 = vld [vmem:[#allocation2 + $0x668] sm:$0xff]
    %v293 = vld [vmem:[#allocation2 + $0x670] sm:$0xff]
    %v294 = vld [vmem:[#allocation2 + $0x678] sm:$0xff]
    %v295 = vld [vmem:[#allocation2 + $0x680] sm:$0xff]
    %v296 = vld [vmem:[#allocation2 + $0x688] sm:$0xff]
    %v297 = vld [vmem:[#allocation2 + $0x690] sm:$0xff]
    %v298 = vld [vmem:[#allocation2 + $0x698] sm:$0xff]
    %v299 = vld [vmem:[#allocation2 + $0x6a0] sm:$0xff]
    %v300 = vld [vmem:[#allocation2 + $0x6a8] sm:$0xff]
    %v301 = vld [vmem:[#allocation2 + $0x6b0] sm:$0xff]
    %v302 = vld [vmem:[#allocation2 + $0x6b8] sm:$0xff]
    %v303 = vld [vmem:[#allocation2 + $0x6c0] sm:$0xff]
    %v304 = vld [vmem:[#allocation2 + $0x6c8] sm:$0xff]
    %v305 = vld [vmem:[#allocation2 + $0x6d0] sm:$0xff]
    %v306 = vld [vmem:[#allocation2 + $0x6d8] sm:$0xff]
    %v307 = vld [vmem:[#allocation2 + $0x6e0] sm:$0xff]
    %v308 = vld [vmem:[#allocation2 + $0x6e8] sm:$0xff]
    %v309 = vld [vmem:[#allocation2 + $0x6f0] sm:$0xff]
    %v310 = vld [vmem:[#allocation2 + $0x6f8] sm:$0xff]
    %v311 = vld [vmem:[#allocation2 + $0x700] sm:$0xff]
    %v312 = vld [vmem:[#allocation2 + $0x708] sm:$0xff]
    %v313 = vld [vmem:[#allocation2 + $0x710] sm:$0xff]
    %v314 = vld [vmem:[#allocation2 + $0x718] sm:$0xff]
    %v315 = vld [vmem:[#allocation2 + $0x720] sm:$0xff]
    %v316 = vld [vmem:[#allocation2 + $0x728] sm:$0xff]
    %v317 = vld [vmem:[#allocation2 + $0x730] sm:$0xff]
    %v318 = vld [vmem:[#allocation2 + $0x738] sm:$0xff]
    %v319 = vld [vmem:[#allocation2 + $0x740] sm:$0xff]
    %v320 = vld [vmem:[#allocation2 + $0x748] sm:$0xff]
    %v321 = vld [vmem:[#allocation2 + $0x750] sm:$0xff]
    %v322 = vld [vmem:[#allocation2 + $0x758] sm:$0xff]
    %v323 = vld [vmem:[#allocation2 + $0x760] sm:$0xff]
    %v324 = vld [vmem:[#allocation2 + $0x768] sm:$0xff]
    %v325 = vld [vmem:[#allocation2 + $0x770] sm:$0xff]
    %v326 = vld [vmem:[#allocation2 + $0x778] sm:$0xff]
    %v327 = vld [vmem:[#allocation2 + $0x780] sm:$0xff]
    %v328 = vld [vmem:[#allocation2 + $0x788] sm:$0xff]
    %v329 = vld [vmem:[#allocation2 + $0x790] sm:$0xff]
    %v330 = vld [vmem:[#allocation2 + $0x798] sm:$0xff]
    %v331 = vld [vmem:[#allocation2 + $0x7a0] sm:$0xff]
    %v332 = vld [vmem:[#allocation2 + $0x7a8] sm:$0xff]
    %v333 = vld [vmem:[#allocation2 + $0x7b0] sm:$0xff]
    %v334 = vld [vmem:[#allocation2 + $0x7b8] sm:$0xff]
    %v335 = vld [vmem:[#allocation2 + $0x7c0] sm:$0xff]
    %v336 = vld [vmem:[#allocation2 + $0x7c8] sm:$0xff]
    %v337 = vld [vmem:[#allocation2 + $0x7d0] sm:$0xff]
    %v338 = vld [vmem:[#allocation2 + $0x7d8] sm:$0xff]
    %v339 = vld [vmem:[#allocation2 + $0x7e0] sm:$0xff]
    %v340 = vld [vmem:[#allocation2 + $0x7e8] sm:$0xff]
    %v341 = vld [vmem:[#allocation2 + $0x7f0] sm:$0xff]
    %v342 = vld [vmem:[#allocation2 + $0x7f8] sm:$0xff]
    %v343 = vld [vmem:[#allocation2 + $0x800] sm:$0xff]
    %v344 = vld [vmem:[#allocation2 + $0x808] sm:$0xff]
    %v345 = vld [vmem:[#allocation2 + $0x810] sm:$0xff]
    %v346 = vld [vmem:[#allocation2 + $0x818] sm:$0xff]
    %v347 = vld [vmem:[#allocation2 + $0x820] sm:$0xff]
    %v348 = vld [vmem:[#allocation2 + $0x828] sm:$0xff]
    %v349 = vld [vmem:[#allocation2 + $0x830] sm:$0xff]
    %v350 = vld [vmem:[#allocation2 + $0x838] sm:$0xff]
    %v351 = vld [vmem:[#allocation2 + $0x840] sm:$0xff]
    %v352 = vld [vmem:[#allocation2 + $0x848] sm:$0xff]
    %v353 = vld [vmem:[#allocation2 + $0x850] sm:$0xff]
    %v354 = vld [vmem:[#allocation2 + $0x858] sm:$0xff]
    %v355 = vld [vmem:[#allocation2 + $0x860] sm:$0xff]
    %v356 = vld [vmem:[#allocation2 + $0x868] sm:$0xff]
    %v357 = vld [vmem:[#allocation2 + $0x870] sm:$0xff]
    %v358 = vld [vmem:[#allocation2 + $0x878] sm:$0xff]
    %v359 = vld [vmem:[#allocation2 + $0x880] sm:$0xff]
    %v360 = vld [vmem:[#allocation2 + $0x888] sm:$0xff]
    %v361 = vld [vmem:[#allocation2 + $0x890] sm:$0xff]
    %v362 = vld [vmem:[#allocation2 + $0x898] sm:$0xff]
    %v363 = vld [vmem:[#allocation2 + $0x8a0] sm:$0xff]
    %v364 = vld [vmem:[#allocation2 + $0x8a8] sm:$0xff]
    %v365 = vld [vmem:[#allocation2 + $0x8b0] sm:$0xff]
    %v366 = vld [vmem:[#allocation2 + $0x8b8] sm:$0xff]
    %v367 = vld [vmem:[#allocation2 + $0x8c0] sm:$0xff]
    %v368 = vld [vmem:[#allocation2 + $0x8c8] sm:$0xff]
    %v369 = vld [vmem:[#allocation2 + $0x8d0] sm:$0xff]
    %v370 = vld [vmem:[#allocation2 + $0x8d8] sm:$0xff]
    %v371 = vld [vmem:[#allocation2 + $0x8e0] sm:$0xff]
    %v372 = vld [vmem:[#allocation2 + $0x8e8] sm:$0xff]
    %v373 = vld [vmem:[#allocation2 + $0x8f0] sm:$0xff]
    %v374 = vld [vmem:[#allocation2 + $0x8f8] sm:$0xff]
    %v375 = vld [vmem:[#allocation2 + $0x900] sm:$0xff]
    %v376 = vld [vmem:[#allocation2 + $0x908] sm:$0xff]
    %v377 = vld [vmem:[#allocation2 + $0x910] sm:$0xff]
    %v378 = vld [vmem:[#allocation2 + $0x918] sm:$0xff]
    %v379 = vld [vmem:[#allocation2 + $0x920] sm:$0xff]
    %v380 = vld [vmem:[#allocation2 + $0x928] sm:$0xff]
    %v381 = vld [vmem:[#allocation2 + $0x930] sm:$0xff]
    %v382 = vld [vmem:[#allocation2 + $0x938] sm:$0xff]
    %v383 = vld [vmem:[#allocation2 + $0x940] sm:$0xff]
    %v384 = vld [vmem:[#allocation2 + $0x948] sm:$0xff]
    %v385 = vld [vmem:[#allocation2 + $0x950] sm:$0xff]
    %v386 = vld [vmem:[#allocation2 + $0x958] sm:$0xff]
    %v387 = vld [vmem:[#allocation2 + $0x960] sm:$0xff]
    %v388 = vld [vmem:[#allocation2 + $0x968] sm:$0xff]
    %v389 = vld [vmem:[#allocation2 + $0x970] sm:$0xff]
    %v390 = vld [vmem:[#allocation2 + $0x978] sm:$0xff]
    %v391 = vld [vmem:[#allocation2 + $0x980] sm:$0xff]
    %v392 = vld [vmem:[#allocation2 + $0x988] sm:$0xff]
    %v393 = vld [vmem:[#allocation2 + $0x990] sm:$0xff]
    %v394 = vld [vmem:[#allocation2 + $0x998] sm:$0xff]
    %v395 = vld [vmem:[#allocation2 + $0x9a0] sm:$0xff]
    %v396 = vld [vmem:[#allocation2 + $0x9a8] sm:$0xff]
    %v397 = vld [vmem:[#allocation2 + $0x9b0] sm:$0xff]
    %v398 = vld [vmem:[#allocation2 + $0x9b8] sm:$0xff]
    %v399 = vld [vmem:[#allocation2 + $0x9c0] sm:$0xff]
    %v400 = vld [vmem:[#allocation2 + $0x9c8] sm:$0xff]
    %v401 = vld [vmem:[#allocation2 + $0x9d0] sm:$0xff]
    %v402 = vld [vmem:[#allocation2 + $0x9d8] sm:$0xff]
    %v403 = vld [vmem:[#allocation2 + $0x9e0] sm:$0xff]
    %v404 = vld [vmem:[#allocation2 + $0x9e8] sm:$0xff]
    %v405 = vld [vmem:[#allocation2 + $0x9f0] sm:$0xff]
    %v406 = vld [vmem:[#allocation2 + $0x9f8] sm:$0xff]
    %v407 = vld [vmem:[#allocation2 + $0xa00] sm:$0xff]
    %v408 = vld [vmem:[#allocation2 + $0xa08] sm:$0xff]
    %v409 = vld [vmem:[#allocation2 + $0xa10] sm:$0xff]
    %v410 = vld [vmem:[#allocation2 + $0xa18] sm:$0xff]
    %v411 = vld [vmem:[#allocation2 + $0xa20] sm:$0xff]
    %v412 = vld [vmem:[#allocation2 + $0xa28] sm:$0xff]
    %v413 = vld [vmem:[#allocation2 + $0xa30] sm:$0xff]
    %v414 = vld [vmem:[#allocation2 + $0xa38] sm:$0xff]
    %v415 = vld [vmem:[#allocation2 + $0xa40] sm:$0xff]
    %v416 = vld [vmem:[#allocation2 + $0xa48] sm:$0xff]
    %v417 = vld [vmem:[#allocation2 + $0xa50] sm:$0xff]
    %v418 = vld [vmem:[#allocation2 + $0xa58] sm:$0xff]
    %v419 = vld [vmem:[#allocation2 + $0xa60] sm:$0xff]
    %v420 = vld [vmem:[#allocation2 + $0xa68] sm:$0xff]
    %v421 = vld [vmem:[#allocation2 + $0xa70] sm:$0xff]
    %v422 = vld [vmem:[#allocation2 + $0xa78] sm:$0xff]
    %v423 = vld [vmem:[#allocation2 + $0xa80] sm:$0xff]
    %v424 = vld [vmem:[#allocation2 + $0xa88] sm:$0xff]
    %v425 = vld [vmem:[#allocation2 + $0xa90] sm:$0xff]
    %v426 = vld [vmem:[#allocation2 + $0xa98] sm:$0xff]
    %v427 = vld [vmem:[#allocation2 + $0xaa0] sm:$0xff]
    %v428 = vld [vmem:[#allocation2 + $0xaa8] sm:$0xff]
    %v429 = vld [vmem:[#allocation2 + $0xab0] sm:$0xff]
    %v430 = vld [vmem:[#allocation2 + $0xab8] sm:$0xff]
    %v431 = vld [vmem:[#allocation2 + $0xac0] sm:$0xff]
    %v432 = vld [vmem:[#allocation2 + $0xac8] sm:$0xff]
    %v433 = vld [vmem:[#allocation2 + $0xad0] sm:$0xff]
    %v434 = vld [vmem:[#allocation2 + $0xad8] sm:$0xff]
    %v435 = vld [vmem:[#allocation2 + $0xae0] sm:$0xff]
    %v436 = vld [vmem:[#allocation2 + $0xae8] sm:$0xff]
    %v437 = vld [vmem:[#allocation2 + $0xaf0] sm:$0xff]
    %v438 = vld [vmem:[#allocation2 + $0xaf8] sm:$0xff]
    %v439 = vld [vmem:[#allocation2 + $0xb00] sm:$0xff]
    %v440 = vld [vmem:[#allocation2 + $0xb08] sm:$0xff]
    %v441 = vld [vmem:[#allocation2 + $0xb10] sm:$0xff]
    %v442 = vld [vmem:[#allocation2 + $0xb18] sm:$0xff]
    %v443 = vld [vmem:[#allocation2 + $0xb20] sm:$0xff]
    %v444 = vld [vmem:[#allocation2 + $0xb28] sm:$0xff]
    %v445 = vld [vmem:[#allocation2 + $0xb30] sm:$0xff]
    %v446 = vld [vmem:[#allocation2 + $0xb38] sm:$0xff]
    %v447 = vld [vmem:[#allocation2 + $0xb40] sm:$0xff]
    %v448 = vld [vmem:[#allocation2 + $0xb48] sm:$0xff]
    %v449 = vld [vmem:[#allocation2 + $0xb50] sm:$0xff]
    %v450 = vld [vmem:[#allocation2 + $0xb58] sm:$0xff]
    %v451 = vld [vmem:[#allocation2 + $0xb60] sm:$0xff]
    %v452 = vld [vmem:[#allocation2 + $0xb68] sm:$0xff]
    %v453 = vld [vmem:[#allocation2 + $0xb70] sm:$0xff]
    %v454 = vld [vmem:[#allocation2 + $0xb78] sm:$0xff]
    %v455 = vld [vmem:[#allocation2 + $0xb80] sm:$0xff]
    %v456 = vld [vmem:[#allocation2 + $0xb88] sm:$0xff]
    %v457 = vld [vmem:[#allocation2 + $0xb90] sm:$0xff]
    %v458 = vld [vmem:[#allocation2 + $0xb98] sm:$0xff]
    %v459 = vld [vmem:[#allocation2 + $0xba0] sm:$0xff]
    %v460 = vld [vmem:[#allocation2 + $0xba8] sm:$0xff]
    %v461 = vld [vmem:[#allocation2 + $0xbb0] sm:$0xff]
    %v462 = vld [vmem:[#allocation2 + $0xbb8] sm:$0xff]
    %v463 = vld [vmem:[#allocation2 + $0xbc0] sm:$0xff]
    %v464 = vld [vmem:[#allocation2 + $0xbc8] sm:$0xff]
    %v465 = vld [vmem:[#allocation2 + $0xbd0] sm:$0xff]
    %v466 = vld [vmem:[#allocation2 + $0xbd8] sm:$0xff]
    %v467 = vld [vmem:[#allocation2 + $0xbe0] sm:$0xff]
    %v468 = vld [vmem:[#allocation2 + $0xbe8] sm:$0xff]
    %v469 = vld [vmem:[#allocation2 + $0xbf0] sm:$0xff]
    %v470 = vld [vmem:[#allocation2 + $0xbf8] sm:$0xff]
    %v471 = vld [vmem:[#allocation2 + $0xc00] sm:$0xff]
    %v472 = vld [vmem:[#allocation2 + $0xc08] sm:$0xff]
    %v473 = vld [vmem:[#allocation2 + $0xc10] sm:$0xff]
    %v474 = vld [vmem:[#allocation2 + $0xc18] sm:$0xff]
    %v475 = vld [vmem:[#allocation2 + $0xc20] sm:$0xff]
    %v476 = vld [vmem:[#allocation2 + $0xc28] sm:$0xff]
    %v477 = vld [vmem:[#allocation2 + $0xc30] sm:$0xff]
    %v478 = vld [vmem:[#allocation2 + $0xc38] sm:$0xff]
    %v479 = vld [vmem:[#allocation2 + $0xc40] sm:$0xff]
    %v480 = vld [vmem:[#allocation2 + $0xc48] sm:$0xff]
    %v481 = vld [vmem:[#allocation2 + $0xc50] sm:$0xff]
    %v482 = vld [vmem:[#allocation2 + $0xc58] sm:$0xff]
    %v483 = vld [vmem:[#allocation2 + $0xc60] sm:$0xff]
    %v484 = vld [vmem:[#allocation2 + $0xc68] sm:$0xff]
    %v485 = vld [vmem:[#allocation2 + $0xc70] sm:$0xff]
    %v486 = vld [vmem:[#allocation2 + $0xc78] sm:$0xff]
    %v487 = vld [vmem:[#allocation2 + $0xc80] sm:$0xff]
    %v488 = vld [vmem:[#allocation2 + $0xc88] sm:$0xff]
    %v489 = vld [vmem:[#allocation2 + $0xc90] sm:$0xff]
    %v490 = vld [vmem:[#allocation2 + $0xc98] sm:$0xff]
    %v491 = vld [vmem:[#allocation2 + $0xca0] sm:$0xff]
    %v492 = vld [vmem:[#allocation2 + $0xca8] sm:$0xff]
    %v493 = vld [vmem:[#allocation2 + $0xcb0] sm:$0xff]
    %v494 = vld [vmem:[#allocation2 + $0xcb8] sm:$0xff]
    %v495 = vld [vmem:[#allocation2 + $0xcc0] sm:$0xff]
    %v496 = vld [vmem:[#allocation2 + $0xcc8] sm:$0xff]
    %v497 = vld [vmem:[#allocation2 + $0xcd0] sm:$0xff]
    %v498 = vld [vmem:[#allocation2 + $0xcd8] sm:$0xff]
    %v499 = vld [vmem:[#allocation2 + $0xce0] sm:$0xff]
    %v500 = vld [vmem:[#allocation2 + $0xce8] sm:$0xff]
    %v501 = vld [vmem:[#allocation2 + $0xcf0] sm:$0xff]
    %v502 = vld [vmem:[#allocation2 + $0xcf8] sm:$0xff]
    %v503 = vld [vmem:[#allocation2 + $0xd00] sm:$0xff]
    %v504 = vld [vmem:[#allocation2 + $0xd08] sm:$0xff]
    %v505 = vld [vmem:[#allocation2 + $0xd10] sm:$0xff]
    %v506 = vld [vmem:[#allocation2 + $0xd18] sm:$0xff]
    %v507 = vld [vmem:[#allocation2 + $0xd20] sm:$0xff]
    %v508 = vld [vmem:[#allocation2 + $0xd28] sm:$0xff]
    %v509 = vld [vmem:[#allocation2 + $0xd30] sm:$0xff]
    %v510 = vld [vmem:[#allocation2 + $0xd38] sm:$0xff]
    %v511 = vld [vmem:[#allocation2 + $0xd40] sm:$0xff]
    %v512 = vld [vmem:[#allocation2 + $0xd48] sm:$0xff]
    %v513 = vld [vmem:[#allocation2 + $0xd50] sm:$0xff]
    %v514 = vld [vmem:[#allocation2 + $0xd58] sm:$0xff]
    %v515 = vld [vmem:[#allocation2 + $0xd60] sm:$0xff]
    %v516 = vld [vmem:[#allocation2 + $0xd68] sm:$0xff]
    %v517 = vld [vmem:[#allocation2 + $0xd70] sm:$0xff]
    %v518 = vld [vmem:[#allocation2 + $0xd78] sm:$0xff]
    %v519 = vld [vmem:[#allocation2 + $0xd80] sm:$0xff]
    %v520 = vld [vmem:[#allocation2 + $0xd88] sm:$0xff]
    %v521 = vld [vmem:[#allocation2 + $0xd90] sm:$0xff]
    %v522 = vld [vmem:[#allocation2 + $0xd98] sm:$0xff]
    %v523 = vld [vmem:[#allocation2 + $0xda0] sm:$0xff]
    %v524 = vld [vmem:[#allocation2 + $0xda8] sm:$0xff]
    %v525 = vld [vmem:[#allocation2 + $0xdb0] sm:$0xff]
    %v526 = vld [vmem:[#allocation2 + $0xdb8] sm:$0xff]
    %v527 = vld [vmem:[#allocation2 + $0xdc0] sm:$0xff]
    %v528 = vld [vmem:[#allocation2 + $0xdc8] sm:$0xff]
    %v529 = vld [vmem:[#allocation2 + $0xdd0] sm:$0xff]
    %v530 = vld [vmem:[#allocation2 + $0xdd8] sm:$0xff]
    %v531 = vld [vmem:[#allocation2 + $0xde0] sm:$0xff]
    %v532 = vld [vmem:[#allocation2 + $0xde8] sm:$0xff]
    %v533 = vld [vmem:[#allocation2 + $0xdf0] sm:$0xff]
    %v534 = vld [vmem:[#allocation2 + $0xdf8] sm:$0xff]
    %v535 = vld [vmem:[#allocation5] sm:$0xff]
    %v537 = vperm.slane %v535, 0
    %v538 = vperm.slane %v535, 1
    %v539 = vperm.slane %v535, 2
    %v540 = vperm.slane %v535, 3
    %v541 = vperm.slane %v535, 4
    %v542 = vperm.slane %v535, 5
    %v543 = vperm.slane %v535, 6
    %v544 = vperm.slane %v535, 7
    %v557 = vunpack.c.l.b16 %v83
    %v558 = vunpack.c.h.b16 %v83
    %v559 = vunpack.c.l.b16 %v84
    %v560 = vunpack.c.h.b16 %v84
    %v561 = vunpack.c.l.b16 %v85
    %v562 = vunpack.c.h.b16 %v85
    %v563 = vunpack.c.l.b16 %v86
    %v564 = vpack.c.b16 %v557, %v557
    %v565 = vpack.c.b16 %v558, %v558
    %v566 = vpack.c.b16 %v559, %v559
    %v567 = vpack.c.b16 %v560, %v560
    %v568 = vpack.c.b16 %v561, %v561
    %v569 = vpack.c.b16 %v562, %v562
    %v570 = vpack.c.b16 %v563, %v563
    %v1026 = vunpack.c.l.b16 %v87
    %v1027 = vunpack.c.h.b16 %v87
    %v1028 = vunpack.c.l.b16 %v88
    %v1029 = vunpack.c.h.b16 %v88
    %v1030 = vunpack.c.l.b16 %v89
    %v1031 = vunpack.c.h.b16 %v89
    %v1032 = vunpack.c.l.b16 %v90
    %v1033 = vunpack.c.h.b16 %v90
    %v1034 = vunpack.c.l.b16 %v91
    %v1035 = vunpack.c.h.b16 %v91
    %v1036 = vunpack.c.l.b16 %v92
    %v1037 = vunpack.c.h.b16 %v92
    %v1038 = vunpack.c.l.b16 %v93
    %v1039 = vunpack.c.h.b16 %v93
    %v1040 = vunpack.c.l.b16 %v94
    %v1041 = vunpack.c.h.b16 %v94
    %v1042 = vunpack.c.l.b16 %v95
    %v1043 = vunpack.c.h.b16 %v95
    %v1044 = vunpack.c.l.b16 %v96
    %v1045 = vunpack.c.h.b16 %v96
    %v1046 = vunpack.c.l.b16 %v97
    %v1047 = vunpack.c.h.b16 %v97
    %v1048 = vunpack.c.l.b16 %v98
    %v1049 = vunpack.c.h.b16 %v98
    %v1050 = vunpack.c.l.b16 %v99
    %v1051 = vunpack.c.h.b16 %v99
    %v1052 = vunpack.c.l.b16 %v100
    %v1053 = vunpack.c.h.b16 %v100
    %v1054 = vunpack.c.l.b16 %v101
    %v1055 = vunpack.c.h.b16 %v101
    %v1056 = vunpack.c.l.b16 %v102
    %v1057 = vunpack.c.h.b16 %v102
    %v1058 = vunpack.c.l.b16 %v103
    %v1059 = vunpack.c.h.b16 %v103
    %v1060 = vunpack.c.l.b16 %v104
    %v1061 = vunpack.c.h.b16 %v104
    %v1062 = vunpack.c.l.b16 %v105
    %v1063 = vunpack.c.h.b16 %v105
    %v1064 = vunpack.c.l.b16 %v106
    %v1065 = vunpack.c.h.b16 %v106
    %v1066 = vunpack.c.l.b16 %v107
    %v1067 = vunpack.c.h.b16 %v107
    %v1068 = vunpack.c.l.b16 %v108
    %v1069 = vunpack.c.h.b16 %v108
    %v1070 = vunpack.c.l.b16 %v109
    %v1071 = vunpack.c.h.b16 %v109
    %v1072 = vunpack.c.l.b16 %v110
    %v1073 = vunpack.c.h.b16 %v110
    %v1074 = vunpack.c.l.b16 %v111
    %v1075 = vunpack.c.h.b16 %v111
    %v1076 = vunpack.c.l.b16 %v112
    %v1077 = vunpack.c.h.b16 %v112
    %v1078 = vunpack.c.l.b16 %v113
    %v1079 = vunpack.c.h.b16 %v113
    %v1080 = vunpack.c.l.b16 %v114
    %v1081 = vunpack.c.h.b16 %v114
    %v1082 = vunpack.c.l.b16 %v115
    %v1083 = vunpack.c.h.b16 %v115
    %v1084 = vunpack.c.l.b16 %v116
    %v1085 = vunpack.c.h.b16 %v116
    %v1086 = vunpack.c.l.b16 %v117
    %v1087 = vunpack.c.h.b16 %v117
    %v1088 = vunpack.c.l.b16 %v118
    %v1089 = vunpack.c.h.b16 %v118
    %v1090 = vunpack.c.l.b16 %v119
    %v1091 = vunpack.c.h.b16 %v119
    %v1092 = vunpack.c.l.b16 %v120
    %v1093 = vunpack.c.h.b16 %v120
    %v1094 = vunpack.c.l.b16 %v121
    %v1095 = vunpack.c.h.b16 %v121
    %v1096 = vunpack.c.l.b16 %v122
    %v1097 = vunpack.c.h.b16 %v122
    %v1098 = vunpack.c.l.b16 %v123
    %v1099 = vunpack.c.h.b16 %v123
    %v1100 = vunpack.c.l.b16 %v124
    %v1101 = vunpack.c.h.b16 %v124
    %v1102 = vunpack.c.l.b16 %v125
    %v1103 = vunpack.c.h.b16 %v125
    %v1104 = vunpack.c.l.b16 %v126
    %v1105 = vunpack.c.h.b16 %v126
    %v1106 = vunpack.c.l.b16 %v127
    %v1107 = vunpack.c.h.b16 %v127
    %v1108 = vunpack.c.l.b16 %v128
    %v1109 = vunpack.c.h.b16 %v128
    %v1110 = vunpack.c.l.b16 %v129
    %v1111 = vunpack.c.h.b16 %v129
    %v1112 = vunpack.c.l.b16 %v130
    %v1113 = vunpack.c.h.b16 %v130
    %v1114 = vunpack.c.l.b16 %v131
    %v1115 = vunpack.c.h.b16 %v131
    %v1116 = vunpack.c.l.b16 %v132
    %v1117 = vunpack.c.h.b16 %v132
    %v1118 = vunpack.c.l.b16 %v133
    %v1119 = vunpack.c.h.b16 %v133
    %v1120 = vunpack.c.l.b16 %v134
    %v1121 = vunpack.c.h.b16 %v134
    %v1122 = vunpack.c.l.b16 %v135
    %v1123 = vunpack.c.h.b16 %v135
    %v1124 = vunpack.c.l.b16 %v136
    %v1125 = vunpack.c.h.b16 %v136
    %v1126 = vunpack.c.l.b16 %v137
    %v1127 = vunpack.c.h.b16 %v137
    %v1128 = vunpack.c.l.b16 %v138
    %v1129 = vunpack.c.h.b16 %v138
    %v1130 = vunpack.c.l.b16 %v139
    %v1131 = vunpack.c.h.b16 %v139
    %v1132 = vunpack.c.l.b16 %v140
    %v1133 = vunpack.c.h.b16 %v140
    %v1134 = vunpack.c.l.b16 %v141
    %v1135 = vunpack.c.h.b16 %v141
    %v1136 = vunpack.c.l.b16 %v142
    %v1137 = vunpack.c.h.b16 %v142
    %v1138 = vunpack.c.l.b16 %v143
    %v1139 = vunpack.c.h.b16 %v143
    %v1140 = vunpack.c.l.b16 %v144
    %v1141 = vunpack.c.h.b16 %v144
    %v1142 = vunpack.c.l.b16 %v145
    %v1143 = vunpack.c.h.b16 %v145
    %v1144 = vunpack.c.l.b16 %v146
    %v1145 = vunpack.c.h.b16 %v146
    %v1146 = vunpack.c.l.b16 %v147
    %v1147 = vunpack.c.h.b16 %v147
    %v1148 = vunpack.c.l.b16 %v148
    %v1149 = vunpack.c.h.b16 %v148
    %v1150 = vunpack.c.l.b16 %v149
    %v1151 = vunpack.c.h.b16 %v149
    %v1152 = vunpack.c.l.b16 %v150
    %v1153 = vunpack.c.h.b16 %v150
    %v1154 = vunpack.c.l.b16 %v151
    %v1155 = vunpack.c.h.b16 %v151
    %v1156 = vunpack.c.l.b16 %v152
    %v1157 = vunpack.c.h.b16 %v152
    %v1158 = vunpack.c.l.b16 %v153
    %v1159 = vunpack.c.h.b16 %v153
    %v1160 = vunpack.c.l.b16 %v154
    %v1161 = vunpack.c.h.b16 %v154
    %v1162 = vunpack.c.l.b16 %v155
    %v1163 = vunpack.c.h.b16 %v155
    %v1164 = vunpack.c.l.b16 %v156
    %v1165 = vunpack.c.h.b16 %v156
    %v1166 = vunpack.c.l.b16 %v157
    %v1167 = vunpack.c.h.b16 %v157
    %v1168 = vunpack.c.l.b16 %v158
    %v1169 = vunpack.c.h.b16 %v158
    %v1170 = vunpack.c.l.b16 %v159
    %v1171 = vunpack.c.h.b16 %v159
    %v1172 = vunpack.c.l.b16 %v160
    %v1173 = vunpack.c.h.b16 %v160
    %v1174 = vunpack.c.l.b16 %v161
    %v1175 = vunpack.c.h.b16 %v161
    %v1176 = vunpack.c.l.b16 %v162
    %v1177 = vunpack.c.h.b16 %v162
    %v1178 = vunpack.c.l.b16 %v163
    %v1179 = vunpack.c.h.b16 %v163
    %v1180 = vunpack.c.l.b16 %v164
    %v1181 = vunpack.c.h.b16 %v164
    %v1182 = vunpack.c.l.b16 %v165
    %v1183 = vunpack.c.h.b16 %v165
    %v1184 = vunpack.c.l.b16 %v166
    %v1185 = vunpack.c.h.b16 %v166
    %v1186 = vunpack.c.l.b16 %v167
    %v1187 = vunpack.c.h.b16 %v167
    %v1188 = vunpack.c.l.b16 %v168
    %v1189 = vunpack.c.h.b16 %v168
    %v1190 = vunpack.c.l.b16 %v169
    %v1191 = vunpack.c.h.b16 %v169
    %v1192 = vunpack.c.l.b16 %v170
    %v1193 = vunpack.c.h.b16 %v170
    %v1194 = vunpack.c.l.b16 %v171
    %v1195 = vunpack.c.h.b16 %v171
    %v1196 = vunpack.c.l.b16 %v172
    %v1197 = vunpack.c.h.b16 %v172
    %v1198 = vunpack.c.l.b16 %v173
    %v1199 = vunpack.c.h.b16 %v173
    %v1200 = vunpack.c.l.b16 %v174
    %v1201 = vunpack.c.h.b16 %v174
    %v1202 = vunpack.c.l.b16 %v175
    %v1203 = vunpack.c.h.b16 %v175
    %v1204 = vunpack.c.l.b16 %v176
    %v1205 = vunpack.c.h.b16 %v176
    %v1206 = vunpack.c.l.b16 %v177
    %v1207 = vunpack.c.h.b16 %v177
    %v1208 = vunpack.c.l.b16 %v178
    %v1209 = vunpack.c.h.b16 %v178
    %v1210 = vunpack.c.l.b16 %v179
    %v1211 = vunpack.c.h.b16 %v179
    %v1212 = vunpack.c.l.b16 %v180
    %v1213 = vunpack.c.h.b16 %v180
    %v1214 = vunpack.c.l.b16 %v181
    %v1215 = vunpack.c.h.b16 %v181
    %v1216 = vunpack.c.l.b16 %v182
    %v1217 = vunpack.c.h.b16 %v182
    %v1218 = vunpack.c.l.b16 %v183
    %v1219 = vunpack.c.h.b16 %v183
    %v1220 = vunpack.c.l.b16 %v184
    %v1221 = vunpack.c.h.b16 %v184
    %v1222 = vunpack.c.l.b16 %v185
    %v1223 = vunpack.c.h.b16 %v185
    %v1224 = vunpack.c.l.b16 %v186
    %v1225 = vunpack.c.h.b16 %v186
    %v1226 = vunpack.c.l.b16 %v187
    %v1227 = vunpack.c.h.b16 %v187
    %v1228 = vunpack.c.l.b16 %v188
    %v1229 = vunpack.c.h.b16 %v188
    %v1230 = vunpack.c.l.b16 %v189
    %v1231 = vunpack.c.h.b16 %v189
    %v1232 = vunpack.c.l.b16 %v190
    %v1233 = vunpack.c.h.b16 %v190
    %v1234 = vunpack.c.l.b16 %v191
    %v1235 = vunpack.c.h.b16 %v191
    %v1236 = vunpack.c.l.b16 %v192
    %v1237 = vunpack.c.h.b16 %v192
    %v1238 = vunpack.c.l.b16 %v193
    %v1239 = vunpack.c.h.b16 %v193
    %v1240 = vunpack.c.l.b16 %v194
    %v1241 = vunpack.c.h.b16 %v194
    %v1242 = vunpack.c.l.b16 %v195
    %v1243 = vunpack.c.h.b16 %v195
    %v1244 = vunpack.c.l.b16 %v196
    %v1245 = vunpack.c.h.b16 %v196
    %v1246 = vunpack.c.l.b16 %v197
    %v1247 = vunpack.c.h.b16 %v197
    %v1248 = vunpack.c.l.b16 %v198
    %v1249 = vunpack.c.h.b16 %v198
    %v1250 = vunpack.c.l.b16 %v199
    %v1251 = vunpack.c.h.b16 %v199
    %v1252 = vunpack.c.l.b16 %v200
    %v1253 = vunpack.c.h.b16 %v200
    %v1254 = vunpack.c.l.b16 %v201
    %v1255 = vunpack.c.h.b16 %v201
    %v1256 = vunpack.c.l.b16 %v202
    %v1257 = vunpack.c.h.b16 %v202
    %v1258 = vunpack.c.l.b16 %v203
    %v1259 = vunpack.c.h.b16 %v203
    %v1260 = vunpack.c.l.b16 %v204
    %v1261 = vunpack.c.h.b16 %v204
    %v1262 = vunpack.c.l.b16 %v205
    %v1263 = vunpack.c.h.b16 %v205
    %v1264 = vunpack.c.l.b16 %v206
    %v1265 = vunpack.c.h.b16 %v206
    %v1266 = vunpack.c.l.b16 %v207
    %v1267 = vunpack.c.h.b16 %v207
    %v1268 = vunpack.c.l.b16 %v208
    %v1269 = vunpack.c.h.b16 %v208
    %v1270 = vunpack.c.l.b16 %v209
    %v1271 = vunpack.c.h.b16 %v209
    %v1272 = vunpack.c.l.b16 %v210
    %v1273 = vunpack.c.h.b16 %v210
    %v1274 = vunpack.c.l.b16 %v211
    %v1275 = vunpack.c.h.b16 %v211
    %v1276 = vunpack.c.l.b16 %v212
    %v1277 = vunpack.c.h.b16 %v212
    %v1278 = vunpack.c.l.b16 %v213
    %v1279 = vunpack.c.h.b16 %v213
    %v1280 = vunpack.c.l.b16 %v214
    %v1281 = vunpack.c.h.b16 %v214
    %v1282 = vunpack.c.l.b16 %v215
    %v1283 = vunpack.c.h.b16 %v215
    %v1284 = vunpack.c.l.b16 %v216
    %v1285 = vunpack.c.h.b16 %v216
    %v1286 = vunpack.c.l.b16 %v217
    %v1287 = vunpack.c.h.b16 %v217
    %v1288 = vunpack.c.l.b16 %v218
    %v1289 = vunpack.c.h.b16 %v218
    %v1290 = vunpack.c.l.b16 %v219
    %v1291 = vunpack.c.h.b16 %v219
    %v1292 = vunpack.c.l.b16 %v220
    %v1293 = vunpack.c.h.b16 %v220
    %v1294 = vunpack.c.l.b16 %v221
    %v1295 = vunpack.c.h.b16 %v221
    %v1296 = vunpack.c.l.b16 %v222
    %v1297 = vunpack.c.h.b16 %v222
    %v1298 = vunpack.c.l.b16 %v223
    %v1299 = vunpack.c.h.b16 %v223
    %v1300 = vunpack.c.l.b16 %v224
    %v1301 = vunpack.c.h.b16 %v224
    %v1302 = vunpack.c.l.b16 %v225
    %v1303 = vunpack.c.h.b16 %v225
    %v1304 = vunpack.c.l.b16 %v226
    %v1305 = vunpack.c.h.b16 %v226
    %v1306 = vunpack.c.l.b16 %v227
    %v1307 = vunpack.c.h.b16 %v227
    %v1308 = vunpack.c.l.b16 %v228
    %v1309 = vunpack.c.h.b16 %v228
    %v1310 = vunpack.c.l.b16 %v229
    %v1311 = vunpack.c.h.b16 %v229
    %v1312 = vunpack.c.l.b16 %v230
    %v1313 = vunpack.c.h.b16 %v230
    %v1314 = vunpack.c.l.b16 %v231
    %v1315 = vunpack.c.h.b16 %v231
    %v1316 = vunpack.c.l.b16 %v232
    %v1317 = vunpack.c.h.b16 %v232
    %v1318 = vunpack.c.l.b16 %v233
    %v1319 = vunpack.c.h.b16 %v233
    %v1320 = vunpack.c.l.b16 %v234
    %v1321 = vunpack.c.h.b16 %v234
    %v1322 = vunpack.c.l.b16 %v235
    %v1323 = vunpack.c.h.b16 %v235
    %v1324 = vunpack.c.l.b16 %v236
    %v1325 = vunpack.c.h.b16 %v236
    %v1326 = vunpack.c.l.b16 %v237
    %v1327 = vunpack.c.h.b16 %v237
    %v1328 = vunpack.c.l.b16 %v238
    %v1329 = vunpack.c.h.b16 %v238
    %v1330 = vunpack.c.l.b16 %v239
    %v1331 = vunpack.c.h.b16 %v239
    %v1332 = vunpack.c.l.b16 %v240
    %v1333 = vunpack.c.h.b16 %v240
    %v1334 = vunpack.c.l.b16 %v241
    %v1335 = vunpack.c.h.b16 %v241
    %v1336 = vunpack.c.l.b16 %v242
    %v1337 = vunpack.c.h.b16 %v242
    %v1338 = vunpack.c.l.b16 %v243
    %v1339 = vunpack.c.h.b16 %v243
    %v1340 = vunpack.c.l.b16 %v244
    %v1341 = vunpack.c.h.b16 %v244
    %v1342 = vunpack.c.l.b16 %v245
    %v1343 = vunpack.c.h.b16 %v245
    %v1344 = vunpack.c.l.b16 %v246
    %v1345 = vunpack.c.h.b16 %v246
    %v1346 = vunpack.c.l.b16 %v247
    %v1347 = vunpack.c.h.b16 %v247
    %v1348 = vunpack.c.l.b16 %v248
    %v1349 = vunpack.c.h.b16 %v248
    %v1350 = vunpack.c.l.b16 %v249
    %v1351 = vunpack.c.h.b16 %v249
    %v1352 = vunpack.c.l.b16 %v250
    %v1353 = vunpack.c.h.b16 %v250
    %v1354 = vunpack.c.l.b16 %v251
    %v1355 = vunpack.c.h.b16 %v251
    %v1356 = vunpack.c.l.b16 %v252
    %v1357 = vunpack.c.h.b16 %v252
    %v1358 = vunpack.c.l.b16 %v253
    %v1359 = vunpack.c.h.b16 %v253
    %v1360 = vunpack.c.l.b16 %v254
    %v1361 = vunpack.c.h.b16 %v254
    %v1362 = vunpack.c.l.b16 %v255
    %v1363 = vunpack.c.h.b16 %v255
    %v1364 = vunpack.c.l.b16 %v256
    %v1365 = vunpack.c.h.b16 %v256
    %v1366 = vunpack.c.l.b16 %v257
    %v1367 = vunpack.c.h.b16 %v257
    %v1368 = vunpack.c.l.b16 %v258
    %v1369 = vunpack.c.h.b16 %v258
    %v1370 = vunpack.c.l.b16 %v259
    %v1371 = vunpack.c.h.b16 %v259
    %v1372 = vunpack.c.l.b16 %v260
    %v1373 = vunpack.c.h.b16 %v260
    %v1374 = vunpack.c.l.b16 %v261
    %v1375 = vunpack.c.h.b16 %v261
    %v1376 = vunpack.c.l.b16 %v262
    %v1377 = vunpack.c.h.b16 %v262
    %v1378 = vunpack.c.l.b16 %v263
    %v1379 = vunpack.c.h.b16 %v263
    %v1380 = vunpack.c.l.b16 %v264
    %v1381 = vunpack.c.h.b16 %v264
    %v1382 = vunpack.c.l.b16 %v265
    %v1383 = vunpack.c.h.b16 %v265
    %v1384 = vunpack.c.l.b16 %v266
    %v1385 = vunpack.c.h.b16 %v266
    %v1386 = vunpack.c.l.b16 %v267
    %v1387 = vunpack.c.h.b16 %v267
    %v1388 = vunpack.c.l.b16 %v268
    %v1389 = vunpack.c.h.b16 %v268
    %v1390 = vunpack.c.l.b16 %v269
    %v1391 = vunpack.c.h.b16 %v269
    %v1392 = vunpack.c.l.b16 %v270
    %v1393 = vunpack.c.h.b16 %v270
    %v1394 = vunpack.c.l.b16 %v271
    %v1395 = vunpack.c.h.b16 %v271
    %v1396 = vunpack.c.l.b16 %v272
    %v1397 = vunpack.c.h.b16 %v272
    %v1398 = vunpack.c.l.b16 %v273
    %v1399 = vunpack.c.h.b16 %v273
    %v1400 = vunpack.c.l.b16 %v274
    %v1401 = vunpack.c.h.b16 %v274
    %v1402 = vunpack.c.l.b16 %v275
    %v1403 = vunpack.c.h.b16 %v275
    %v1404 = vunpack.c.l.b16 %v276
    %v1405 = vunpack.c.h.b16 %v276
    %v1406 = vunpack.c.l.b16 %v277
    %v1407 = vunpack.c.h.b16 %v277
    %v1408 = vunpack.c.l.b16 %v278
    %v1409 = vunpack.c.h.b16 %v278
    %v1410 = vunpack.c.l.b16 %v279
    %v1411 = vunpack.c.h.b16 %v279
    %v1412 = vunpack.c.l.b16 %v280
    %v1413 = vunpack.c.h.b16 %v280
    %v1414 = vunpack.c.l.b16 %v281
    %v1415 = vunpack.c.h.b16 %v281
    %v1416 = vunpack.c.l.b16 %v282
    %v1417 = vunpack.c.h.b16 %v282
    %v1418 = vunpack.c.l.b16 %v283
    %v1419 = vunpack.c.h.b16 %v283
    %v1420 = vunpack.c.l.b16 %v284
    %v1421 = vunpack.c.h.b16 %v284
    %v1422 = vunpack.c.l.b16 %v285
    %v1423 = vunpack.c.h.b16 %v285
    %v1424 = vunpack.c.l.b16 %v286
    %v1425 = vunpack.c.h.b16 %v286
    %v1426 = vunpack.c.l.b16 %v287
    %v1427 = vunpack.c.h.b16 %v287
    %v1428 = vunpack.c.l.b16 %v288
    %v1429 = vunpack.c.h.b16 %v288
    %v1430 = vunpack.c.l.b16 %v289
    %v1431 = vunpack.c.h.b16 %v289
    %v1432 = vunpack.c.l.b16 %v290
    %v1433 = vunpack.c.h.b16 %v290
    %v1434 = vunpack.c.l.b16 %v291
    %v1435 = vunpack.c.h.b16 %v291
    %v1436 = vunpack.c.l.b16 %v292
    %v1437 = vunpack.c.h.b16 %v292
    %v1438 = vunpack.c.l.b16 %v293
    %v1439 = vunpack.c.h.b16 %v293
    %v1440 = vunpack.c.l.b16 %v294
    %v1441 = vunpack.c.h.b16 %v294
    %v1442 = vunpack.c.l.b16 %v295
    %v1443 = vunpack.c.h.b16 %v295
    %v1444 = vunpack.c.l.b16 %v296
    %v1445 = vunpack.c.h.b16 %v296
    %v1446 = vunpack.c.l.b16 %v297
    %v1447 = vunpack.c.h.b16 %v297
    %v1448 = vunpack.c.l.b16 %v298
    %v1449 = vunpack.c.h.b16 %v298
    %v1450 = vunpack.c.l.b16 %v299
    %v1451 = vunpack.c.h.b16 %v299
    %v1452 = vunpack.c.l.b16 %v300
    %v1453 = vunpack.c.h.b16 %v300
    %v1454 = vunpack.c.l.b16 %v301
    %v1455 = vunpack.c.h.b16 %v301
    %v1456 = vunpack.c.l.b16 %v302
    %v1457 = vunpack.c.h.b16 %v302
    %v1458 = vunpack.c.l.b16 %v303
    %v1459 = vunpack.c.h.b16 %v303
    %v1460 = vunpack.c.l.b16 %v304
    %v1461 = vunpack.c.h.b16 %v304
    %v1462 = vunpack.c.l.b16 %v305
    %v1463 = vunpack.c.h.b16 %v305
    %v1464 = vunpack.c.l.b16 %v306
    %v1465 = vunpack.c.h.b16 %v306
    %v1466 = vunpack.c.l.b16 %v307
    %v1467 = vunpack.c.h.b16 %v307
    %v1468 = vunpack.c.l.b16 %v308
    %v1469 = vunpack.c.h.b16 %v308
    %v1470 = vunpack.c.l.b16 %v309
    %v1471 = vunpack.c.h.b16 %v309
    %v1472 = vunpack.c.l.b16 %v310
    %v1473 = vunpack.c.h.b16 %v310
    %v1474 = vunpack.c.l.b16 %v311
    %v1475 = vunpack.c.h.b16 %v311
    %v1476 = vunpack.c.l.b16 %v312
    %v1477 = vunpack.c.h.b16 %v312
    %v1478 = vunpack.c.l.b16 %v313
    %v1479 = vunpack.c.h.b16 %v313
    %v1480 = vunpack.c.l.b16 %v314
    %v1481 = vunpack.c.h.b16 %v314
    %v1482 = vunpack.c.l.b16 %v315
    %v1483 = vunpack.c.h.b16 %v315
    %v1484 = vunpack.c.l.b16 %v316
    %v1485 = vunpack.c.h.b16 %v316
    %v1486 = vunpack.c.l.b16 %v317
    %v1487 = vunpack.c.h.b16 %v317
    %v1488 = vunpack.c.l.b16 %v318
    %v1489 = vunpack.c.h.b16 %v318
    %v1490 = vunpack.c.l.b16 %v319
    %v1491 = vunpack.c.h.b16 %v319
    %v1492 = vunpack.c.l.b16 %v320
    %v1493 = vunpack.c.h.b16 %v320
    %v1494 = vunpack.c.l.b16 %v321
    %v1495 = vunpack.c.h.b16 %v321
    %v1496 = vunpack.c.l.b16 %v322
    %v1497 = vunpack.c.h.b16 %v322
    %v1498 = vunpack.c.l.b16 %v323
    %v1499 = vunpack.c.h.b16 %v323
    %v1500 = vunpack.c.l.b16 %v324
    %v1501 = vunpack.c.h.b16 %v324
    %v1502 = vunpack.c.l.b16 %v325
    %v1503 = vunpack.c.h.b16 %v325
    %v1504 = vunpack.c.l.b16 %v326
    %v1505 = vunpack.c.h.b16 %v326
    %v1506 = vunpack.c.l.b16 %v327
    %v1507 = vunpack.c.h.b16 %v327
    %v1508 = vunpack.c.l.b16 %v328
    %v1509 = vunpack.c.h.b16 %v328
    %v1510 = vunpack.c.l.b16 %v329
    %v1511 = vunpack.c.h.b16 %v329
    %v1512 = vunpack.c.l.b16 %v330
    %v1513 = vunpack.c.h.b16 %v330
    %v1514 = vunpack.c.l.b16 %v331
    %v1515 = vunpack.c.h.b16 %v331
    %v1516 = vunpack.c.l.b16 %v332
    %v1517 = vunpack.c.h.b16 %v332
    %v1518 = vunpack.c.l.b16 %v333
    %v1519 = vunpack.c.h.b16 %v333
    %v1520 = vunpack.c.l.b16 %v334
    %v1521 = vunpack.c.h.b16 %v334
    %v1522 = vunpack.c.l.b16 %v335
    %v1523 = vunpack.c.h.b16 %v335
    %v1524 = vunpack.c.l.b16 %v336
    %v1525 = vunpack.c.h.b16 %v336
    %v1526 = vunpack.c.l.b16 %v337
    %v1527 = vunpack.c.h.b16 %v337
    %v1528 = vunpack.c.l.b16 %v338
    %v1529 = vunpack.c.h.b16 %v338
    %v1530 = vunpack.c.l.b16 %v339
    %v1531 = vunpack.c.h.b16 %v339
    %v1532 = vunpack.c.l.b16 %v340
    %v1533 = vunpack.c.h.b16 %v340
    %v1534 = vunpack.c.l.b16 %v341
    %v1535 = vunpack.c.h.b16 %v341
    %v1536 = vunpack.c.l.b16 %v342
    %v1537 = vunpack.c.h.b16 %v342
    %v1538 = vunpack.c.l.b16 %v343
    %v1539 = vunpack.c.h.b16 %v343
    %v1540 = vunpack.c.l.b16 %v344
    %v1541 = vunpack.c.h.b16 %v344
    %v1542 = vunpack.c.l.b16 %v345
    %v1543 = vunpack.c.h.b16 %v345
    %v1544 = vunpack.c.l.b16 %v346
    %v1545 = vunpack.c.h.b16 %v346
    %v1546 = vunpack.c.l.b16 %v347
    %v1547 = vunpack.c.h.b16 %v347
    %v1548 = vunpack.c.l.b16 %v348
    %v1549 = vunpack.c.h.b16 %v348
    %v1550 = vunpack.c.l.b16 %v349
    %v1551 = vunpack.c.h.b16 %v349
    %v1552 = vunpack.c.l.b16 %v350
    %v1553 = vunpack.c.h.b16 %v350
    %v1554 = vunpack.c.l.b16 %v351
    %v1555 = vunpack.c.h.b16 %v351
    %v1556 = vunpack.c.l.b16 %v352
    %v1557 = vunpack.c.h.b16 %v352
    %v1558 = vunpack.c.l.b16 %v353
    %v1559 = vunpack.c.h.b16 %v353
    %v1560 = vunpack.c.l.b16 %v354
    %v1561 = vunpack.c.h.b16 %v354
    %v1562 = vunpack.c.l.b16 %v355
    %v1563 = vunpack.c.h.b16 %v355
    %v1564 = vunpack.c.l.b16 %v356
    %v1565 = vunpack.c.h.b16 %v356
    %v1566 = vunpack.c.l.b16 %v357
    %v1567 = vunpack.c.h.b16 %v357
    %v1568 = vunpack.c.l.b16 %v358
    %v1569 = vunpack.c.h.b16 %v358
    %v1570 = vunpack.c.l.b16 %v359
    %v1571 = vunpack.c.h.b16 %v359
    %v1572 = vunpack.c.l.b16 %v360
    %v1573 = vunpack.c.h.b16 %v360
    %v1574 = vunpack.c.l.b16 %v361
    %v1575 = vunpack.c.h.b16 %v361
    %v1576 = vunpack.c.l.b16 %v362
    %v1577 = vunpack.c.h.b16 %v362
    %v1578 = vunpack.c.l.b16 %v363
    %v1579 = vunpack.c.h.b16 %v363
    %v1580 = vunpack.c.l.b16 %v364
    %v1581 = vunpack.c.h.b16 %v364
    %v1582 = vunpack.c.l.b16 %v365
    %v1583 = vunpack.c.h.b16 %v365
    %v1584 = vunpack.c.l.b16 %v366
    %v1585 = vunpack.c.h.b16 %v366
    %v1586 = vunpack.c.l.b16 %v367
    %v1587 = vunpack.c.h.b16 %v367
    %v1588 = vunpack.c.l.b16 %v368
    %v1589 = vunpack.c.h.b16 %v368
    %v1590 = vunpack.c.l.b16 %v369
    %v1591 = vunpack.c.h.b16 %v369
    %v1592 = vunpack.c.l.b16 %v370
    %v1593 = vunpack.c.h.b16 %v370
    %v1594 = vunpack.c.l.b16 %v371
    %v1595 = vunpack.c.h.b16 %v371
    %v1596 = vunpack.c.l.b16 %v372
    %v1597 = vunpack.c.h.b16 %v372
    %v1598 = vunpack.c.l.b16 %v373
    %v1599 = vunpack.c.h.b16 %v373
    %v1600 = vunpack.c.l.b16 %v374
    %v1601 = vunpack.c.h.b16 %v374
    %v1602 = vunpack.c.l.b16 %v375
    %v1603 = vunpack.c.h.b16 %v375
    %v1604 = vunpack.c.l.b16 %v376
    %v1605 = vunpack.c.h.b16 %v376
    %v1606 = vunpack.c.l.b16 %v377
    %v1607 = vunpack.c.h.b16 %v377
    %v1608 = vunpack.c.l.b16 %v378
    %v1609 = vunpack.c.h.b16 %v378
    %v1610 = vunpack.c.l.b16 %v379
    %v1611 = vunpack.c.h.b16 %v379
    %v1612 = vunpack.c.l.b16 %v380
    %v1613 = vunpack.c.h.b16 %v380
    %v1614 = vunpack.c.l.b16 %v381
    %v1615 = vunpack.c.h.b16 %v381
    %v1616 = vunpack.c.l.b16 %v382
    %v1617 = vunpack.c.h.b16 %v382
    %v1618 = vunpack.c.l.b16 %v383
    %v1619 = vunpack.c.h.b16 %v383
    %v1620 = vunpack.c.l.b16 %v384
    %v1621 = vunpack.c.h.b16 %v384
    %v1622 = vunpack.c.l.b16 %v385
    %v1623 = vunpack.c.h.b16 %v385
    %v1624 = vunpack.c.l.b16 %v386
    %v1625 = vunpack.c.h.b16 %v386
    %v1626 = vunpack.c.l.b16 %v387
    %v1627 = vunpack.c.h.b16 %v387
    %v1628 = vunpack.c.l.b16 %v388
    %v1629 = vunpack.c.h.b16 %v388
    %v1630 = vunpack.c.l.b16 %v389
    %v1631 = vunpack.c.h.b16 %v389
    %v1632 = vunpack.c.l.b16 %v390
    %v1633 = vunpack.c.h.b16 %v390
    %v1634 = vunpack.c.l.b16 %v391
    %v1635 = vunpack.c.h.b16 %v391
    %v1636 = vunpack.c.l.b16 %v392
    %v1637 = vunpack.c.h.b16 %v392
    %v1638 = vunpack.c.l.b16 %v393
    %v1639 = vunpack.c.h.b16 %v393
    %v1640 = vunpack.c.l.b16 %v394
    %v1641 = vunpack.c.h.b16 %v394
    %v1642 = vunpack.c.l.b16 %v395
    %v1643 = vunpack.c.h.b16 %v395
    %v1644 = vunpack.c.l.b16 %v396
    %v1645 = vunpack.c.h.b16 %v396
    %v1646 = vunpack.c.l.b16 %v397
    %v1647 = vunpack.c.h.b16 %v397
    %v1648 = vunpack.c.l.b16 %v398
    %v1649 = vunpack.c.h.b16 %v398
    %v1650 = vunpack.c.l.b16 %v399
    %v1651 = vunpack.c.h.b16 %v399
    %v1652 = vunpack.c.l.b16 %v400
    %v1653 = vunpack.c.h.b16 %v400
    %v1654 = vunpack.c.l.b16 %v401
    %v1655 = vunpack.c.h.b16 %v401
    %v1656 = vunpack.c.l.b16 %v402
    %v1657 = vunpack.c.h.b16 %v402
    %v1658 = vunpack.c.l.b16 %v403
    %v1659 = vunpack.c.h.b16 %v403
    %v1660 = vunpack.c.l.b16 %v404
    %v1661 = vunpack.c.h.b16 %v404
    %v1662 = vunpack.c.l.b16 %v405
    %v1663 = vunpack.c.h.b16 %v405
    %v1664 = vunpack.c.l.b16 %v406
    %v1665 = vunpack.c.h.b16 %v406
    %v1666 = vunpack.c.l.b16 %v407
    %v1667 = vunpack.c.h.b16 %v407
    %v1668 = vunpack.c.l.b16 %v408
    %v1669 = vunpack.c.h.b16 %v408
    %v1670 = vunpack.c.l.b16 %v409
    %v1671 = vunpack.c.h.b16 %v409
    %v1672 = vunpack.c.l.b16 %v410
    %v1673 = vunpack.c.h.b16 %v410
    %v1674 = vunpack.c.l.b16 %v411
    %v1675 = vunpack.c.h.b16 %v411
    %v1676 = vunpack.c.l.b16 %v412
    %v1677 = vunpack.c.h.b16 %v412
    %v1678 = vunpack.c.l.b16 %v413
    %v1679 = vunpack.c.h.b16 %v413
    %v1680 = vunpack.c.l.b16 %v414
    %v1681 = vunpack.c.h.b16 %v414
    %v1682 = vunpack.c.l.b16 %v415
    %v1683 = vunpack.c.h.b16 %v415
    %v1684 = vunpack.c.l.b16 %v416
    %v1685 = vunpack.c.h.b16 %v416
    %v1686 = vunpack.c.l.b16 %v417
    %v1687 = vunpack.c.h.b16 %v417
    %v1688 = vunpack.c.l.b16 %v418
    %v1689 = vunpack.c.h.b16 %v418
    %v1690 = vunpack.c.l.b16 %v419
    %v1691 = vunpack.c.h.b16 %v419
    %v1692 = vunpack.c.l.b16 %v420
    %v1693 = vunpack.c.h.b16 %v420
    %v1694 = vunpack.c.l.b16 %v421
    %v1695 = vunpack.c.h.b16 %v421
    %v1696 = vunpack.c.l.b16 %v422
    %v1697 = vunpack.c.h.b16 %v422
    %v1698 = vunpack.c.l.b16 %v423
    %v1699 = vunpack.c.h.b16 %v423
    %v1700 = vunpack.c.l.b16 %v424
    %v1701 = vunpack.c.h.b16 %v424
    %v1702 = vunpack.c.l.b16 %v425
    %v1703 = vunpack.c.h.b16 %v425
    %v1704 = vunpack.c.l.b16 %v426
    %v1705 = vunpack.c.h.b16 %v426
    %v1706 = vunpack.c.l.b16 %v427
    %v1707 = vunpack.c.h.b16 %v427
    %v1708 = vunpack.c.l.b16 %v428
    %v1709 = vunpack.c.h.b16 %v428
    %v1710 = vunpack.c.l.b16 %v429
    %v1711 = vunpack.c.h.b16 %v429
    %v1712 = vunpack.c.l.b16 %v430
    %v1713 = vunpack.c.h.b16 %v430
    %v1714 = vunpack.c.l.b16 %v431
    %v1715 = vunpack.c.h.b16 %v431
    %v1716 = vunpack.c.l.b16 %v432
    %v1717 = vunpack.c.h.b16 %v432
    %v1718 = vunpack.c.l.b16 %v433
    %v1719 = vunpack.c.h.b16 %v433
    %v1720 = vunpack.c.l.b16 %v434
    %v1721 = vunpack.c.h.b16 %v434
    %v1722 = vunpack.c.l.b16 %v435
    %v1723 = vunpack.c.h.b16 %v435
    %v1724 = vunpack.c.l.b16 %v436
    %v1725 = vunpack.c.h.b16 %v436
    %v1726 = vunpack.c.l.b16 %v437
    %v1727 = vunpack.c.h.b16 %v437
    %v1728 = vunpack.c.l.b16 %v438
    %v1729 = vunpack.c.h.b16 %v438
    %v1730 = vunpack.c.l.b16 %v439
    %v1731 = vunpack.c.h.b16 %v439
    %v1732 = vunpack.c.l.b16 %v440
    %v1733 = vunpack.c.h.b16 %v440
    %v1734 = vunpack.c.l.b16 %v441
    %v1735 = vunpack.c.h.b16 %v441
    %v1736 = vunpack.c.l.b16 %v442
    %v1737 = vunpack.c.h.b16 %v442
    %v1738 = vunpack.c.l.b16 %v443
    %v1739 = vunpack.c.h.b16 %v443
    %v1740 = vunpack.c.l.b16 %v444
    %v1741 = vunpack.c.h.b16 %v444
    %v1742 = vunpack.c.l.b16 %v445
    %v1743 = vunpack.c.h.b16 %v445
    %v1744 = vunpack.c.l.b16 %v446
    %v1745 = vunpack.c.h.b16 %v446
    %v1746 = vunpack.c.l.b16 %v447
    %v1747 = vunpack.c.h.b16 %v447
    %v1748 = vunpack.c.l.b16 %v448
    %v1749 = vunpack.c.h.b16 %v448
    %v1750 = vunpack.c.l.b16 %v449
    %v1751 = vunpack.c.h.b16 %v449
    %v1752 = vunpack.c.l.b16 %v450
    %v1753 = vunpack.c.h.b16 %v450
    %v1754 = vunpack.c.l.b16 %v451
    %v1755 = vunpack.c.h.b16 %v451
    %v1756 = vunpack.c.l.b16 %v452
    %v1757 = vunpack.c.h.b16 %v452
    %v1758 = vunpack.c.l.b16 %v453
    %v1759 = vunpack.c.h.b16 %v453
    %v1760 = vunpack.c.l.b16 %v454
    %v1761 = vunpack.c.h.b16 %v454
    %v1762 = vunpack.c.l.b16 %v455
    %v1763 = vunpack.c.h.b16 %v455
    %v1764 = vunpack.c.l.b16 %v456
    %v1765 = vunpack.c.h.b16 %v456
    %v1766 = vunpack.c.l.b16 %v457
    %v1767 = vunpack.c.h.b16 %v457
    %v1768 = vunpack.c.l.b16 %v458
    %v1769 = vunpack.c.h.b16 %v458
    %v1770 = vunpack.c.l.b16 %v459
    %v1771 = vunpack.c.h.b16 %v459
    %v1772 = vunpack.c.l.b16 %v460
    %v1773 = vunpack.c.h.b16 %v460
    %v1774 = vunpack.c.l.b16 %v461
    %v1775 = vunpack.c.h.b16 %v461
    %v1776 = vunpack.c.l.b16 %v462
    %v1777 = vunpack.c.h.b16 %v462
    %v1778 = vunpack.c.l.b16 %v463
    %v1779 = vunpack.c.h.b16 %v463
    %v1780 = vunpack.c.l.b16 %v464
    %v1781 = vunpack.c.h.b16 %v464
    %v1782 = vunpack.c.l.b16 %v465
    %v1783 = vunpack.c.h.b16 %v465
    %v1784 = vunpack.c.l.b16 %v466
    %v1785 = vunpack.c.h.b16 %v466
    %v1786 = vunpack.c.l.b16 %v467
    %v1787 = vunpack.c.h.b16 %v467
    %v1788 = vunpack.c.l.b16 %v468
    %v1789 = vunpack.c.h.b16 %v468
    %v1790 = vunpack.c.l.b16 %v469
    %v1791 = vunpack.c.h.b16 %v469
    %v1792 = vunpack.c.l.b16 %v470
    %v1793 = vunpack.c.h.b16 %v470
    %v1794 = vunpack.c.l.b16 %v471
    %v1795 = vunpack.c.h.b16 %v471
    %v1796 = vunpack.c.l.b16 %v472
    %v1797 = vunpack.c.h.b16 %v472
    %v1798 = vunpack.c.l.b16 %v473
    %v1799 = vunpack.c.h.b16 %v473
    %v1800 = vunpack.c.l.b16 %v474
    %v1801 = vunpack.c.h.b16 %v474
    %v1802 = vunpack.c.l.b16 %v475
    %v1803 = vunpack.c.h.b16 %v475
    %v1804 = vunpack.c.l.b16 %v476
    %v1805 = vunpack.c.h.b16 %v476
    %v1806 = vunpack.c.l.b16 %v477
    %v1807 = vunpack.c.h.b16 %v477
    %v1808 = vunpack.c.l.b16 %v478
    %v1809 = vunpack.c.h.b16 %v478
    %v1810 = vunpack.c.l.b16 %v479
    %v1811 = vunpack.c.h.b16 %v479
    %v1812 = vunpack.c.l.b16 %v480
    %v1813 = vunpack.c.h.b16 %v480
    %v1814 = vunpack.c.l.b16 %v481
    %v1815 = vunpack.c.h.b16 %v481
    %v1816 = vunpack.c.l.b16 %v482
    %v1817 = vunpack.c.h.b16 %v482
    %v1818 = vunpack.c.l.b16 %v483
    %v1819 = vunpack.c.h.b16 %v483
    %v1820 = vunpack.c.l.b16 %v484
    %v1821 = vunpack.c.h.b16 %v484
    %v1822 = vunpack.c.l.b16 %v485
    %v1823 = vunpack.c.h.b16 %v485
    %v1824 = vunpack.c.l.b16 %v486
    %v1825 = vunpack.c.h.b16 %v486
    %v1826 = vunpack.c.l.b16 %v487
    %v1827 = vunpack.c.h.b16 %v487
    %v1828 = vunpack.c.l.b16 %v488
    %v1829 = vunpack.c.h.b16 %v488
    %v1830 = vunpack.c.l.b16 %v489
    %v1831 = vunpack.c.h.b16 %v489
    %v1832 = vunpack.c.l.b16 %v490
    %v1833 = vunpack.c.h.b16 %v490
    %v1834 = vunpack.c.l.b16 %v491
    %v1835 = vunpack.c.h.b16 %v491
    %v1836 = vunpack.c.l.b16 %v492
    %v1837 = vunpack.c.h.b16 %v492
    %v1838 = vunpack.c.l.b16 %v493
    %v1839 = vunpack.c.h.b16 %v493
    %v1840 = vunpack.c.l.b16 %v494
    %v1841 = vunpack.c.h.b16 %v494
    %v1842 = vunpack.c.l.b16 %v495
    %v1843 = vunpack.c.h.b16 %v495
    %v1844 = vunpack.c.l.b16 %v496
    %v1845 = vunpack.c.h.b16 %v496
    %v1846 = vunpack.c.l.b16 %v497
    %v1847 = vunpack.c.h.b16 %v497
    %v1848 = vunpack.c.l.b16 %v498
    %v1849 = vunpack.c.h.b16 %v498
    %v1850 = vunpack.c.l.b16 %v499
    %v1851 = vunpack.c.h.b16 %v499
    %v1852 = vunpack.c.l.b16 %v500
    %v1853 = vunpack.c.h.b16 %v500
    %v1854 = vunpack.c.l.b16 %v501
    %v1855 = vunpack.c.h.b16 %v501
    %v1856 = vunpack.c.l.b16 %v502
    %v1857 = vunpack.c.h.b16 %v502
    %v1858 = vunpack.c.l.b16 %v503
    %v1859 = vunpack.c.h.b16 %v503
    %v1860 = vunpack.c.l.b16 %v504
    %v1861 = vunpack.c.h.b16 %v504
    %v1862 = vunpack.c.l.b16 %v505
    %v1863 = vunpack.c.h.b16 %v505
    %v1864 = vunpack.c.l.b16 %v506
    %v1865 = vunpack.c.h.b16 %v506
    %v1866 = vunpack.c.l.b16 %v507
    %v1867 = vunpack.c.h.b16 %v507
    %v1868 = vunpack.c.l.b16 %v508
    %v1869 = vunpack.c.h.b16 %v508
    %v1870 = vunpack.c.l.b16 %v509
    %v1871 = vunpack.c.h.b16 %v509
    %v1872 = vunpack.c.l.b16 %v510
    %v1873 = vunpack.c.h.b16 %v510
    %v1874 = vunpack.c.l.b16 %v511
    %v1875 = vunpack.c.h.b16 %v511
    %v1876 = vunpack.c.l.b16 %v512
    %v1877 = vunpack.c.h.b16 %v512
    %v1878 = vunpack.c.l.b16 %v513
    %v1879 = vunpack.c.h.b16 %v513
    %v1880 = vunpack.c.l.b16 %v514
    %v1881 = vunpack.c.h.b16 %v514
    %v1882 = vunpack.c.l.b16 %v515
    %v1883 = vunpack.c.h.b16 %v515
    %v1884 = vunpack.c.l.b16 %v516
    %v1885 = vunpack.c.h.b16 %v516
    %v1886 = vunpack.c.l.b16 %v517
    %v1887 = vunpack.c.h.b16 %v517
    %v1888 = vunpack.c.l.b16 %v518
    %v1889 = vunpack.c.h.b16 %v518
    %v1890 = vunpack.c.l.b16 %v519
    %v1891 = vunpack.c.h.b16 %v519
    %v1892 = vunpack.c.l.b16 %v520
    %v1893 = vunpack.c.h.b16 %v520
    %v1894 = vunpack.c.l.b16 %v521
    %v1895 = vunpack.c.h.b16 %v521
    %v1896 = vunpack.c.l.b16 %v522
    %v1897 = vunpack.c.h.b16 %v522
    %v1898 = vunpack.c.l.b16 %v523
    %v1899 = vunpack.c.h.b16 %v523
    %v1900 = vunpack.c.l.b16 %v524
    %v1901 = vunpack.c.h.b16 %v524
    %v1902 = vunpack.c.l.b16 %v525
    %v1903 = vunpack.c.h.b16 %v525
    %v1904 = vunpack.c.l.b16 %v526
    %v1905 = vunpack.c.h.b16 %v526
    %v1906 = vunpack.c.l.b16 %v527
    %v1907 = vunpack.c.h.b16 %v527
    %v1908 = vunpack.c.l.b16 %v528
    %v1909 = vunpack.c.h.b16 %v528
    %v1910 = vunpack.c.l.b16 %v529
    %v1911 = vunpack.c.h.b16 %v529
    %v1912 = vunpack.c.l.b16 %v530
    %v1913 = vunpack.c.h.b16 %v530
    %v1914 = vunpack.c.l.b16 %v531
    %v1915 = vunpack.c.h.b16 %v531
    %v1916 = vunpack.c.l.b16 %v532
    %v1917 = vunpack.c.h.b16 %v532
    %v1918 = vunpack.c.l.b16 %v533
    %v1919 = vunpack.c.h.b16 %v533
    %v1920 = vunpack.c.l.b16 %v534
    %v1921 = vunpack.c.h.b16 %v534
    %v1922 = vpack.c.b16 %v1034, %v1026
    %v1923 = vpack.c.b16 %v1035, %v1027
    %v1924 = vpack.c.b16 %v1036, %v1028
    %v1925 = vpack.c.b16 %v1037, %v1029
    %v1926 = vpack.c.b16 %v1038, %v1030
    %v1927 = vpack.c.b16 %v1039, %v1031
    %v1928 = vpack.c.b16 %v1040, %v1032
    %v1929 = vpack.c.b16 %v1041, %v1033
    %v1930 = vpack.c.b16 %v1050, %v1042
    %v1931 = vpack.c.b16 %v1051, %v1043
    %v1932 = vpack.c.b16 %v1052, %v1044
    %v1933 = vpack.c.b16 %v1053, %v1045
    %v1934 = vpack.c.b16 %v1054, %v1046
    %v1935 = vpack.c.b16 %v1055, %v1047
    %v1936 = vpack.c.b16 %v1056, %v1048
    %v1937 = vpack.c.b16 %v1057, %v1049
    %v1938 = vpack.c.b16 %v1066, %v1058
    %v1939 = vpack.c.b16 %v1067, %v1059
    %v1940 = vpack.c.b16 %v1068, %v1060
    %v1941 = vpack.c.b16 %v1069, %v1061
    %v1942 = vpack.c.b16 %v1070, %v1062
    %v1943 = vpack.c.b16 %v1071, %v1063
    %v1944 = vpack.c.b16 %v1072, %v1064
    %v1945 = vpack.c.b16 %v1073, %v1065
    %v1946 = vpack.c.b16 %v1082, %v1074
    %v1947 = vpack.c.b16 %v1083, %v1075
    %v1948 = vpack.c.b16 %v1084, %v1076
    %v1949 = vpack.c.b16 %v1085, %v1077
    %v1950 = vpack.c.b16 %v1086, %v1078
    %v1951 = vpack.c.b16 %v1087, %v1079
    %v1952 = vpack.c.b16 %v1088, %v1080
    %v1953 = vpack.c.b16 %v1089, %v1081
    %v1954 = vpack.c.b16 %v1098, %v1090
    %v1955 = vpack.c.b16 %v1099, %v1091
    %v1956 = vpack.c.b16 %v1100, %v1092
    %v1957 = vpack.c.b16 %v1101, %v1093
    %v1958 = vpack.c.b16 %v1102, %v1094
    %v1959 = vpack.c.b16 %v1103, %v1095
    %v1960 = vpack.c.b16 %v1104, %v1096
    %v1961 = vpack.c.b16 %v1105, %v1097
    %v1962 = vpack.c.b16 %v1114, %v1106
    %v1963 = vpack.c.b16 %v1115, %v1107
    %v1964 = vpack.c.b16 %v1116, %v1108
    %v1965 = vpack.c.b16 %v1117, %v1109
    %v1966 = vpack.c.b16 %v1118, %v1110
    %v1967 = vpack.c.b16 %v1119, %v1111
    %v1968 = vpack.c.b16 %v1120, %v1112
    %v1969 = vpack.c.b16 %v1121, %v1113
    %v1970 = vpack.c.b16 %v1130, %v1122
    %v1971 = vpack.c.b16 %v1131, %v1123
    %v1972 = vpack.c.b16 %v1132, %v1124
    %v1973 = vpack.c.b16 %v1133, %v1125
    %v1974 = vpack.c.b16 %v1134, %v1126
    %v1975 = vpack.c.b16 %v1135, %v1127
    %v1976 = vpack.c.b16 %v1136, %v1128
    %v1977 = vpack.c.b16 %v1137, %v1129
    %v1978 = vpack.c.b16 %v1146, %v1138
    %v1979 = vpack.c.b16 %v1147, %v1139
    %v1980 = vpack.c.b16 %v1148, %v1140
    %v1981 = vpack.c.b16 %v1149, %v1141
    %v1982 = vpack.c.b16 %v1150, %v1142
    %v1983 = vpack.c.b16 %v1151, %v1143
    %v1984 = vpack.c.b16 %v1152, %v1144
    %v1985 = vpack.c.b16 %v1153, %v1145
    %v1986 = vpack.c.b16 %v1162, %v1154
    %v1987 = vpack.c.b16 %v1163, %v1155
    %v1988 = vpack.c.b16 %v1164, %v1156
    %v1989 = vpack.c.b16 %v1165, %v1157
    %v1990 = vpack.c.b16 %v1166, %v1158
    %v1991 = vpack.c.b16 %v1167, %v1159
    %v1992 = vpack.c.b16 %v1168, %v1160
    %v1993 = vpack.c.b16 %v1169, %v1161
    %v1994 = vpack.c.b16 %v1178, %v1170
    %v1995 = vpack.c.b16 %v1179, %v1171
    %v1996 = vpack.c.b16 %v1180, %v1172
    %v1997 = vpack.c.b16 %v1181, %v1173
    %v1998 = vpack.c.b16 %v1182, %v1174
    %v1999 = vpack.c.b16 %v1183, %v1175
    %v2000 = vpack.c.b16 %v1184, %v1176
    %v2001 = vpack.c.b16 %v1185, %v1177
    %v2002 = vpack.c.b16 %v1194, %v1186
    %v2003 = vpack.c.b16 %v1195, %v1187
    %v2004 = vpack.c.b16 %v1196, %v1188
    %v2005 = vpack.c.b16 %v1197, %v1189
    %v2006 = vpack.c.b16 %v1198, %v1190
    %v2007 = vpack.c.b16 %v1199, %v1191
    %v2008 = vpack.c.b16 %v1200, %v1192
    %v2009 = vpack.c.b16 %v1201, %v1193
    %v2010 = vpack.c.b16 %v1210, %v1202
    %v2011 = vpack.c.b16 %v1211, %v1203
    %v2012 = vpack.c.b16 %v1212, %v1204
    %v2013 = vpack.c.b16 %v1213, %v1205
    %v2014 = vpack.c.b16 %v1214, %v1206
    %v2015 = vpack.c.b16 %v1215, %v1207
    %v2016 = vpack.c.b16 %v1216, %v1208
    %v2017 = vpack.c.b16 %v1217, %v1209
    %v2018 = vpack.c.b16 %v1226, %v1218
    %v2019 = vpack.c.b16 %v1227, %v1219
    %v2020 = vpack.c.b16 %v1228, %v1220
    %v2021 = vpack.c.b16 %v1229, %v1221
    %v2022 = vpack.c.b16 %v1230, %v1222
    %v2023 = vpack.c.b16 %v1231, %v1223
    %v2024 = vpack.c.b16 %v1232, %v1224
    %v2025 = vpack.c.b16 %v1233, %v1225
    %v2026 = vpack.c.b16 %v1242, %v1234
    %v2027 = vpack.c.b16 %v1243, %v1235
    %v2028 = vpack.c.b16 %v1244, %v1236
    %v2029 = vpack.c.b16 %v1245, %v1237
    %v2030 = vpack.c.b16 %v1246, %v1238
    %v2031 = vpack.c.b16 %v1247, %v1239
    %v2032 = vpack.c.b16 %v1248, %v1240
    %v2033 = vpack.c.b16 %v1249, %v1241
    %v2034 = vpack.c.b16 %v1258, %v1250
    %v2035 = vpack.c.b16 %v1259, %v1251
    %v2036 = vpack.c.b16 %v1260, %v1252
    %v2037 = vpack.c.b16 %v1261, %v1253
    %v2038 = vpack.c.b16 %v1262, %v1254
    %v2039 = vpack.c.b16 %v1263, %v1255
    %v2040 = vpack.c.b16 %v1264, %v1256
    %v2041 = vpack.c.b16 %v1265, %v1257
    %v2042 = vpack.c.b16 %v1274, %v1266
    %v2043 = vpack.c.b16 %v1275, %v1267
    %v2044 = vpack.c.b16 %v1276, %v1268
    %v2045 = vpack.c.b16 %v1277, %v1269
    %v2046 = vpack.c.b16 %v1278, %v1270
    %v2047 = vpack.c.b16 %v1279, %v1271
    %v2048 = vpack.c.b16 %v1280, %v1272
    %v2049 = vpack.c.b16 %v1281, %v1273
    %v2050 = vpack.c.b16 %v1290, %v1282
    %v2051 = vpack.c.b16 %v1291, %v1283
    %v2052 = vpack.c.b16 %v1292, %v1284
    %v2053 = vpack.c.b16 %v1293, %v1285
    %v2054 = vpack.c.b16 %v1294, %v1286
    %v2055 = vpack.c.b16 %v1295, %v1287
    %v2056 = vpack.c.b16 %v1296, %v1288
    %v2057 = vpack.c.b16 %v1297, %v1289
    %v2058 = vpack.c.b16 %v1306, %v1298
    %v2059 = vpack.c.b16 %v1307, %v1299
    %v2060 = vpack.c.b16 %v1308, %v1300
    %v2061 = vpack.c.b16 %v1309, %v1301
    %v2062 = vpack.c.b16 %v1310, %v1302
    %v2063 = vpack.c.b16 %v1311, %v1303
    %v2064 = vpack.c.b16 %v1312, %v1304
    %v2065 = vpack.c.b16 %v1313, %v1305
    %v2066 = vpack.c.b16 %v1322, %v1314
    %v2067 = vpack.c.b16 %v1323, %v1315
    %v2068 = vpack.c.b16 %v1324, %v1316
    %v2069 = vpack.c.b16 %v1325, %v1317
    %v2070 = vpack.c.b16 %v1326, %v1318
    %v2071 = vpack.c.b16 %v1327, %v1319
    %v2072 = vpack.c.b16 %v1328, %v1320
    %v2073 = vpack.c.b16 %v1329, %v1321
    %v2074 = vpack.c.b16 %v1338, %v1330
    %v2075 = vpack.c.b16 %v1339, %v1331
    %v2076 = vpack.c.b16 %v1340, %v1332
    %v2077 = vpack.c.b16 %v1341, %v1333
    %v2078 = vpack.c.b16 %v1342, %v1334
    %v2079 = vpack.c.b16 %v1343, %v1335
    %v2080 = vpack.c.b16 %v1344, %v1336
    %v2081 = vpack.c.b16 %v1345, %v1337
    %v2082 = vpack.c.b16 %v1354, %v1346
    %v2083 = vpack.c.b16 %v1355, %v1347
    %v2084 = vpack.c.b16 %v1356, %v1348
    %v2085 = vpack.c.b16 %v1357, %v1349
    %v2086 = vpack.c.b16 %v1358, %v1350
    %v2087 = vpack.c.b16 %v1359, %v1351
    %v2088 = vpack.c.b16 %v1360, %v1352
    %v2089 = vpack.c.b16 %v1361, %v1353
    %v2090 = vpack.c.b16 %v1370, %v1362
    %v2091 = vpack.c.b16 %v1371, %v1363
    %v2092 = vpack.c.b16 %v1372, %v1364
    %v2093 = vpack.c.b16 %v1373, %v1365
    %v2094 = vpack.c.b16 %v1374, %v1366
    %v2095 = vpack.c.b16 %v1375, %v1367
    %v2096 = vpack.c.b16 %v1376, %v1368
    %v2097 = vpack.c.b16 %v1377, %v1369
    %v2098 = vpack.c.b16 %v1386, %v1378
    %v2099 = vpack.c.b16 %v1387, %v1379
    %v2100 = vpack.c.b16 %v1388, %v1380
    %v2101 = vpack.c.b16 %v1389, %v1381
    %v2102 = vpack.c.b16 %v1390, %v1382
    %v2103 = vpack.c.b16 %v1391, %v1383
    %v2104 = vpack.c.b16 %v1392, %v1384
    %v2105 = vpack.c.b16 %v1393, %v1385
    %v2106 = vpack.c.b16 %v1402, %v1394
    %v2107 = vpack.c.b16 %v1403, %v1395
    %v2108 = vpack.c.b16 %v1404, %v1396
    %v2109 = vpack.c.b16 %v1405, %v1397
    %v2110 = vpack.c.b16 %v1406, %v1398
    %v2111 = vpack.c.b16 %v1407, %v1399
    %v2112 = vpack.c.b16 %v1408, %v1400
    %v2113 = vpack.c.b16 %v1409, %v1401
    %v2114 = vpack.c.b16 %v1418, %v1410
    %v2115 = vpack.c.b16 %v1419, %v1411
    %v2116 = vpack.c.b16 %v1420, %v1412
    %v2117 = vpack.c.b16 %v1421, %v1413
    %v2118 = vpack.c.b16 %v1422, %v1414
    %v2119 = vpack.c.b16 %v1423, %v1415
    %v2120 = vpack.c.b16 %v1424, %v1416
    %v2121 = vpack.c.b16 %v1425, %v1417
    %v2122 = vpack.c.b16 %v1434, %v1426
    %v2123 = vpack.c.b16 %v1435, %v1427
    %v2124 = vpack.c.b16 %v1436, %v1428
    %v2125 = vpack.c.b16 %v1437, %v1429
    %v2126 = vpack.c.b16 %v1438, %v1430
    %v2127 = vpack.c.b16 %v1439, %v1431
    %v2128 = vpack.c.b16 %v1440, %v1432
    %v2129 = vpack.c.b16 %v1441, %v1433
    %v2130 = vpack.c.b16 %v1450, %v1442
    %v2131 = vpack.c.b16 %v1451, %v1443
    %v2132 = vpack.c.b16 %v1452, %v1444
    %v2133 = vpack.c.b16 %v1453, %v1445
    %v2134 = vpack.c.b16 %v1454, %v1446
    %v2135 = vpack.c.b16 %v1455, %v1447
    %v2136 = vpack.c.b16 %v1456, %v1448
    %v2137 = vpack.c.b16 %v1457, %v1449
    %v2138 = vpack.c.b16 %v1466, %v1458
    %v2139 = vpack.c.b16 %v1467, %v1459
    %v2140 = vpack.c.b16 %v1468, %v1460
    %v2141 = vpack.c.b16 %v1469, %v1461
    %v2142 = vpack.c.b16 %v1470, %v1462
    %v2143 = vpack.c.b16 %v1471, %v1463
    %v2144 = vpack.c.b16 %v1472, %v1464
    %v2145 = vpack.c.b16 %v1473, %v1465
    %v2146 = vpack.c.b16 %v1482, %v1474
    %v2147 = vpack.c.b16 %v1483, %v1475
    %v2148 = vpack.c.b16 %v1484, %v1476
    %v2149 = vpack.c.b16 %v1485, %v1477
    %v2150 = vpack.c.b16 %v1486, %v1478
    %v2151 = vpack.c.b16 %v1487, %v1479
    %v2152 = vpack.c.b16 %v1488, %v1480
    %v2153 = vpack.c.b16 %v1489, %v1481
    %v2154 = vpack.c.b16 %v1498, %v1490
    %v2155 = vpack.c.b16 %v1499, %v1491
    %v2156 = vpack.c.b16 %v1500, %v1492
    %v2157 = vpack.c.b16 %v1501, %v1493
    %v2158 = vpack.c.b16 %v1502, %v1494
    %v2159 = vpack.c.b16 %v1503, %v1495
    %v2160 = vpack.c.b16 %v1504, %v1496
    %v2161 = vpack.c.b16 %v1505, %v1497
    %v2162 = vpack.c.b16 %v1514, %v1506
    %v2163 = vpack.c.b16 %v1515, %v1507
    %v2164 = vpack.c.b16 %v1516, %v1508
    %v2165 = vpack.c.b16 %v1517, %v1509
    %v2166 = vpack.c.b16 %v1518, %v1510
    %v2167 = vpack.c.b16 %v1519, %v1511
    %v2168 = vpack.c.b16 %v1520, %v1512
    %v2169 = vpack.c.b16 %v1521, %v1513
    %v2170 = vpack.c.b16 %v1530, %v1522
    %v2171 = vpack.c.b16 %v1531, %v1523
    %v2172 = vpack.c.b16 %v1532, %v1524
    %v2173 = vpack.c.b16 %v1533, %v1525
    %v2174 = vpack.c.b16 %v1534, %v1526
    %v2175 = vpack.c.b16 %v1535, %v1527
    %v2176 = vpack.c.b16 %v1536, %v1528
    %v2177 = vpack.c.b16 %v1537, %v1529
    %v2178 = vpack.c.b16 %v1546, %v1538
    %v2179 = vpack.c.b16 %v1547, %v1539
    %v2180 = vpack.c.b16 %v1548, %v1540
    %v2181 = vpack.c.b16 %v1549, %v1541
    %v2182 = vpack.c.b16 %v1550, %v1542
    %v2183 = vpack.c.b16 %v1551, %v1543
    %v2184 = vpack.c.b16 %v1552, %v1544
    %v2185 = vpack.c.b16 %v1553, %v1545
    %v2186 = vpack.c.b16 %v1562, %v1554
    %v2187 = vpack.c.b16 %v1563, %v1555
    %v2188 = vpack.c.b16 %v1564, %v1556
    %v2189 = vpack.c.b16 %v1565, %v1557
    %v2190 = vpack.c.b16 %v1566, %v1558
    %v2191 = vpack.c.b16 %v1567, %v1559
    %v2192 = vpack.c.b16 %v1568, %v1560
    %v2193 = vpack.c.b16 %v1569, %v1561
    %v2194 = vpack.c.b16 %v1578, %v1570
    %v2195 = vpack.c.b16 %v1579, %v1571
    %v2196 = vpack.c.b16 %v1580, %v1572
    %v2197 = vpack.c.b16 %v1581, %v1573
    %v2198 = vpack.c.b16 %v1582, %v1574
    %v2199 = vpack.c.b16 %v1583, %v1575
    %v2200 = vpack.c.b16 %v1584, %v1576
    %v2201 = vpack.c.b16 %v1585, %v1577
    %v2202 = vpack.c.b16 %v1594, %v1586
    %v2203 = vpack.c.b16 %v1595, %v1587
    %v2204 = vpack.c.b16 %v1596, %v1588
    %v2205 = vpack.c.b16 %v1597, %v1589
    %v2206 = vpack.c.b16 %v1598, %v1590
    %v2207 = vpack.c.b16 %v1599, %v1591
    %v2208 = vpack.c.b16 %v1600, %v1592
    %v2209 = vpack.c.b16 %v1601, %v1593
    %v2210 = vpack.c.b16 %v1610, %v1602
    %v2211 = vpack.c.b16 %v1611, %v1603
    %v2212 = vpack.c.b16 %v1612, %v1604
    %v2213 = vpack.c.b16 %v1613, %v1605
    %v2214 = vpack.c.b16 %v1614, %v1606
    %v2215 = vpack.c.b16 %v1615, %v1607
    %v2216 = vpack.c.b16 %v1616, %v1608
    %v2217 = vpack.c.b16 %v1617, %v1609
    %v2218 = vpack.c.b16 %v1626, %v1618
    %v2219 = vpack.c.b16 %v1627, %v1619
    %v2220 = vpack.c.b16 %v1628, %v1620
    %v2221 = vpack.c.b16 %v1629, %v1621
    %v2222 = vpack.c.b16 %v1630, %v1622
    %v2223 = vpack.c.b16 %v1631, %v1623
    %v2224 = vpack.c.b16 %v1632, %v1624
    %v2225 = vpack.c.b16 %v1633, %v1625
    %v2226 = vpack.c.b16 %v1642, %v1634
    %v2227 = vpack.c.b16 %v1643, %v1635
    %v2228 = vpack.c.b16 %v1644, %v1636
    %v2229 = vpack.c.b16 %v1645, %v1637
    %v2230 = vpack.c.b16 %v1646, %v1638
    %v2231 = vpack.c.b16 %v1647, %v1639
    %v2232 = vpack.c.b16 %v1648, %v1640
    %v2233 = vpack.c.b16 %v1649, %v1641
    %v2234 = vpack.c.b16 %v1658, %v1650
    %v2235 = vpack.c.b16 %v1659, %v1651
    %v2236 = vpack.c.b16 %v1660, %v1652
    %v2237 = vpack.c.b16 %v1661, %v1653
    %v2238 = vpack.c.b16 %v1662, %v1654
    %v2239 = vpack.c.b16 %v1663, %v1655
    %v2240 = vpack.c.b16 %v1664, %v1656
    %v2241 = vpack.c.b16 %v1665, %v1657
    %v2242 = vpack.c.b16 %v1674, %v1666
    %v2243 = vpack.c.b16 %v1675, %v1667
    %v2244 = vpack.c.b16 %v1676, %v1668
    %v2245 = vpack.c.b16 %v1677, %v1669
    %v2246 = vpack.c.b16 %v1678, %v1670
    %v2247 = vpack.c.b16 %v1679, %v1671
    %v2248 = vpack.c.b16 %v1680, %v1672
    %v2249 = vpack.c.b16 %v1681, %v1673
    %v2250 = vpack.c.b16 %v1690, %v1682
    %v2251 = vpack.c.b16 %v1691, %v1683
    %v2252 = vpack.c.b16 %v1692, %v1684
    %v2253 = vpack.c.b16 %v1693, %v1685
    %v2254 = vpack.c.b16 %v1694, %v1686
    %v2255 = vpack.c.b16 %v1695, %v1687
    %v2256 = vpack.c.b16 %v1696, %v1688
    %v2257 = vpack.c.b16 %v1697, %v1689
    %v2258 = vpack.c.b16 %v1706, %v1698
    %v2259 = vpack.c.b16 %v1707, %v1699
    %v2260 = vpack.c.b16 %v1708, %v1700
    %v2261 = vpack.c.b16 %v1709, %v1701
    %v2262 = vpack.c.b16 %v1710, %v1702
    %v2263 = vpack.c.b16 %v1711, %v1703
    %v2264 = vpack.c.b16 %v1712, %v1704
    %v2265 = vpack.c.b16 %v1713, %v1705
    %v2266 = vpack.c.b16 %v1722, %v1714
    %v2267 = vpack.c.b16 %v1723, %v1715
    %v2268 = vpack.c.b16 %v1724, %v1716
    %v2269 = vpack.c.b16 %v1725, %v1717
    %v2270 = vpack.c.b16 %v1726, %v1718
    %v2271 = vpack.c.b16 %v1727, %v1719
    %v2272 = vpack.c.b16 %v1728, %v1720
    %v2273 = vpack.c.b16 %v1729, %v1721
    %v2274 = vpack.c.b16 %v1738, %v1730
    %v2275 = vpack.c.b16 %v1739, %v1731
    %v2276 = vpack.c.b16 %v1740, %v1732
    %v2277 = vpack.c.b16 %v1741, %v1733
    %v2278 = vpack.c.b16 %v1742, %v1734
    %v2279 = vpack.c.b16 %v1743, %v1735
    %v2280 = vpack.c.b16 %v1744, %v1736
    %v2281 = vpack.c.b16 %v1745, %v1737
    %v2282 = vpack.c.b16 %v1754, %v1746
    %v2283 = vpack.c.b16 %v1755, %v1747
    %v2284 = vpack.c.b16 %v1756, %v1748
    %v2285 = vpack.c.b16 %v1757, %v1749
    %v2286 = vpack.c.b16 %v1758, %v1750
    %v2287 = vpack.c.b16 %v1759, %v1751
    %v2288 = vpack.c.b16 %v1760, %v1752
    %v2289 = vpack.c.b16 %v1761, %v1753
    %v2290 = vpack.c.b16 %v1770, %v1762
    %v2291 = vpack.c.b16 %v1771, %v1763
    %v2292 = vpack.c.b16 %v1772, %v1764
    %v2293 = vpack.c.b16 %v1773, %v1765
    %v2294 = vpack.c.b16 %v1774, %v1766
    %v2295 = vpack.c.b16 %v1775, %v1767
    %v2296 = vpack.c.b16 %v1776, %v1768
    %v2297 = vpack.c.b16 %v1777, %v1769
    %v2298 = vpack.c.b16 %v1786, %v1778
    %v2299 = vpack.c.b16 %v1787, %v1779
    %v2300 = vpack.c.b16 %v1788, %v1780
    %v2301 = vpack.c.b16 %v1789, %v1781
    %v2302 = vpack.c.b16 %v1790, %v1782
    %v2303 = vpack.c.b16 %v1791, %v1783
    %v2304 = vpack.c.b16 %v1792, %v1784
    %v2305 = vpack.c.b16 %v1793, %v1785
    %v2306 = vpack.c.b16 %v1802, %v1794
    %v2307 = vpack.c.b16 %v1803, %v1795
    %v2308 = vpack.c.b16 %v1804, %v1796
    %v2309 = vpack.c.b16 %v1805, %v1797
    %v2310 = vpack.c.b16 %v1806, %v1798
    %v2311 = vpack.c.b16 %v1807, %v1799
    %v2312 = vpack.c.b16 %v1808, %v1800
    %v2313 = vpack.c.b16 %v1809, %v1801
    %v2314 = vpack.c.b16 %v1818, %v1810
    %v2315 = vpack.c.b16 %v1819, %v1811
    %v2316 = vpack.c.b16 %v1820, %v1812
    %v2317 = vpack.c.b16 %v1821, %v1813
    %v2318 = vpack.c.b16 %v1822, %v1814
    %v2319 = vpack.c.b16 %v1823, %v1815
    %v2320 = vpack.c.b16 %v1824, %v1816
    %v2321 = vpack.c.b16 %v1825, %v1817
    %v2322 = vpack.c.b16 %v1834, %v1826
    %v2323 = vpack.c.b16 %v1835, %v1827
    %v2324 = vpack.c.b16 %v1836, %v1828
    %v2325 = vpack.c.b16 %v1837, %v1829
    %v2326 = vpack.c.b16 %v1838, %v1830
    %v2327 = vpack.c.b16 %v1839, %v1831
    %v2328 = vpack.c.b16 %v1840, %v1832
    %v2329 = vpack.c.b16 %v1841, %v1833
    %v2330 = vpack.c.b16 %v1850, %v1842
    %v2331 = vpack.c.b16 %v1851, %v1843
    %v2332 = vpack.c.b16 %v1852, %v1844
    %v2333 = vpack.c.b16 %v1853, %v1845
    %v2334 = vpack.c.b16 %v1854, %v1846
    %v2335 = vpack.c.b16 %v1855, %v1847
    %v2336 = vpack.c.b16 %v1856, %v1848
    %v2337 = vpack.c.b16 %v1857, %v1849
    %v2338 = vpack.c.b16 %v1866, %v1858
    %v2339 = vpack.c.b16 %v1867, %v1859
    %v2340 = vpack.c.b16 %v1868, %v1860
    %v2341 = vpack.c.b16 %v1869, %v1861
    %v2342 = vpack.c.b16 %v1870, %v1862
    %v2343 = vpack.c.b16 %v1871, %v1863
    %v2344 = vpack.c.b16 %v1872, %v1864
    %v2345 = vpack.c.b16 %v1873, %v1865
    %v2346 = vpack.c.b16 %v1882, %v1874
    %v2347 = vpack.c.b16 %v1883, %v1875
    %v2348 = vpack.c.b16 %v1884, %v1876
    %v2349 = vpack.c.b16 %v1885, %v1877
    %v2350 = vpack.c.b16 %v1886, %v1878
    %v2351 = vpack.c.b16 %v1887, %v1879
    %v2352 = vpack.c.b16 %v1888, %v1880
    %v2353 = vpack.c.b16 %v1889, %v1881
    %v2354 = vpack.c.b16 %v1898, %v1890
    %v2355 = vpack.c.b16 %v1899, %v1891
    %v2356 = vpack.c.b16 %v1900, %v1892
    %v2357 = vpack.c.b16 %v1901, %v1893
    %v2358 = vpack.c.b16 %v1902, %v1894
    %v2359 = vpack.c.b16 %v1903, %v1895
    %v2360 = vpack.c.b16 %v1904, %v1896
    %v2361 = vpack.c.b16 %v1905, %v1897
    %v2362 = vpack.c.b16 %v1914, %v1906
    %v2363 = vpack.c.b16 %v1915, %v1907
    %v2364 = vpack.c.b16 %v1916, %v1908
    %v2365 = vpack.c.b16 %v1917, %v1909
    %v2366 = vpack.c.b16 %v1918, %v1910
    %v2367 = vpack.c.b16 %v1919, %v1911
    %v2368 = vpack.c.b16 %v1920, %v1912
    %v2369 = vpack.c.b16 %v1921, %v1913
    %2818 = vmatpush.bf16.msra.mxu0 %v1978
    %2819 = vmatpush.bf16.msra.mxu0 %v1970
    %2820 = vmatpush.bf16.msra.mxu0 %v1962
    %2821 = vmatpush.bf16.msra.mxu0 %v1954
    %2822 = vmatpush.bf16.msra.mxu0 %v1946
    %2823 = vmatpush.bf16.msra.mxu0 %v1938
    %2824 = vmatpush.bf16.msra.mxu0 %v1930
    %2825 = vmatpush.bf16.msra.mxu0 %v1922
    %2826 = vmatmul.bf16.gmra.mxu0 %v564
    %v2827 = vpop.f32.mrf.mxu0
    %v2828 = vadd.f32 %v537, %v2827
    %v2829 = vpop.f32.mrf.mxu0
    %2830 = vdwg.mxu0
    %2831 = vmatpush.bf16.msra.mxu0 %v2042
    %2832 = vmatpush.bf16.msra.mxu0 %v2034
    %2833 = vmatpush.bf16.msra.mxu0 %v2026
    %2834 = vmatpush.bf16.msra.mxu0 %v2018
    %2835 = vmatpush.bf16.msra.mxu0 %v2010
    %2836 = vmatpush.bf16.msra.mxu0 %v2002
    %2837 = vmatpush.bf16.msra.mxu0 %v1994
    %2838 = vmatpush.bf16.msra.mxu0 %v1986
    %2839 = vmatmul.bf16.gmra.mxu0 %v565
    %v2840 = vpop.f32.mrf.mxu0
    %v2841 = vadd.f32 %v2828, %v2840
    %v2842 = vpop.f32.mrf.mxu0
    %2843 = vdwg.mxu0
    %2844 = vmatpush.bf16.msra.mxu0 %v2106
    %2845 = vmatpush.bf16.msra.mxu0 %v2098
    %2846 = vmatpush.bf16.msra.mxu0 %v2090
    %2847 = vmatpush.bf16.msra.mxu0 %v2082
    %2848 = vmatpush.bf16.msra.mxu0 %v2074
    %2849 = vmatpush.bf16.msra.mxu0 %v2066
    %2850 = vmatpush.bf16.msra.mxu0 %v2058
    %2851 = vmatpush.bf16.msra.mxu0 %v2050
    %2852 = vmatmul.bf16.gmra.mxu0 %v566
    %v2853 = vpop.f32.mrf.mxu0
    %v2854 = vadd.f32 %v2841, %v2853
    %v2855 = vpop.f32.mrf.mxu0
    %2856 = vdwg.mxu0
    %2857 = vmatpush.bf16.msra.mxu0 %v2170
    %2858 = vmatpush.bf16.msra.mxu0 %v2162
    %2859 = vmatpush.bf16.msra.mxu0 %v2154
    %2860 = vmatpush.bf16.msra.mxu0 %v2146
    %2861 = vmatpush.bf16.msra.mxu0 %v2138
    %2862 = vmatpush.bf16.msra.mxu0 %v2130
    %2863 = vmatpush.bf16.msra.mxu0 %v2122
    %2864 = vmatpush.bf16.msra.mxu0 %v2114
    %2865 = vmatmul.bf16.gmra.mxu0 %v567
    %v2866 = vpop.f32.mrf.mxu0
    %v2867 = vadd.f32 %v2854, %v2866
    %v2868 = vpop.f32.mrf.mxu0
    %2869 = vdwg.mxu0
    %2870 = vmatpush.bf16.msra.mxu0 %v2234
    %2871 = vmatpush.bf16.msra.mxu0 %v2226
    %2872 = vmatpush.bf16.msra.mxu0 %v2218
    %2873 = vmatpush.bf16.msra.mxu0 %v2210
    %2874 = vmatpush.bf16.msra.mxu0 %v2202
    %2875 = vmatpush.bf16.msra.mxu0 %v2194
    %2876 = vmatpush.bf16.msra.mxu0 %v2186
    %2877 = vmatpush.bf16.msra.mxu0 %v2178
    %2878 = vmatmul.bf16.gmra.mxu0 %v568
    %v2879 = vpop.f32.mrf.mxu0
    %v2880 = vadd.f32 %v2867, %v2879
    %v2881 = vpop.f32.mrf.mxu0
    %2882 = vdwg.mxu0
    %2883 = vmatpush.bf16.msra.mxu0 %v2298
    %2884 = vmatpush.bf16.msra.mxu0 %v2290
    %2885 = vmatpush.bf16.msra.mxu0 %v2282
    %2886 = vmatpush.bf16.msra.mxu0 %v2274
    %2887 = vmatpush.bf16.msra.mxu0 %v2266
    %2888 = vmatpush.bf16.msra.mxu0 %v2258
    %2889 = vmatpush.bf16.msra.mxu0 %v2250
    %2890 = vmatpush.bf16.msra.mxu0 %v2242
    %2891 = vmatmul.bf16.gmra.mxu0 %v569
    %v2892 = vpop.f32.mrf.mxu0
    %v2893 = vadd.f32 %v2880, %v2892
    %v2894 = vpop.f32.mrf.mxu0
    %2895 = vdwg.mxu0
    %2896 = vmatpush.bf16.msra.mxu0 %v2362
    %2897 = vmatpush.bf16.msra.mxu0 %v2354
    %2898 = vmatpush.bf16.msra.mxu0 %v2346
    %2899 = vmatpush.bf16.msra.mxu0 %v2338
    %2900 = vmatpush.bf16.msra.mxu0 %v2330
    %2901 = vmatpush.bf16.msra.mxu0 %v2322
    %2902 = vmatpush.bf16.msra.mxu0 %v2314
    %2903 = vmatpush.bf16.msra.mxu0 %v2306
    %2904 = vmatmul.bf16.gmra.mxu0 %v570
    %v2905 = vpop.f32.mrf.mxu0
    %v2906 = vadd.f32 %v2893, %v2905
    %v2907 = vpop.f32.mrf.mxu0
    %2908 = vdwg.mxu0
    %2909 = vmatpush.bf16.msra.mxu0 %v1979
    %2910 = vmatpush.bf16.msra.mxu0 %v1971
    %2911 = vmatpush.bf16.msra.mxu0 %v1963
    %2912 = vmatpush.bf16.msra.mxu0 %v1955
    %2913 = vmatpush.bf16.msra.mxu0 %v1947
    %2914 = vmatpush.bf16.msra.mxu0 %v1939
    %2915 = vmatpush.bf16.msra.mxu0 %v1931
    %2916 = vmatpush.bf16.msra.mxu0 %v1923
    %2917 = vmatmul.bf16.gmra.mxu0 %v564
    %v2918 = vpop.f32.mrf.mxu0
    %v2919 = vadd.f32 %v538, %v2918
    %v2920 = vpop.f32.mrf.mxu0
    %2921 = vdwg.mxu0
    %2922 = vmatpush.bf16.msra.mxu0 %v2043
    %2923 = vmatpush.bf16.msra.mxu0 %v2035
    %2924 = vmatpush.bf16.msra.mxu0 %v2027
    %2925 = vmatpush.bf16.msra.mxu0 %v2019
    %2926 = vmatpush.bf16.msra.mxu0 %v2011
    %2927 = vmatpush.bf16.msra.mxu0 %v2003
    %2928 = vmatpush.bf16.msra.mxu0 %v1995
    %2929 = vmatpush.bf16.msra.mxu0 %v1987
    %2930 = vmatmul.bf16.gmra.mxu0 %v565
    %v2931 = vpop.f32.mrf.mxu0
    %v2932 = vadd.f32 %v2919, %v2931
    %v2933 = vpop.f32.mrf.mxu0
    %2934 = vdwg.mxu0
    %2935 = vmatpush.bf16.msra.mxu0 %v2107
    %2936 = vmatpush.bf16.msra.mxu0 %v2099
    %2937 = vmatpush.bf16.msra.mxu0 %v2091
    %2938 = vmatpush.bf16.msra.mxu0 %v2083
    %2939 = vmatpush.bf16.msra.mxu0 %v2075
    %2940 = vmatpush.bf16.msra.mxu0 %v2067
    %2941 = vmatpush.bf16.msra.mxu0 %v2059
    %2942 = vmatpush.bf16.msra.mxu0 %v2051
    %2943 = vmatmul.bf16.gmra.mxu0 %v566
    %v2944 = vpop.f32.mrf.mxu0
    %v2945 = vadd.f32 %v2932, %v2944
    %v2946 = vpop.f32.mrf.mxu0
    %2947 = vdwg.mxu0
    %2948 = vmatpush.bf16.msra.mxu0 %v2171
    %2949 = vmatpush.bf16.msra.mxu0 %v2163
    %2950 = vmatpush.bf16.msra.mxu0 %v2155
    %2951 = vmatpush.bf16.msra.mxu0 %v2147
    %2952 = vmatpush.bf16.msra.mxu0 %v2139
    %2953 = vmatpush.bf16.msra.mxu0 %v2131
    %2954 = vmatpush.bf16.msra.mxu0 %v2123
    %2955 = vmatpush.bf16.msra.mxu0 %v2115
    %2956 = vmatmul.bf16.gmra.mxu0 %v567
    %v2957 = vpop.f32.mrf.mxu0
    %v2958 = vadd.f32 %v2945, %v2957
    %v2959 = vpop.f32.mrf.mxu0
    %2960 = vdwg.mxu0
    %2961 = vmatpush.bf16.msra.mxu0 %v2235
    %2962 = vmatpush.bf16.msra.mxu0 %v2227
    %2963 = vmatpush.bf16.msra.mxu0 %v2219
    %2964 = vmatpush.bf16.msra.mxu0 %v2211
    %2965 = vmatpush.bf16.msra.mxu0 %v2203
    %2966 = vmatpush.bf16.msra.mxu0 %v2195
    %2967 = vmatpush.bf16.msra.mxu0 %v2187
    %2968 = vmatpush.bf16.msra.mxu0 %v2179
    %2969 = vmatmul.bf16.gmra.mxu0 %v568
    %v2970 = vpop.f32.mrf.mxu0
    %v2971 = vadd.f32 %v2958, %v2970
    %v2972 = vpop.f32.mrf.mxu0
    %2973 = vdwg.mxu0
    %2974 = vmatpush.bf16.msra.mxu0 %v2299
    %2975 = vmatpush.bf16.msra.mxu0 %v2291
    %2976 = vmatpush.bf16.msra.mxu0 %v2283
    %2977 = vmatpush.bf16.msra.mxu0 %v2275
    %2978 = vmatpush.bf16.msra.mxu0 %v2267
    %2979 = vmatpush.bf16.msra.mxu0 %v2259
    %2980 = vmatpush.bf16.msra.mxu0 %v2251
    %2981 = vmatpush.bf16.msra.mxu0 %v2243
    %2982 = vmatmul.bf16.gmra.mxu0 %v569
    %v2983 = vpop.f32.mrf.mxu0
    %v2984 = vadd.f32 %v2971, %v2983
    %v2985 = vpop.f32.mrf.mxu0
    %2986 = vdwg.mxu0
    %2987 = vmatpush.bf16.msra.mxu0 %v2363
    %2988 = vmatpush.bf16.msra.mxu0 %v2355
    %2989 = vmatpush.bf16.msra.mxu0 %v2347
    %2990 = vmatpush.bf16.msra.mxu0 %v2339
    %2991 = vmatpush.bf16.msra.mxu0 %v2331
    %2992 = vmatpush.bf16.msra.mxu0 %v2323
    %2993 = vmatpush.bf16.msra.mxu0 %v2315
    %2994 = vmatpush.bf16.msra.mxu0 %v2307
    %2995 = vmatmul.bf16.gmra.mxu0 %v570
    %v2996 = vpop.f32.mrf.mxu0
    %v2997 = vadd.f32 %v2984, %v2996
    %v2998 = vpop.f32.mrf.mxu0
    %2999 = vdwg.mxu0
    %3000 = vmatpush.bf16.msra.mxu0 %v1980
    %3001 = vmatpush.bf16.msra.mxu0 %v1972
    %3002 = vmatpush.bf16.msra.mxu0 %v1964
    %3003 = vmatpush.bf16.msra.mxu0 %v1956
    %3004 = vmatpush.bf16.msra.mxu0 %v1948
    %3005 = vmatpush.bf16.msra.mxu0 %v1940
    %3006 = vmatpush.bf16.msra.mxu0 %v1932
    %3007 = vmatpush.bf16.msra.mxu0 %v1924
    %3008 = vmatmul.bf16.gmra.mxu0 %v564
    %v3009 = vpop.f32.mrf.mxu0
    %v3010 = vadd.f32 %v539, %v3009
    %v3011 = vpop.f32.mrf.mxu0
    %3012 = vdwg.mxu0
    %3013 = vmatpush.bf16.msra.mxu0 %v2044
    %3014 = vmatpush.bf16.msra.mxu0 %v2036
    %3015 = vmatpush.bf16.msra.mxu0 %v2028
    %3016 = vmatpush.bf16.msra.mxu0 %v2020
    %3017 = vmatpush.bf16.msra.mxu0 %v2012
    %3018 = vmatpush.bf16.msra.mxu0 %v2004
    %3019 = vmatpush.bf16.msra.mxu0 %v1996
    %3020 = vmatpush.bf16.msra.mxu0 %v1988
    %3021 = vmatmul.bf16.gmra.mxu0 %v565
    %v3022 = vpop.f32.mrf.mxu0
    %v3023 = vadd.f32 %v3010, %v3022
    %v3024 = vpop.f32.mrf.mxu0
    %3025 = vdwg.mxu0
    %3026 = vmatpush.bf16.msra.mxu0 %v2108
    %3027 = vmatpush.bf16.msra.mxu0 %v2100
    %3028 = vmatpush.bf16.msra.mxu0 %v2092
    %3029 = vmatpush.bf16.msra.mxu0 %v2084
    %3030 = vmatpush.bf16.msra.mxu0 %v2076
    %3031 = vmatpush.bf16.msra.mxu0 %v2068
    %3032 = vmatpush.bf16.msra.mxu0 %v2060
    %3033 = vmatpush.bf16.msra.mxu0 %v2052
    %3034 = vmatmul.bf16.gmra.mxu0 %v566
    %v3035 = vpop.f32.mrf.mxu0
    %v3036 = vadd.f32 %v3023, %v3035
    %v3037 = vpop.f32.mrf.mxu0
    %3038 = vdwg.mxu0
    %3039 = vmatpush.bf16.msra.mxu0 %v2172
    %3040 = vmatpush.bf16.msra.mxu0 %v2164
    %3041 = vmatpush.bf16.msra.mxu0 %v2156
    %3042 = vmatpush.bf16.msra.mxu0 %v2148
    %3043 = vmatpush.bf16.msra.mxu0 %v2140
    %3044 = vmatpush.bf16.msra.mxu0 %v2132
    %3045 = vmatpush.bf16.msra.mxu0 %v2124
    %3046 = vmatpush.bf16.msra.mxu0 %v2116
    %3047 = vmatmul.bf16.gmra.mxu0 %v567
    %v3048 = vpop.f32.mrf.mxu0
    %v3049 = vadd.f32 %v3036, %v3048
    %v3050 = vpop.f32.mrf.mxu0
    %3051 = vdwg.mxu0
    %3052 = vmatpush.bf16.msra.mxu0 %v2236
    %3053 = vmatpush.bf16.msra.mxu0 %v2228
    %3054 = vmatpush.bf16.msra.mxu0 %v2220
    %3055 = vmatpush.bf16.msra.mxu0 %v2212
    %3056 = vmatpush.bf16.msra.mxu0 %v2204
    %3057 = vmatpush.bf16.msra.mxu0 %v2196
    %3058 = vmatpush.bf16.msra.mxu0 %v2188
    %3059 = vmatpush.bf16.msra.mxu0 %v2180
    %3060 = vmatmul.bf16.gmra.mxu0 %v568
    %v3061 = vpop.f32.mrf.mxu0
    %v3062 = vadd.f32 %v3049, %v3061
    %v3063 = vpop.f32.mrf.mxu0
    %3064 = vdwg.mxu0
    %3065 = vmatpush.bf16.msra.mxu0 %v2300
    %3066 = vmatpush.bf16.msra.mxu0 %v2292
    %3067 = vmatpush.bf16.msra.mxu0 %v2284
    %3068 = vmatpush.bf16.msra.mxu0 %v2276
    %3069 = vmatpush.bf16.msra.mxu0 %v2268
    %3070 = vmatpush.bf16.msra.mxu0 %v2260
    %3071 = vmatpush.bf16.msra.mxu0 %v2252
    %3072 = vmatpush.bf16.msra.mxu0 %v2244
    %3073 = vmatmul.bf16.gmra.mxu0 %v569
    %v3074 = vpop.f32.mrf.mxu0
    %v3075 = vadd.f32 %v3062, %v3074
    %v3076 = vpop.f32.mrf.mxu0
    %3077 = vdwg.mxu0
    %3078 = vmatpush.bf16.msra.mxu0 %v2364
    %3079 = vmatpush.bf16.msra.mxu0 %v2356
    %3080 = vmatpush.bf16.msra.mxu0 %v2348
    %3081 = vmatpush.bf16.msra.mxu0 %v2340
    %3082 = vmatpush.bf16.msra.mxu0 %v2332
    %3083 = vmatpush.bf16.msra.mxu0 %v2324
    %3084 = vmatpush.bf16.msra.mxu0 %v2316
    %3085 = vmatpush.bf16.msra.mxu0 %v2308
    %3086 = vmatmul.bf16.gmra.mxu0 %v570
    %v3087 = vpop.f32.mrf.mxu0
    %v3088 = vadd.f32 %v3075, %v3087
    %v3089 = vpop.f32.mrf.mxu0
    %3090 = vdwg.mxu0
    %3091 = vmatpush.bf16.msra.mxu0 %v1981
    %3092 = vmatpush.bf16.msra.mxu0 %v1973
    %3093 = vmatpush.bf16.msra.mxu0 %v1965
    %3094 = vmatpush.bf16.msra.mxu0 %v1957
    %3095 = vmatpush.bf16.msra.mxu0 %v1949
    %3096 = vmatpush.bf16.msra.mxu0 %v1941
    %3097 = vmatpush.bf16.msra.mxu0 %v1933
    %3098 = vmatpush.bf16.msra.mxu0 %v1925
    %3099 = vmatmul.bf16.gmra.mxu0 %v564
    %v3100 = vpop.f32.mrf.mxu0
    %v3101 = vadd.f32 %v540, %v3100
    %v3102 = vpop.f32.mrf.mxu0
    %3103 = vdwg.mxu0
    %3104 = vmatpush.bf16.msra.mxu0 %v2045
    %3105 = vmatpush.bf16.msra.mxu0 %v2037
    %3106 = vmatpush.bf16.msra.mxu0 %v2029
    %3107 = vmatpush.bf16.msra.mxu0 %v2021
    %3108 = vmatpush.bf16.msra.mxu0 %v2013
    %3109 = vmatpush.bf16.msra.mxu0 %v2005
    %3110 = vmatpush.bf16.msra.mxu0 %v1997
    %3111 = vmatpush.bf16.msra.mxu0 %v1989
    %3112 = vmatmul.bf16.gmra.mxu0 %v565
    %v3113 = vpop.f32.mrf.mxu0
    %v3114 = vadd.f32 %v3101, %v3113
    %v3115 = vpop.f32.mrf.mxu0
    %3116 = vdwg.mxu0
    %3117 = vmatpush.bf16.msra.mxu0 %v2109
    %3118 = vmatpush.bf16.msra.mxu0 %v2101
    %3119 = vmatpush.bf16.msra.mxu0 %v2093
    %3120 = vmatpush.bf16.msra.mxu0 %v2085
    %3121 = vmatpush.bf16.msra.mxu0 %v2077
    %3122 = vmatpush.bf16.msra.mxu0 %v2069
    %3123 = vmatpush.bf16.msra.mxu0 %v2061
    %3124 = vmatpush.bf16.msra.mxu0 %v2053
    %3125 = vmatmul.bf16.gmra.mxu0 %v566
    %v3126 = vpop.f32.mrf.mxu0
    %v3127 = vadd.f32 %v3114, %v3126
    %v3128 = vpop.f32.mrf.mxu0
    %3129 = vdwg.mxu0
    %3130 = vmatpush.bf16.msra.mxu0 %v2173
    %3131 = vmatpush.bf16.msra.mxu0 %v2165
    %3132 = vmatpush.bf16.msra.mxu0 %v2157
    %3133 = vmatpush.bf16.msra.mxu0 %v2149
    %3134 = vmatpush.bf16.msra.mxu0 %v2141
    %3135 = vmatpush.bf16.msra.mxu0 %v2133
    %3136 = vmatpush.bf16.msra.mxu0 %v2125
    %3137 = vmatpush.bf16.msra.mxu0 %v2117
    %3138 = vmatmul.bf16.gmra.mxu0 %v567
    %v3139 = vpop.f32.mrf.mxu0
    %v3140 = vadd.f32 %v3127, %v3139
    %v3141 = vpop.f32.mrf.mxu0
    %3142 = vdwg.mxu0
    %3143 = vmatpush.bf16.msra.mxu0 %v2237
    %3144 = vmatpush.bf16.msra.mxu0 %v2229
    %3145 = vmatpush.bf16.msra.mxu0 %v2221
    %3146 = vmatpush.bf16.msra.mxu0 %v2213
    %3147 = vmatpush.bf16.msra.mxu0 %v2205
    %3148 = vmatpush.bf16.msra.mxu0 %v2197
    %3149 = vmatpush.bf16.msra.mxu0 %v2189
    %3150 = vmatpush.bf16.msra.mxu0 %v2181
    %3151 = vmatmul.bf16.gmra.mxu0 %v568
    %v3152 = vpop.f32.mrf.mxu0
    %v3153 = vadd.f32 %v3140, %v3152
    %v3154 = vpop.f32.mrf.mxu0
    %3155 = vdwg.mxu0
    %3156 = vmatpush.bf16.msra.mxu0 %v2301
    %3157 = vmatpush.bf16.msra.mxu0 %v2293
    %3158 = vmatpush.bf16.msra.mxu0 %v2285
    %3159 = vmatpush.bf16.msra.mxu0 %v2277
    %3160 = vmatpush.bf16.msra.mxu0 %v2269
    %3161 = vmatpush.bf16.msra.mxu0 %v2261
    %3162 = vmatpush.bf16.msra.mxu0 %v2253
    %3163 = vmatpush.bf16.msra.mxu0 %v2245
    %3164 = vmatmul.bf16.gmra.mxu0 %v569
    %v3165 = vpop.f32.mrf.mxu0
    %v3166 = vadd.f32 %v3153, %v3165
    %v3167 = vpop.f32.mrf.mxu0
    %3168 = vdwg.mxu0
    %3169 = vmatpush.bf16.msra.mxu0 %v2365
    %3170 = vmatpush.bf16.msra.mxu0 %v2357
    %3171 = vmatpush.bf16.msra.mxu0 %v2349
    %3172 = vmatpush.bf16.msra.mxu0 %v2341
    %3173 = vmatpush.bf16.msra.mxu0 %v2333
    %3174 = vmatpush.bf16.msra.mxu0 %v2325
    %3175 = vmatpush.bf16.msra.mxu0 %v2317
    %3176 = vmatpush.bf16.msra.mxu0 %v2309
    %3177 = vmatmul.bf16.gmra.mxu0 %v570
    %v3178 = vpop.f32.mrf.mxu0
    %v3179 = vadd.f32 %v3166, %v3178
    %v3180 = vpop.f32.mrf.mxu0
    %3181 = vdwg.mxu0
    %3182 = vmatpush.bf16.msra.mxu0 %v1982
    %3183 = vmatpush.bf16.msra.mxu0 %v1974
    %3184 = vmatpush.bf16.msra.mxu0 %v1966
    %3185 = vmatpush.bf16.msra.mxu0 %v1958
    %3186 = vmatpush.bf16.msra.mxu0 %v1950
    %3187 = vmatpush.bf16.msra.mxu0 %v1942
    %3188 = vmatpush.bf16.msra.mxu0 %v1934
    %3189 = vmatpush.bf16.msra.mxu0 %v1926
    %3190 = vmatmul.bf16.gmra.mxu0 %v564
    %v3191 = vpop.f32.mrf.mxu0
    %v3192 = vadd.f32 %v541, %v3191
    %v3193 = vpop.f32.mrf.mxu0
    %3194 = vdwg.mxu0
    %3195 = vmatpush.bf16.msra.mxu0 %v2046
    %3196 = vmatpush.bf16.msra.mxu0 %v2038
    %3197 = vmatpush.bf16.msra.mxu0 %v2030
    %3198 = vmatpush.bf16.msra.mxu0 %v2022
    %3199 = vmatpush.bf16.msra.mxu0 %v2014
    %3200 = vmatpush.bf16.msra.mxu0 %v2006
    %3201 = vmatpush.bf16.msra.mxu0 %v1998
    %3202 = vmatpush.bf16.msra.mxu0 %v1990
    %3203 = vmatmul.bf16.gmra.mxu0 %v565
    %v3204 = vpop.f32.mrf.mxu0
    %v3205 = vadd.f32 %v3192, %v3204
    %v3206 = vpop.f32.mrf.mxu0
    %3207 = vdwg.mxu0
    %3208 = vmatpush.bf16.msra.mxu0 %v2110
    %3209 = vmatpush.bf16.msra.mxu0 %v2102
    %3210 = vmatpush.bf16.msra.mxu0 %v2094
    %3211 = vmatpush.bf16.msra.mxu0 %v2086
    %3212 = vmatpush.bf16.msra.mxu0 %v2078
    %3213 = vmatpush.bf16.msra.mxu0 %v2070
    %3214 = vmatpush.bf16.msra.mxu0 %v2062
    %3215 = vmatpush.bf16.msra.mxu0 %v2054
    %3216 = vmatmul.bf16.gmra.mxu0 %v566
    %v3217 = vpop.f32.mrf.mxu0
    %v3218 = vadd.f32 %v3205, %v3217
    %v3219 = vpop.f32.mrf.mxu0
    %3220 = vdwg.mxu0
    %3221 = vmatpush.bf16.msra.mxu0 %v2174
    %3222 = vmatpush.bf16.msra.mxu0 %v2166
    %3223 = vmatpush.bf16.msra.mxu0 %v2158
    %3224 = vmatpush.bf16.msra.mxu0 %v2150
    %3225 = vmatpush.bf16.msra.mxu0 %v2142
    %3226 = vmatpush.bf16.msra.mxu0 %v2134
    %3227 = vmatpush.bf16.msra.mxu0 %v2126
    %3228 = vmatpush.bf16.msra.mxu0 %v2118
    %3229 = vmatmul.bf16.gmra.mxu0 %v567
    %v3230 = vpop.f32.mrf.mxu0
    %v3231 = vadd.f32 %v3218, %v3230
    %v3232 = vpop.f32.mrf.mxu0
    %3233 = vdwg.mxu0
    %3234 = vmatpush.bf16.msra.mxu0 %v2238
    %3235 = vmatpush.bf16.msra.mxu0 %v2230
    %3236 = vmatpush.bf16.msra.mxu0 %v2222
    %3237 = vmatpush.bf16.msra.mxu0 %v2214
    %3238 = vmatpush.bf16.msra.mxu0 %v2206
    %3239 = vmatpush.bf16.msra.mxu0 %v2198
    %3240 = vmatpush.bf16.msra.mxu0 %v2190
    %3241 = vmatpush.bf16.msra.mxu0 %v2182
    %3242 = vmatmul.bf16.gmra.mxu0 %v568
    %v3243 = vpop.f32.mrf.mxu0
    %v3244 = vadd.f32 %v3231, %v3243
    %v3245 = vpop.f32.mrf.mxu0
    %3246 = vdwg.mxu0
    %3247 = vmatpush.bf16.msra.mxu0 %v2302
    %3248 = vmatpush.bf16.msra.mxu0 %v2294
    %3249 = vmatpush.bf16.msra.mxu0 %v2286
    %3250 = vmatpush.bf16.msra.mxu0 %v2278
    %3251 = vmatpush.bf16.msra.mxu0 %v2270
    %3252 = vmatpush.bf16.msra.mxu0 %v2262
    %3253 = vmatpush.bf16.msra.mxu0 %v2254
    %3254 = vmatpush.bf16.msra.mxu0 %v2246
    %3255 = vmatmul.bf16.gmra.mxu0 %v569
    %v3256 = vpop.f32.mrf.mxu0
    %v3257 = vadd.f32 %v3244, %v3256
    %v3258 = vpop.f32.mrf.mxu0
    %3259 = vdwg.mxu0
    %3260 = vmatpush.bf16.msra.mxu0 %v2366
    %3261 = vmatpush.bf16.msra.mxu0 %v2358
    %3262 = vmatpush.bf16.msra.mxu0 %v2350
    %3263 = vmatpush.bf16.msra.mxu0 %v2342
    %3264 = vmatpush.bf16.msra.mxu0 %v2334
    %3265 = vmatpush.bf16.msra.mxu0 %v2326
    %3266 = vmatpush.bf16.msra.mxu0 %v2318
    %3267 = vmatpush.bf16.msra.mxu0 %v2310
    %3268 = vmatmul.bf16.gmra.mxu0 %v570
    %v3269 = vpop.f32.mrf.mxu0
    %v3270 = vadd.f32 %v3257, %v3269
    %v3271 = vpop.f32.mrf.mxu0
    %3272 = vdwg.mxu0
    %3273 = vmatpush.bf16.msra.mxu0 %v1983
    %3274 = vmatpush.bf16.msra.mxu0 %v1975
    %3275 = vmatpush.bf16.msra.mxu0 %v1967
    %3276 = vmatpush.bf16.msra.mxu0 %v1959
    %3277 = vmatpush.bf16.msra.mxu0 %v1951
    %3278 = vmatpush.bf16.msra.mxu0 %v1943
    %3279 = vmatpush.bf16.msra.mxu0 %v1935
    %3280 = vmatpush.bf16.msra.mxu0 %v1927
    %3281 = vmatmul.bf16.gmra.mxu0 %v564
    %v3282 = vpop.f32.mrf.mxu0
    %v3283 = vadd.f32 %v542, %v3282
    %v3284 = vpop.f32.mrf.mxu0
    %3285 = vdwg.mxu0
    %3286 = vmatpush.bf16.msra.mxu0 %v2047
    %3287 = vmatpush.bf16.msra.mxu0 %v2039
    %3288 = vmatpush.bf16.msra.mxu0 %v2031
    %3289 = vmatpush.bf16.msra.mxu0 %v2023
    %3290 = vmatpush.bf16.msra.mxu0 %v2015
    %3291 = vmatpush.bf16.msra.mxu0 %v2007
    %3292 = vmatpush.bf16.msra.mxu0 %v1999
    %3293 = vmatpush.bf16.msra.mxu0 %v1991
    %3294 = vmatmul.bf16.gmra.mxu0 %v565
    %v3295 = vpop.f32.mrf.mxu0
    %v3296 = vadd.f32 %v3283, %v3295
    %v3297 = vpop.f32.mrf.mxu0
    %3298 = vdwg.mxu0
    %3299 = vmatpush.bf16.msra.mxu0 %v2111
    %3300 = vmatpush.bf16.msra.mxu0 %v2103
    %3301 = vmatpush.bf16.msra.mxu0 %v2095
    %3302 = vmatpush.bf16.msra.mxu0 %v2087
    %3303 = vmatpush.bf16.msra.mxu0 %v2079
    %3304 = vmatpush.bf16.msra.mxu0 %v2071
    %3305 = vmatpush.bf16.msra.mxu0 %v2063
    %3306 = vmatpush.bf16.msra.mxu0 %v2055
    %3307 = vmatmul.bf16.gmra.mxu0 %v566
    %v3308 = vpop.f32.mrf.mxu0
    %v3309 = vadd.f32 %v3296, %v3308
    %v3310 = vpop.f32.mrf.mxu0
    %3311 = vdwg.mxu0
    %3312 = vmatpush.bf16.msra.mxu0 %v2175
    %3313 = vmatpush.bf16.msra.mxu0 %v2167
    %3314 = vmatpush.bf16.msra.mxu0 %v2159
    %3315 = vmatpush.bf16.msra.mxu0 %v2151
    %3316 = vmatpush.bf16.msra.mxu0 %v2143
    %3317 = vmatpush.bf16.msra.mxu0 %v2135
    %3318 = vmatpush.bf16.msra.mxu0 %v2127
    %3319 = vmatpush.bf16.msra.mxu0 %v2119
    %3320 = vmatmul.bf16.gmra.mxu0 %v567
    %v3321 = vpop.f32.mrf.mxu0
    %v3322 = vadd.f32 %v3309, %v3321
    %v3323 = vpop.f32.mrf.mxu0
    %3324 = vdwg.mxu0
    %3325 = vmatpush.bf16.msra.mxu0 %v2239
    %3326 = vmatpush.bf16.msra.mxu0 %v2231
    %3327 = vmatpush.bf16.msra.mxu0 %v2223
    %3328 = vmatpush.bf16.msra.mxu0 %v2215
    %3329 = vmatpush.bf16.msra.mxu0 %v2207
    %3330 = vmatpush.bf16.msra.mxu0 %v2199
    %3331 = vmatpush.bf16.msra.mxu0 %v2191
    %3332 = vmatpush.bf16.msra.mxu0 %v2183
    %3333 = vmatmul.bf16.gmra.mxu0 %v568
    %v3334 = vpop.f32.mrf.mxu0
    %v3335 = vadd.f32 %v3322, %v3334
    %v3336 = vpop.f32.mrf.mxu0
    %3337 = vdwg.mxu0
    %3338 = vmatpush.bf16.msra.mxu0 %v2303
    %3339 = vmatpush.bf16.msra.mxu0 %v2295
    %3340 = vmatpush.bf16.msra.mxu0 %v2287
    %3341 = vmatpush.bf16.msra.mxu0 %v2279
    %3342 = vmatpush.bf16.msra.mxu0 %v2271
    %3343 = vmatpush.bf16.msra.mxu0 %v2263
    %3344 = vmatpush.bf16.msra.mxu0 %v2255
    %3345 = vmatpush.bf16.msra.mxu0 %v2247
    %3346 = vmatmul.bf16.gmra.mxu0 %v569
    %v3347 = vpop.f32.mrf.mxu0
    %v3348 = vadd.f32 %v3335, %v3347
    %v3349 = vpop.f32.mrf.mxu0
    %3350 = vdwg.mxu0
    %3351 = vmatpush.bf16.msra.mxu0 %v2367
    %3352 = vmatpush.bf16.msra.mxu0 %v2359
    %3353 = vmatpush.bf16.msra.mxu0 %v2351
    %3354 = vmatpush.bf16.msra.mxu0 %v2343
    %3355 = vmatpush.bf16.msra.mxu0 %v2335
    %3356 = vmatpush.bf16.msra.mxu0 %v2327
    %3357 = vmatpush.bf16.msra.mxu0 %v2319
    %3358 = vmatpush.bf16.msra.mxu0 %v2311
    %3359 = vmatmul.bf16.gmra.mxu0 %v570
    %v3360 = vpop.f32.mrf.mxu0
    %v3361 = vadd.f32 %v3348, %v3360
    %v3362 = vpop.f32.mrf.mxu0
    %3363 = vdwg.mxu0
    %3364 = vmatpush.bf16.msra.mxu0 %v1984
    %3365 = vmatpush.bf16.msra.mxu0 %v1976
    %3366 = vmatpush.bf16.msra.mxu0 %v1968
    %3367 = vmatpush.bf16.msra.mxu0 %v1960
    %3368 = vmatpush.bf16.msra.mxu0 %v1952
    %3369 = vmatpush.bf16.msra.mxu0 %v1944
    %3370 = vmatpush.bf16.msra.mxu0 %v1936
    %3371 = vmatpush.bf16.msra.mxu0 %v1928
    %3372 = vmatmul.bf16.gmra.mxu0 %v564
    %v3373 = vpop.f32.mrf.mxu0
    %v3374 = vadd.f32 %v543, %v3373
    %v3375 = vpop.f32.mrf.mxu0
    %3376 = vdwg.mxu0
    %3377 = vmatpush.bf16.msra.mxu0 %v2048
    %3378 = vmatpush.bf16.msra.mxu0 %v2040
    %3379 = vmatpush.bf16.msra.mxu0 %v2032
    %3380 = vmatpush.bf16.msra.mxu0 %v2024
    %3381 = vmatpush.bf16.msra.mxu0 %v2016
    %3382 = vmatpush.bf16.msra.mxu0 %v2008
    %3383 = vmatpush.bf16.msra.mxu0 %v2000
    %3384 = vmatpush.bf16.msra.mxu0 %v1992
    %3385 = vmatmul.bf16.gmra.mxu0 %v565
    %v3386 = vpop.f32.mrf.mxu0
    %v3387 = vadd.f32 %v3374, %v3386
    %v3388 = vpop.f32.mrf.mxu0
    %3389 = vdwg.mxu0
    %3390 = vmatpush.bf16.msra.mxu0 %v2112
    %3391 = vmatpush.bf16.msra.mxu0 %v2104
    %3392 = vmatpush.bf16.msra.mxu0 %v2096
    %3393 = vmatpush.bf16.msra.mxu0 %v2088
    %3394 = vmatpush.bf16.msra.mxu0 %v2080
    %3395 = vmatpush.bf16.msra.mxu0 %v2072
    %3396 = vmatpush.bf16.msra.mxu0 %v2064
    %3397 = vmatpush.bf16.msra.mxu0 %v2056
    %3398 = vmatmul.bf16.gmra.mxu0 %v566
    %v3399 = vpop.f32.mrf.mxu0
    %v3400 = vadd.f32 %v3387, %v3399
    %v3401 = vpop.f32.mrf.mxu0
    %3402 = vdwg.mxu0
    %3403 = vmatpush.bf16.msra.mxu0 %v2176
    %3404 = vmatpush.bf16.msra.mxu0 %v2168
    %3405 = vmatpush.bf16.msra.mxu0 %v2160
    %3406 = vmatpush.bf16.msra.mxu0 %v2152
    %3407 = vmatpush.bf16.msra.mxu0 %v2144
    %3408 = vmatpush.bf16.msra.mxu0 %v2136
    %3409 = vmatpush.bf16.msra.mxu0 %v2128
    %3410 = vmatpush.bf16.msra.mxu0 %v2120
    %3411 = vmatmul.bf16.gmra.mxu0 %v567
    %v3412 = vpop.f32.mrf.mxu0
    %v3413 = vadd.f32 %v3400, %v3412
    %v3414 = vpop.f32.mrf.mxu0
    %3415 = vdwg.mxu0
    %3416 = vmatpush.bf16.msra.mxu0 %v2240
    %3417 = vmatpush.bf16.msra.mxu0 %v2232
    %3418 = vmatpush.bf16.msra.mxu0 %v2224
    %3419 = vmatpush.bf16.msra.mxu0 %v2216
    %3420 = vmatpush.bf16.msra.mxu0 %v2208
    %3421 = vmatpush.bf16.msra.mxu0 %v2200
    %3422 = vmatpush.bf16.msra.mxu0 %v2192
    %3423 = vmatpush.bf16.msra.mxu0 %v2184
    %3424 = vmatmul.bf16.gmra.mxu0 %v568
    %v3425 = vpop.f32.mrf.mxu0
    %v3426 = vadd.f32 %v3413, %v3425
    %v3427 = vpop.f32.mrf.mxu0
    %3428 = vdwg.mxu0
    %3429 = vmatpush.bf16.msra.mxu0 %v2304
    %3430 = vmatpush.bf16.msra.mxu0 %v2296
    %3431 = vmatpush.bf16.msra.mxu0 %v2288
    %3432 = vmatpush.bf16.msra.mxu0 %v2280
    %3433 = vmatpush.bf16.msra.mxu0 %v2272
    %3434 = vmatpush.bf16.msra.mxu0 %v2264
    %3435 = vmatpush.bf16.msra.mxu0 %v2256
    %3436 = vmatpush.bf16.msra.mxu0 %v2248
    %3437 = vmatmul.bf16.gmra.mxu0 %v569
    %v3438 = vpop.f32.mrf.mxu0
    %v3439 = vadd.f32 %v3426, %v3438
    %v3440 = vpop.f32.mrf.mxu0
    %3441 = vdwg.mxu0
    %3442 = vmatpush.bf16.msra.mxu0 %v2368
    %3443 = vmatpush.bf16.msra.mxu0 %v2360
    %3444 = vmatpush.bf16.msra.mxu0 %v2352
    %3445 = vmatpush.bf16.msra.mxu0 %v2344
    %3446 = vmatpush.bf16.msra.mxu0 %v2336
    %3447 = vmatpush.bf16.msra.mxu0 %v2328
    %3448 = vmatpush.bf16.msra.mxu0 %v2320
    %3449 = vmatpush.bf16.msra.mxu0 %v2312
    %3450 = vmatmul.bf16.gmra.mxu0 %v570
    %v3451 = vpop.f32.mrf.mxu0
    %v3452 = vadd.f32 %v3439, %v3451
    %v3453 = vpop.f32.mrf.mxu0
    %3454 = vdwg.mxu0
    %3455 = vmatpush.bf16.msra.mxu0 %v1985
    %3456 = vmatpush.bf16.msra.mxu0 %v1977
    %3457 = vmatpush.bf16.msra.mxu0 %v1969
    %3458 = vmatpush.bf16.msra.mxu0 %v1961
    %3459 = vmatpush.bf16.msra.mxu0 %v1953
    %3460 = vmatpush.bf16.msra.mxu0 %v1945
    %3461 = vmatpush.bf16.msra.mxu0 %v1937
    %3462 = vmatpush.bf16.msra.mxu0 %v1929
    %3463 = vmatmul.bf16.gmra.mxu0 %v564
    %v3464 = vpop.f32.mrf.mxu0
    %v3465 = vadd.f32 %v544, %v3464
    %v3466 = vpop.f32.mrf.mxu0
    %3467 = vdwg.mxu0
    %3468 = vmatpush.bf16.msra.mxu0 %v2049
    %3469 = vmatpush.bf16.msra.mxu0 %v2041
    %3470 = vmatpush.bf16.msra.mxu0 %v2033
    %3471 = vmatpush.bf16.msra.mxu0 %v2025
    %3472 = vmatpush.bf16.msra.mxu0 %v2017
    %3473 = vmatpush.bf16.msra.mxu0 %v2009
    %3474 = vmatpush.bf16.msra.mxu0 %v2001
    %3475 = vmatpush.bf16.msra.mxu0 %v1993
    %3476 = vmatmul.bf16.gmra.mxu0 %v565
    %v3477 = vpop.f32.mrf.mxu0
    %v3478 = vadd.f32 %v3465, %v3477
    %v3479 = vpop.f32.mrf.mxu0
    %3480 = vdwg.mxu0
    %3481 = vmatpush.bf16.msra.mxu0 %v2113
    %3482 = vmatpush.bf16.msra.mxu0 %v2105
    %3483 = vmatpush.bf16.msra.mxu0 %v2097
    %3484 = vmatpush.bf16.msra.mxu0 %v2089
    %3485 = vmatpush.bf16.msra.mxu0 %v2081
    %3486 = vmatpush.bf16.msra.mxu0 %v2073
    %3487 = vmatpush.bf16.msra.mxu0 %v2065
    %3488 = vmatpush.bf16.msra.mxu0 %v2057
    %3489 = vmatmul.bf16.gmra.mxu0 %v566
    %v3490 = vpop.f32.mrf.mxu0
    %v3491 = vadd.f32 %v3478, %v3490
    %v3492 = vpop.f32.mrf.mxu0
    %3493 = vdwg.mxu0
    %3494 = vmatpush.bf16.msra.mxu0 %v2177
    %3495 = vmatpush.bf16.msra.mxu0 %v2169
    %3496 = vmatpush.bf16.msra.mxu0 %v2161
    %3497 = vmatpush.bf16.msra.mxu0 %v2153
    %3498 = vmatpush.bf16.msra.mxu0 %v2145
    %3499 = vmatpush.bf16.msra.mxu0 %v2137
    %3500 = vmatpush.bf16.msra.mxu0 %v2129
    %3501 = vmatpush.bf16.msra.mxu0 %v2121
    %3502 = vmatmul.bf16.gmra.mxu0 %v567
    %v3503 = vpop.f32.mrf.mxu0
    %v3504 = vadd.f32 %v3491, %v3503
    %v3505 = vpop.f32.mrf.mxu0
    %3506 = vdwg.mxu0
    %3507 = vmatpush.bf16.msra.mxu0 %v2241
    %3508 = vmatpush.bf16.msra.mxu0 %v2233
    %3509 = vmatpush.bf16.msra.mxu0 %v2225
    %3510 = vmatpush.bf16.msra.mxu0 %v2217
    %3511 = vmatpush.bf16.msra.mxu0 %v2209
    %3512 = vmatpush.bf16.msra.mxu0 %v2201
    %3513 = vmatpush.bf16.msra.mxu0 %v2193
    %3514 = vmatpush.bf16.msra.mxu0 %v2185
    %3515 = vmatmul.bf16.gmra.mxu0 %v568
    %v3516 = vpop.f32.mrf.mxu0
    %v3517 = vadd.f32 %v3504, %v3516
    %v3518 = vpop.f32.mrf.mxu0
    %3519 = vdwg.mxu0
    %3520 = vmatpush.bf16.msra.mxu0 %v2305
    %3521 = vmatpush.bf16.msra.mxu0 %v2297
    %3522 = vmatpush.bf16.msra.mxu0 %v2289
    %3523 = vmatpush.bf16.msra.mxu0 %v2281
    %3524 = vmatpush.bf16.msra.mxu0 %v2273
    %3525 = vmatpush.bf16.msra.mxu0 %v2265
    %3526 = vmatpush.bf16.msra.mxu0 %v2257
    %3527 = vmatpush.bf16.msra.mxu0 %v2249
    %3528 = vmatmul.bf16.gmra.mxu0 %v569
    %v3529 = vpop.f32.mrf.mxu0
    %v3530 = vadd.f32 %v3517, %v3529
    %v3531 = vpop.f32.mrf.mxu0
    %3532 = vdwg.mxu0
    %3533 = vmatpush.bf16.msra.mxu0 %v2369
    %3534 = vmatpush.bf16.msra.mxu0 %v2361
    %3535 = vmatpush.bf16.msra.mxu0 %v2353
    %3536 = vmatpush.bf16.msra.mxu0 %v2345
    %3537 = vmatpush.bf16.msra.mxu0 %v2337
    %3538 = vmatpush.bf16.msra.mxu0 %v2329
    %3539 = vmatpush.bf16.msra.mxu0 %v2321
    %3540 = vmatpush.bf16.msra.mxu0 %v2313
    %3541 = vmatmul.bf16.gmra.mxu0 %v570
    %v3542 = vpop.f32.mrf.mxu0
    %v3543 = vadd.f32 %v3530, %v3542
    %v3544 = vpop.f32.mrf.mxu0
    %3545 = vdwg.mxu0
    %3546 = vst [vmem:[#allocation10] sm:$0xff] %v2906
    %3547 = vst [vmem:[#allocation10 + $0x8] sm:$0xff] %v2997
    %3548 = vst [vmem:[#allocation10 + $0x10] sm:$0xff] %v3088
    %3549 = vst [vmem:[#allocation10 + $0x18] sm:$0xff] %v3179
    %3550 = vst [vmem:[#allocation10 + $0x20] sm:$0xff] %v3270
    %3551 = vst [vmem:[#allocation10 + $0x28] sm:$0xff] %v3361
    %3552 = vst [vmem:[#allocation10 + $0x30] sm:$0xff] %v3452
    %3553 = vst [vmem:[#allocation10 + $0x38] sm:$0xff] %v3543
    %v3554 = vpack.c.bf16 %v2906, %v2906
    %v3555 = vpack.c.bf16 %v2997, %v2997
    %v3556 = vpack.c.bf16 %v3088, %v3088
    %v3557 = vpack.c.bf16 %v3179, %v3179
    %v3558 = vpack.c.bf16 %v3270, %v3270
    %v3559 = vpack.c.bf16 %v3361, %v3361
    %v3560 = vpack.c.bf16 %v3452, %v3452
    %v3561 = vpack.c.bf16 %v3543, %v3543
    %v3562 = vld [vmem:[#allocation7] sm:$0xff]
    %v3563 = vld [vmem:[#allocation7 + $0x8] sm:$0xff]
    %v3564 = vld [vmem:[#allocation7 + $0x10] sm:$0xff]
    %v3565 = vld [vmem:[#allocation7 + $0x18] sm:$0xf]
    %v3566 = vld [vmem:[#allocation7 + $0x1c] sm:$0xff]
    %v3567 = vld [vmem:[#allocation7 + $0x24] sm:$0xff]
    %v3568 = vld [vmem:[#allocation7 + $0x2c] sm:$0xff]
    %v3569 = vld [vmem:[#allocation7 + $0x34] sm:$0xf]
    %v3570 = vld [vmem:[#allocation7 + $0x38] sm:$0xff]
    %v3571 = vld [vmem:[#allocation7 + $0x40] sm:$0xff]
    %v3572 = vld [vmem:[#allocation7 + $0x48] sm:$0xff]
    %v3573 = vld [vmem:[#allocation7 + $0x50] sm:$0xf]
    %v3574 = vld [vmem:[#allocation7 + $0x54] sm:$0xff]
    %v3575 = vld [vmem:[#allocation7 + $0x5c] sm:$0xff]
    %v3576 = vld [vmem:[#allocation7 + $0x64] sm:$0xff]
    %v3577 = vld [vmem:[#allocation7 + $0x6c] sm:$0xf]
    %v3578 = vld [vmem:[#allocation7 + $0x70] sm:$0xff]
    %v3579 = vld [vmem:[#allocation7 + $0x78] sm:$0xff]
    %v3580 = vld [vmem:[#allocation7 + $0x80] sm:$0xff]
    %v3581 = vld [vmem:[#allocation7 + $0x88] sm:$0xf]
    %v3582 = vld [vmem:[#allocation7 + $0x8c] sm:$0xff]
    %v3583 = vld [vmem:[#allocation7 + $0x94] sm:$0xff]
    %v3584 = vld [vmem:[#allocation7 + $0x9c] sm:$0xff]
    %v3585 = vld [vmem:[#allocation7 + $0xa4] sm:$0xf]
    %v3586 = vld [vmem:[#allocation7 + $0xa8] sm:$0xff]
    %v3587 = vld [vmem:[#allocation7 + $0xb0] sm:$0xff]
    %v3588 = vld [vmem:[#allocation7 + $0xb8] sm:$0xff]
    %v3589 = vld [vmem:[#allocation7 + $0xc0] sm:$0xf]
    %v3590 = vld [vmem:[#allocation7 + $0xc4] sm:$0xff]
    %v3591 = vld [vmem:[#allocation7 + $0xcc] sm:$0xff]
    %v3592 = vld [vmem:[#allocation7 + $0xd4] sm:$0xff]
    %v3593 = vld [vmem:[#allocation7 + $0xdc] sm:$0xf]
    %v3594 = vld [vmem:[#allocation7 + $0xe0] sm:$0xff]
    %v3595 = vld [vmem:[#allocation7 + $0xe8] sm:$0xff]
    %v3596 = vld [vmem:[#allocation7 + $0xf0] sm:$0xff]
    %v3597 = vld [vmem:[#allocation7 + $0xf8] sm:$0xf]
    %v3598 = vld [vmem:[#allocation7 + $0xfc] sm:$0xff]
    %v3599 = vld [vmem:[#allocation7 + $0x104] sm:$0xff]
    %v3600 = vld [vmem:[#allocation7 + $0x10c] sm:$0xff]
    %v3601 = vld [vmem:[#allocation7 + $0x114] sm:$0xf]
    %v3602 = vld [vmem:[#allocation7 + $0x118] sm:$0xff]
    %v3603 = vld [vmem:[#allocation7 + $0x120] sm:$0xff]
    %v3604 = vld [vmem:[#allocation7 + $0x128] sm:$0xff]
    %v3605 = vld [vmem:[#allocation7 + $0x130] sm:$0xf]
    %v3606 = vld [vmem:[#allocation7 + $0x134] sm:$0xff]
    %v3607 = vld [vmem:[#allocation7 + $0x13c] sm:$0xff]
    %v3608 = vld [vmem:[#allocation7 + $0x144] sm:$0xff]
    %v3609 = vld [vmem:[#allocation7 + $0x14c] sm:$0xf]
    %v3610 = vld [vmem:[#allocation7 + $0x150] sm:$0xff]
    %v3611 = vld [vmem:[#allocation7 + $0x158] sm:$0xff]
    %v3612 = vld [vmem:[#allocation7 + $0x160] sm:$0xff]
    %v3613 = vld [vmem:[#allocation7 + $0x168] sm:$0xf]
    %v3614 = vld [vmem:[#allocation7 + $0x16c] sm:$0xff]
    %v3615 = vld [vmem:[#allocation7 + $0x174] sm:$0xff]
    %v3616 = vld [vmem:[#allocation7 + $0x17c] sm:$0xff]
    %v3617 = vld [vmem:[#allocation7 + $0x184] sm:$0xf]
    %v3618 = vld [vmem:[#allocation7 + $0x188] sm:$0xff]
    %v3619 = vld [vmem:[#allocation7 + $0x190] sm:$0xff]
    %v3620 = vld [vmem:[#allocation7 + $0x198] sm:$0xff]
    %v3621 = vld [vmem:[#allocation7 + $0x1a0] sm:$0xf]
    %v3622 = vld [vmem:[#allocation7 + $0x1a4] sm:$0xff]
    %v3623 = vld [vmem:[#allocation7 + $0x1ac] sm:$0xff]
    %v3624 = vld [vmem:[#allocation7 + $0x1b4] sm:$0xff]
    %v3625 = vld [vmem:[#allocation7 + $0x1bc] sm:$0xf]
    %v3626 = vld [vmem:[#allocation7 + $0x1c0] sm:$0xff]
    %v3627 = vld [vmem:[#allocation7 + $0x1c8] sm:$0xff]
    %v3628 = vld [vmem:[#allocation7 + $0x1d0] sm:$0xff]
    %v3629 = vld [vmem:[#allocation7 + $0x1d8] sm:$0xf]
    %v3630 = vld [vmem:[#allocation7 + $0x1dc] sm:$0xff]
    %v3631 = vld [vmem:[#allocation7 + $0x1e4] sm:$0xff]
    %v3632 = vld [vmem:[#allocation7 + $0x1ec] sm:$0xff]
    %v3633 = vld [vmem:[#allocation7 + $0x1f4] sm:$0xf]
    %v3634 = vld [vmem:[#allocation7 + $0x1f8] sm:$0xff]
    %v3635 = vld [vmem:[#allocation7 + $0x200] sm:$0xff]
    %v3636 = vld [vmem:[#allocation7 + $0x208] sm:$0xff]
    %v3637 = vld [vmem:[#allocation7 + $0x210] sm:$0xf]
    %v3638 = vld [vmem:[#allocation7 + $0x214] sm:$0xff]
    %v3639 = vld [vmem:[#allocation7 + $0x21c] sm:$0xff]
    %v3640 = vld [vmem:[#allocation7 + $0x224] sm:$0xff]
    %v3641 = vld [vmem:[#allocation7 + $0x22c] sm:$0xf]
    %v3642 = vld [vmem:[#allocation7 + $0x230] sm:$0xff]
    %v3643 = vld [vmem:[#allocation7 + $0x238] sm:$0xff]
    %v3644 = vld [vmem:[#allocation7 + $0x240] sm:$0xff]
    %v3645 = vld [vmem:[#allocation7 + $0x248] sm:$0xf]
    %v3646 = vld [vmem:[#allocation7 + $0x24c] sm:$0xff]
    %v3647 = vld [vmem:[#allocation7 + $0x254] sm:$0xff]
    %v3648 = vld [vmem:[#allocation7 + $0x25c] sm:$0xff]
    %v3649 = vld [vmem:[#allocation7 + $0x264] sm:$0xf]
    %v3650 = vld [vmem:[#allocation7 + $0x268] sm:$0xff]
    %v3651 = vld [vmem:[#allocation7 + $0x270] sm:$0xff]
    %v3652 = vld [vmem:[#allocation7 + $0x278] sm:$0xff]
    %v3653 = vld [vmem:[#allocation7 + $0x280] sm:$0xf]
    %v3654 = vld [vmem:[#allocation7 + $0x284] sm:$0xff]
    %v3655 = vld [vmem:[#allocation7 + $0x28c] sm:$0xff]
    %v3656 = vld [vmem:[#allocation7 + $0x294] sm:$0xff]
    %v3657 = vld [vmem:[#allocation7 + $0x29c] sm:$0xf]
    %v3658 = vld [vmem:[#allocation7 + $0x2a0] sm:$0xff]
    %v3659 = vld [vmem:[#allocation7 + $0x2a8] sm:$0xff]
    %v3660 = vld [vmem:[#allocation7 + $0x2b0] sm:$0xff]
    %v3661 = vld [vmem:[#allocation7 + $0x2b8] sm:$0xf]
    %v3662 = vld [vmem:[#allocation7 + $0x2bc] sm:$0xff]
    %v3663 = vld [vmem:[#allocation7 + $0x2c4] sm:$0xff]
    %v3664 = vld [vmem:[#allocation7 + $0x2cc] sm:$0xff]
    %v3665 = vld [vmem:[#allocation7 + $0x2d4] sm:$0xf]
    %v3666 = vld [vmem:[#allocation7 + $0x2d8] sm:$0xff]
    %v3667 = vld [vmem:[#allocation7 + $0x2e0] sm:$0xff]
    %v3668 = vld [vmem:[#allocation7 + $0x2e8] sm:$0xff]
    %v3669 = vld [vmem:[#allocation7 + $0x2f0] sm:$0xf]
    %v3670 = vld [vmem:[#allocation7 + $0x2f4] sm:$0xff]
    %v3671 = vld [vmem:[#allocation7 + $0x2fc] sm:$0xff]
    %v3672 = vld [vmem:[#allocation7 + $0x304] sm:$0xff]
    %v3673 = vld [vmem:[#allocation7 + $0x30c] sm:$0xf]
    %v3674 = vld [vmem:[#allocation7 + $0x310] sm:$0xff]
    %v3675 = vld [vmem:[#allocation7 + $0x318] sm:$0xff]
    %v3676 = vld [vmem:[#allocation7 + $0x320] sm:$0xff]
    %v3677 = vld [vmem:[#allocation7 + $0x328] sm:$0xf]
    %v3678 = vld [vmem:[#allocation7 + $0x32c] sm:$0xff]
    %v3679 = vld [vmem:[#allocation7 + $0x334] sm:$0xff]
    %v3680 = vld [vmem:[#allocation7 + $0x33c] sm:$0xff]
    %v3681 = vld [vmem:[#allocation7 + $0x344] sm:$0xf]
    %v3682 = vld [vmem:[#allocation7 + $0x348] sm:$0xff]
    %v3683 = vld [vmem:[#allocation7 + $0x350] sm:$0xff]
    %v3684 = vld [vmem:[#allocation7 + $0x358] sm:$0xff]
    %v3685 = vld [vmem:[#allocation7 + $0x360] sm:$0xf]
    %v3686 = vld [vmem:[#allocation7 + $0x364] sm:$0xff]
    %v3687 = vld [vmem:[#allocation7 + $0x36c] sm:$0xff]
    %v3688 = vld [vmem:[#allocation7 + $0x374] sm:$0xff]
    %v3689 = vld [vmem:[#allocation7 + $0x37c] sm:$0xf]
    %v3690 = vld [vmem:[#allocation7 + $0x380] sm:$0xff]
    %v3691 = vld [vmem:[#allocation7 + $0x388] sm:$0xff]
    %v3692 = vld [vmem:[#allocation7 + $0x390] sm:$0xff]
    %v3693 = vld [vmem:[#allocation7 + $0x398] sm:$0xf]
    %v3694 = vld [vmem:[#allocation7 + $0x39c] sm:$0xff]
    %v3695 = vld [vmem:[#allocation7 + $0x3a4] sm:$0xff]
    %v3696 = vld [vmem:[#allocation7 + $0x3ac] sm:$0xff]
    %v3697 = vld [vmem:[#allocation7 + $0x3b4] sm:$0xf]
    %v3698 = vld [vmem:[#allocation7 + $0x3b8] sm:$0xff]
    %v3699 = vld [vmem:[#allocation7 + $0x3c0] sm:$0xff]
    %v3700 = vld [vmem:[#allocation7 + $0x3c8] sm:$0xff]
    %v3701 = vld [vmem:[#allocation7 + $0x3d0] sm:$0xf]
    %v3702 = vld [vmem:[#allocation7 + $0x3d4] sm:$0xff]
    %v3703 = vld [vmem:[#allocation7 + $0x3dc] sm:$0xff]
    %v3704 = vld [vmem:[#allocation7 + $0x3e4] sm:$0xff]
    %v3705 = vld [vmem:[#allocation7 + $0x3ec] sm:$0xf]
    %v3706 = vld [vmem:[#allocation7 + $0x3f0] sm:$0xff]
    %v3707 = vld [vmem:[#allocation7 + $0x3f8] sm:$0xff]
    %v3708 = vld [vmem:[#allocation7 + $0x400] sm:$0xff]
    %v3709 = vld [vmem:[#allocation7 + $0x408] sm:$0xf]
    %v3710 = vld [vmem:[#allocation7 + $0x40c] sm:$0xff]
    %v3711 = vld [vmem:[#allocation7 + $0x414] sm:$0xff]
    %v3712 = vld [vmem:[#allocation7 + $0x41c] sm:$0xff]
    %v3713 = vld [vmem:[#allocation7 + $0x424] sm:$0xf]
    %v3714 = vld [vmem:[#allocation7 + $0x428] sm:$0xff]
    %v3715 = vld [vmem:[#allocation7 + $0x430] sm:$0xff]
    %v3716 = vld [vmem:[#allocation7 + $0x438] sm:$0xff]
    %v3717 = vld [vmem:[#allocation7 + $0x440] sm:$0xf]
    %v3718 = vld [vmem:[#allocation7 + $0x444] sm:$0xff]
    %v3719 = vld [vmem:[#allocation7 + $0x44c] sm:$0xff]
    %v3720 = vld [vmem:[#allocation7 + $0x454] sm:$0xff]
    %v3721 = vld [vmem:[#allocation7 + $0x45c] sm:$0xf]
    %v3722 = vld [vmem:[#allocation7 + $0x460] sm:$0xff]
    %v3723 = vld [vmem:[#allocation7 + $0x468] sm:$0xff]
    %v3724 = vld [vmem:[#allocation7 + $0x470] sm:$0xff]
    %v3725 = vld [vmem:[#allocation7 + $0x478] sm:$0xf]
    %v3726 = vld [vmem:[#allocation7 + $0x47c] sm:$0xff]
    %v3727 = vld [vmem:[#allocation7 + $0x484] sm:$0xff]
    %v3728 = vld [vmem:[#allocation7 + $0x48c] sm:$0xff]
    %v3729 = vld [vmem:[#allocation7 + $0x494] sm:$0xf]
    %v3730 = vld [vmem:[#allocation7 + $0x498] sm:$0xff]
    %v3731 = vld [vmem:[#allocation7 + $0x4a0] sm:$0xff]
    %v3732 = vld [vmem:[#allocation7 + $0x4a8] sm:$0xff]
    %v3733 = vld [vmem:[#allocation7 + $0x4b0] sm:$0xf]
    %v3734 = vld [vmem:[#allocation7 + $0x4b4] sm:$0xff]
    %v3735 = vld [vmem:[#allocation7 + $0x4bc] sm:$0xff]
    %v3736 = vld [vmem:[#allocation7 + $0x4c4] sm:$0xff]
    %v3737 = vld [vmem:[#allocation7 + $0x4cc] sm:$0xf]
    %v3738 = vld [vmem:[#allocation7 + $0x4d0] sm:$0xff]
    %v3739 = vld [vmem:[#allocation7 + $0x4d8] sm:$0xff]
    %v3740 = vld [vmem:[#allocation7 + $0x4e0] sm:$0xff]
    %v3741 = vld [vmem:[#allocation7 + $0x4e8] sm:$0xf]
    %v3742 = vld [vmem:[#allocation7 + $0x4ec] sm:$0xff]
    %v3743 = vld [vmem:[#allocation7 + $0x4f4] sm:$0xff]
    %v3744 = vld [vmem:[#allocation7 + $0x4fc] sm:$0xff]
    %v3745 = vld [vmem:[#allocation7 + $0x504] sm:$0xf]
    %v3746 = vld [vmem:[#allocation7 + $0x508] sm:$0xff]
    %v3747 = vld [vmem:[#allocation7 + $0x510] sm:$0xff]
    %v3748 = vld [vmem:[#allocation7 + $0x518] sm:$0xff]
    %v3749 = vld [vmem:[#allocation7 + $0x520] sm:$0xf]
    %v3750 = vld [vmem:[#allocation7 + $0x524] sm:$0xff]
    %v3751 = vld [vmem:[#allocation7 + $0x52c] sm:$0xff]
    %v3752 = vld [vmem:[#allocation7 + $0x534] sm:$0xff]
    %v3753 = vld [vmem:[#allocation7 + $0x53c] sm:$0xf]
    %v3754 = vld [vmem:[#allocation7 + $0x540] sm:$0xff]
    %v3755 = vld [vmem:[#allocation7 + $0x548] sm:$0xff]
    %v3756 = vld [vmem:[#allocation7 + $0x550] sm:$0xff]
    %v3757 = vld [vmem:[#allocation7 + $0x558] sm:$0xf]
    %v3758 = vld [vmem:[#allocation7 + $0x55c] sm:$0xff]
    %v3759 = vld [vmem:[#allocation7 + $0x564] sm:$0xff]
    %v3760 = vld [vmem:[#allocation7 + $0x56c] sm:$0xff]
    %v3761 = vld [vmem:[#allocation7 + $0x574] sm:$0xf]
    %v3762 = vld [vmem:[#allocation7 + $0x578] sm:$0xff]
    %v3763 = vld [vmem:[#allocation7 + $0x580] sm:$0xff]
    %v3764 = vld [vmem:[#allocation7 + $0x588] sm:$0xff]
    %v3765 = vld [vmem:[#allocation7 + $0x590] sm:$0xf]
    %v3766 = vld [vmem:[#allocation7 + $0x594] sm:$0xff]
    %v3767 = vld [vmem:[#allocation7 + $0x59c] sm:$0xff]
    %v3768 = vld [vmem:[#allocation7 + $0x5a4] sm:$0xff]
    %v3769 = vld [vmem:[#allocation7 + $0x5ac] sm:$0xf]
    %v3770 = vld [vmem:[#allocation7 + $0x5b0] sm:$0xff]
    %v3771 = vld [vmem:[#allocation7 + $0x5b8] sm:$0xff]
    %v3772 = vld [vmem:[#allocation7 + $0x5c0] sm:$0xff]
    %v3773 = vld [vmem:[#allocation7 + $0x5c8] sm:$0xf]
    %v3774 = vld [vmem:[#allocation7 + $0x5cc] sm:$0xff]
    %v3775 = vld [vmem:[#allocation7 + $0x5d4] sm:$0xff]
    %v3776 = vld [vmem:[#allocation7 + $0x5dc] sm:$0xff]
    %v3777 = vld [vmem:[#allocation7 + $0x5e4] sm:$0xf]
    %v3778 = vld [vmem:[#allocation7 + $0x5e8] sm:$0xff]
    %v3779 = vld [vmem:[#allocation7 + $0x5f0] sm:$0xff]
    %v3780 = vld [vmem:[#allocation7 + $0x5f8] sm:$0xff]
    %v3781 = vld [vmem:[#allocation7 + $0x600] sm:$0xf]
    %v3782 = vld [vmem:[#allocation7 + $0x604] sm:$0xff]
    %v3783 = vld [vmem:[#allocation7 + $0x60c] sm:$0xff]
    %v3784 = vld [vmem:[#allocation7 + $0x614] sm:$0xff]
    %v3785 = vld [vmem:[#allocation7 + $0x61c] sm:$0xf]
    %v3786 = vld [vmem:[#allocation7 + $0x620] sm:$0xff]
    %v3787 = vld [vmem:[#allocation7 + $0x628] sm:$0xff]
    %v3788 = vld [vmem:[#allocation7 + $0x630] sm:$0xff]
    %v3789 = vld [vmem:[#allocation7 + $0x638] sm:$0xf]
    %v3790 = vld [vmem:[#allocation7 + $0x63c] sm:$0xff]
    %v3791 = vld [vmem:[#allocation7 + $0x644] sm:$0xff]
    %v3792 = vld [vmem:[#allocation7 + $0x64c] sm:$0xff]
    %v3793 = vld [vmem:[#allocation7 + $0x654] sm:$0xf]
    %v3794 = vld [vmem:[#allocation7 + $0x658] sm:$0xff]
    %v3795 = vld [vmem:[#allocation7 + $0x660] sm:$0xff]
    %v3796 = vld [vmem:[#allocation7 + $0x668] sm:$0xff]
    %v3797 = vld [vmem:[#allocation7 + $0x670] sm:$0xf]
    %v3798 = vld [vmem:[#allocation7 + $0x674] sm:$0xff]
    %v3799 = vld [vmem:[#allocation7 + $0x67c] sm:$0xff]
    %v3800 = vld [vmem:[#allocation7 + $0x684] sm:$0xff]
    %v3801 = vld [vmem:[#allocation7 + $0x68c] sm:$0xf]
    %v3802 = vld [vmem:[#allocation7 + $0x690] sm:$0xff]
    %v3803 = vld [vmem:[#allocation7 + $0x698] sm:$0xff]
    %v3804 = vld [vmem:[#allocation7 + $0x6a0] sm:$0xff]
    %v3805 = vld [vmem:[#allocation7 + $0x6a8] sm:$0xf]
    %v3806 = vld [vmem:[#allocation7 + $0x6ac] sm:$0xff]
    %v3807 = vld [vmem:[#allocation7 + $0x6b4] sm:$0xff]
    %v3808 = vld [vmem:[#allocation7 + $0x6bc] sm:$0xff]
    %v3809 = vld [vmem:[#allocation7 + $0x6c4] sm:$0xf]
    %v3810 = vld [vmem:[#allocation7 + $0x6c8] sm:$0xff]
    %v3811 = vld [vmem:[#allocation7 + $0x6d0] sm:$0xff]
    %v3812 = vld [vmem:[#allocation7 + $0x6d8] sm:$0xff]
    %v3813 = vld [vmem:[#allocation7 + $0x6e0] sm:$0xf]
    %v3814 = vld [vmem:[#allocation7 + $0x6e4] sm:$0xff]
    %v3815 = vld [vmem:[#allocation7 + $0x6ec] sm:$0xff]
    %v3816 = vld [vmem:[#allocation7 + $0x6f4] sm:$0xff]
    %v3817 = vld [vmem:[#allocation7 + $0x6fc] sm:$0xf]
    %v3818 = vld [vmem:[#allocation7 + $0x700] sm:$0xff]
    %v3819 = vld [vmem:[#allocation7 + $0x708] sm:$0xff]
    %v3820 = vld [vmem:[#allocation7 + $0x710] sm:$0xff]
    %v3821 = vld [vmem:[#allocation7 + $0x718] sm:$0xf]
    %v3822 = vld [vmem:[#allocation7 + $0x71c] sm:$0xff]
    %v3823 = vld [vmem:[#allocation7 + $0x724] sm:$0xff]
    %v3824 = vld [vmem:[#allocation7 + $0x72c] sm:$0xff]
    %v3825 = vld [vmem:[#allocation7 + $0x734] sm:$0xf]
    %v3826 = vld [vmem:[#allocation7 + $0x738] sm:$0xff]
    %v3827 = vld [vmem:[#allocation7 + $0x740] sm:$0xff]
    %v3828 = vld [vmem:[#allocation7 + $0x748] sm:$0xff]
    %v3829 = vld [vmem:[#allocation7 + $0x750] sm:$0xf]
    %v3830 = vld [vmem:[#allocation7 + $0x754] sm:$0xff]
    %v3831 = vld [vmem:[#allocation7 + $0x75c] sm:$0xff]
    %v3832 = vld [vmem:[#allocation7 + $0x764] sm:$0xff]
    %v3833 = vld [vmem:[#allocation7 + $0x76c] sm:$0xf]
    %v3834 = vld [vmem:[#allocation7 + $0x770] sm:$0xff]
    %v3835 = vld [vmem:[#allocation7 + $0x778] sm:$0xff]
    %v3836 = vld [vmem:[#allocation7 + $0x780] sm:$0xff]
    %v3837 = vld [vmem:[#allocation7 + $0x788] sm:$0xf]
    %v3838 = vld [vmem:[#allocation7 + $0x78c] sm:$0xff]
    %v3839 = vld [vmem:[#allocation7 + $0x794] sm:$0xff]
    %v3840 = vld [vmem:[#allocation7 + $0x79c] sm:$0xff]
    %v3841 = vld [vmem:[#allocation7 + $0x7a4] sm:$0xf]
    %v3842 = vld [vmem:[#allocation7 + $0x7a8] sm:$0xff]
    %v3843 = vld [vmem:[#allocation7 + $0x7b0] sm:$0xff]
    %v3844 = vld [vmem:[#allocation7 + $0x7b8] sm:$0xff]
    %v3845 = vld [vmem:[#allocation7 + $0x7c0] sm:$0xf]
    %v3846 = vld [vmem:[#allocation7 + $0x7c4] sm:$0xff]
    %v3847 = vld [vmem:[#allocation7 + $0x7cc] sm:$0xff]
    %v3848 = vld [vmem:[#allocation7 + $0x7d4] sm:$0xff]
    %v3849 = vld [vmem:[#allocation7 + $0x7dc] sm:$0xf]
    %v3850 = vld [vmem:[#allocation7 + $0x7e0] sm:$0xff]
    %v3851 = vld [vmem:[#allocation7 + $0x7e8] sm:$0xff]
    %v3852 = vld [vmem:[#allocation7 + $0x7f0] sm:$0xff]
    %v3853 = vld [vmem:[#allocation7 + $0x7f8] sm:$0xf]
    %v3854 = vld [vmem:[#allocation7 + $0x7fc] sm:$0xff]
    %v3855 = vld [vmem:[#allocation7 + $0x804] sm:$0xff]
    %v3856 = vld [vmem:[#allocation7 + $0x80c] sm:$0xff]
    %v3857 = vld [vmem:[#allocation7 + $0x814] sm:$0xf]
    %v3858 = vld [vmem:[#allocation7 + $0x818] sm:$0xff]
    %v3859 = vld [vmem:[#allocation7 + $0x820] sm:$0xff]
    %v3860 = vld [vmem:[#allocation7 + $0x828] sm:$0xff]
    %v3861 = vld [vmem:[#allocation7 + $0x830] sm:$0xf]
    %v3862 = vld [vmem:[#allocation7 + $0x834] sm:$0xff]
    %v3863 = vld [vmem:[#allocation7 + $0x83c] sm:$0xff]
    %v3864 = vld [vmem:[#allocation7 + $0x844] sm:$0xff]
    %v3865 = vld [vmem:[#allocation7 + $0x84c] sm:$0xf]
    %v3866 = vld [vmem:[#allocation7 + $0x850] sm:$0xff]
    %v3867 = vld [vmem:[#allocation7 + $0x858] sm:$0xff]
    %v3868 = vld [vmem:[#allocation7 + $0x860] sm:$0xff]
    %v3869 = vld [vmem:[#allocation7 + $0x868] sm:$0xf]
    %v3870 = vld [vmem:[#allocation7 + $0x86c] sm:$0xff]
    %v3871 = vld [vmem:[#allocation7 + $0x874] sm:$0xff]
    %v3872 = vld [vmem:[#allocation7 + $0x87c] sm:$0xff]
    %v3873 = vld [vmem:[#allocation7 + $0x884] sm:$0xf]
    %v3874 = vld [vmem:[#allocation7 + $0x888] sm:$0xff]
    %v3875 = vld [vmem:[#allocation7 + $0x890] sm:$0xff]
    %v3876 = vld [vmem:[#allocation7 + $0x898] sm:$0xff]
    %v3877 = vld [vmem:[#allocation7 + $0x8a0] sm:$0xf]
    %v3878 = vld [vmem:[#allocation7 + $0x8a4] sm:$0xff]
    %v3879 = vld [vmem:[#allocation7 + $0x8ac] sm:$0xff]
    %v3880 = vld [vmem:[#allocation7 + $0x8b4] sm:$0xff]
    %v3881 = vld [vmem:[#allocation7 + $0x8bc] sm:$0xf]
    %v3882 = vld [vmem:[#allocation7 + $0x8c0] sm:$0xff]
    %v3883 = vld [vmem:[#allocation7 + $0x8c8] sm:$0xff]
    %v3884 = vld [vmem:[#allocation7 + $0x8d0] sm:$0xff]
    %v3885 = vld [vmem:[#allocation7 + $0x8d8] sm:$0xf]
    %v3886 = vld [vmem:[#allocation7 + $0x8dc] sm:$0xff]
    %v3887 = vld [vmem:[#allocation7 + $0x8e4] sm:$0xff]
    %v3888 = vld [vmem:[#allocation7 + $0x8ec] sm:$0xff]
    %v3889 = vld [vmem:[#allocation7 + $0x8f4] sm:$0xf]
    %v3890 = vld [vmem:[#allocation7 + $0x8f8] sm:$0xff]
    %v3891 = vld [vmem:[#allocation7 + $0x900] sm:$0xff]
    %v3892 = vld [vmem:[#allocation7 + $0x908] sm:$0xff]
    %v3893 = vld [vmem:[#allocation7 + $0x910] sm:$0xf]
    %v3894 = vld [vmem:[#allocation7 + $0x914] sm:$0xff]
    %v3895 = vld [vmem:[#allocation7 + $0x91c] sm:$0xff]
    %v3896 = vld [vmem:[#allocation7 + $0x924] sm:$0xff]
    %v3897 = vld [vmem:[#allocation7 + $0x92c] sm:$0xf]
    %v3898 = vld [vmem:[#allocation7 + $0x930] sm:$0xff]
    %v3899 = vld [vmem:[#allocation7 + $0x938] sm:$0xff]
    %v3900 = vld [vmem:[#allocation7 + $0x940] sm:$0xff]
    %v3901 = vld [vmem:[#allocation7 + $0x948] sm:$0xf]
    %v3902 = vld [vmem:[#allocation7 + $0x94c] sm:$0xff]
    %v3903 = vld [vmem:[#allocation7 + $0x954] sm:$0xff]
    %v3904 = vld [vmem:[#allocation7 + $0x95c] sm:$0xff]
    %v3905 = vld [vmem:[#allocation7 + $0x964] sm:$0xf]
    %v3906 = vld [vmem:[#allocation7 + $0x968] sm:$0xff]
    %v3907 = vld [vmem:[#allocation7 + $0x970] sm:$0xff]
    %v3908 = vld [vmem:[#allocation7 + $0x978] sm:$0xff]
    %v3909 = vld [vmem:[#allocation7 + $0x980] sm:$0xf]
    %v3910 = vld [vmem:[#allocation7 + $0x984] sm:$0xff]
    %v3911 = vld [vmem:[#allocation7 + $0x98c] sm:$0xff]
    %v3912 = vld [vmem:[#allocation7 + $0x994] sm:$0xff]
    %v3913 = vld [vmem:[#allocation7 + $0x99c] sm:$0xf]
    %v3914 = vld [vmem:[#allocation7 + $0x9a0] sm:$0xff]
    %v3915 = vld [vmem:[#allocation7 + $0x9a8] sm:$0xff]
    %v3916 = vld [vmem:[#allocation7 + $0x9b0] sm:$0xff]
    %v3917 = vld [vmem:[#allocation7 + $0x9b8] sm:$0xf]
    %v3918 = vld [vmem:[#allocation7 + $0x9bc] sm:$0xff]
    %v3919 = vld [vmem:[#allocation7 + $0x9c4] sm:$0xff]
    %v3920 = vld [vmem:[#allocation7 + $0x9cc] sm:$0xff]
    %v3921 = vld [vmem:[#allocation7 + $0x9d4] sm:$0xf]
    %v3922 = vld [vmem:[#allocation7 + $0x9d8] sm:$0xff]
    %v3923 = vld [vmem:[#allocation7 + $0x9e0] sm:$0xff]
    %v3924 = vld [vmem:[#allocation7 + $0x9e8] sm:$0xff]
    %v3925 = vld [vmem:[#allocation7 + $0x9f0] sm:$0xf]
    %v3926 = vld [vmem:[#allocation7 + $0x9f4] sm:$0xff]
    %v3927 = vld [vmem:[#allocation7 + $0x9fc] sm:$0xff]
    %v3928 = vld [vmem:[#allocation7 + $0xa04] sm:$0xff]
    %v3929 = vld [vmem:[#allocation7 + $0xa0c] sm:$0xf]
    %v3930 = vld [vmem:[#allocation7 + $0xa10] sm:$0xff]
    %v3931 = vld [vmem:[#allocation7 + $0xa18] sm:$0xff]
    %v3932 = vld [vmem:[#allocation7 + $0xa20] sm:$0xff]
    %v3933 = vld [vmem:[#allocation7 + $0xa28] sm:$0xf]
    %v3934 = vld [vmem:[#allocation7 + $0xa2c] sm:$0xff]
    %v3935 = vld [vmem:[#allocation7 + $0xa34] sm:$0xff]
    %v3936 = vld [vmem:[#allocation7 + $0xa3c] sm:$0xff]
    %v3937 = vld [vmem:[#allocation7 + $0xa44] sm:$0xf]
    %v3938 = vld [vmem:[#allocation7 + $0xa48] sm:$0xff]
    %v3939 = vld [vmem:[#allocation7 + $0xa50] sm:$0xff]
    %v3940 = vld [vmem:[#allocation7 + $0xa58] sm:$0xff]
    %v3941 = vld [vmem:[#allocation7 + $0xa60] sm:$0xf]
    %v3942 = vld [vmem:[#allocation7 + $0xa64] sm:$0xff]
    %v3943 = vld [vmem:[#allocation7 + $0xa6c] sm:$0xff]
    %v3944 = vld [vmem:[#allocation7 + $0xa74] sm:$0xff]
    %v3945 = vld [vmem:[#allocation7 + $0xa7c] sm:$0xf]
    %v3946 = vld [vmem:[#allocation7 + $0xa80] sm:$0xff]
    %v3947 = vld [vmem:[#allocation7 + $0xa88] sm:$0xff]
    %v3948 = vld [vmem:[#allocation7 + $0xa90] sm:$0xff]
    %v3949 = vld [vmem:[#allocation7 + $0xa98] sm:$0xf]
    %v3950 = vld [vmem:[#allocation7 + $0xa9c] sm:$0xff]
    %v3951 = vld [vmem:[#allocation7 + $0xaa4] sm:$0xff]
    %v3952 = vld [vmem:[#allocation7 + $0xaac] sm:$0xff]
    %v3953 = vld [vmem:[#allocation7 + $0xab4] sm:$0xf]
    %v3954 = vld [vmem:[#allocation7 + $0xab8] sm:$0xff]
    %v3955 = vld [vmem:[#allocation7 + $0xac0] sm:$0xff]
    %v3956 = vld [vmem:[#allocation7 + $0xac8] sm:$0xff]
    %v3957 = vld [vmem:[#allocation7 + $0xad0] sm:$0xf]
    %v3958 = vld [vmem:[#allocation7 + $0xad4] sm:$0xff]
    %v3959 = vld [vmem:[#allocation7 + $0xadc] sm:$0xff]
    %v3960 = vld [vmem:[#allocation7 + $0xae4] sm:$0xff]
    %v3961 = vld [vmem:[#allocation7 + $0xaec] sm:$0xf]
    %v3962 = vld [vmem:[#allocation7 + $0xaf0] sm:$0xff]
    %v3963 = vld [vmem:[#allocation7 + $0xaf8] sm:$0xff]
    %v3964 = vld [vmem:[#allocation7 + $0xb00] sm:$0xff]
    %v3965 = vld [vmem:[#allocation7 + $0xb08] sm:$0xf]
    %v3966 = vld [vmem:[#allocation7 + $0xb0c] sm:$0xff]
    %v3967 = vld [vmem:[#allocation7 + $0xb14] sm:$0xff]
    %v3968 = vld [vmem:[#allocation7 + $0xb1c] sm:$0xff]
    %v3969 = vld [vmem:[#allocation7 + $0xb24] sm:$0xf]
    %v3970 = vld [vmem:[#allocation7 + $0xb28] sm:$0xff]
    %v3971 = vld [vmem:[#allocation7 + $0xb30] sm:$0xff]
    %v3972 = vld [vmem:[#allocation7 + $0xb38] sm:$0xff]
    %v3973 = vld [vmem:[#allocation7 + $0xb40] sm:$0xf]
    %v3974 = vld [vmem:[#allocation7 + $0xb44] sm:$0xff]
    %v3975 = vld [vmem:[#allocation7 + $0xb4c] sm:$0xff]
    %v3976 = vld [vmem:[#allocation7 + $0xb54] sm:$0xff]
    %v3977 = vld [vmem:[#allocation7 + $0xb5c] sm:$0xf]
    %v3978 = vld [vmem:[#allocation7 + $0xb60] sm:$0xff]
    %v3979 = vld [vmem:[#allocation7 + $0xb68] sm:$0xff]
    %v3980 = vld [vmem:[#allocation7 + $0xb70] sm:$0xff]
    %v3981 = vld [vmem:[#allocation7 + $0xb78] sm:$0xf]
    %v3982 = vld [vmem:[#allocation7 + $0xb7c] sm:$0xff]
    %v3983 = vld [vmem:[#allocation7 + $0xb84] sm:$0xff]
    %v3984 = vld [vmem:[#allocation7 + $0xb8c] sm:$0xff]
    %v3985 = vld [vmem:[#allocation7 + $0xb94] sm:$0xf]
    %v3986 = vld [vmem:[#allocation7 + $0xb98] sm:$0xff]
    %v3987 = vld [vmem:[#allocation7 + $0xba0] sm:$0xff]
    %v3988 = vld [vmem:[#allocation7 + $0xba8] sm:$0xff]
    %v3989 = vld [vmem:[#allocation7 + $0xbb0] sm:$0xf]
    %v3990 = vld [vmem:[#allocation7 + $0xbb4] sm:$0xff]
    %v3991 = vld [vmem:[#allocation7 + $0xbbc] sm:$0xff]
    %v3992 = vld [vmem:[#allocation7 + $0xbc4] sm:$0xff]
    %v3993 = vld [vmem:[#allocation7 + $0xbcc] sm:$0xf]
    %v3994 = vld [vmem:[#allocation7 + $0xbd0] sm:$0xff]
    %v3995 = vld [vmem:[#allocation7 + $0xbd8] sm:$0xff]
    %v3996 = vld [vmem:[#allocation7 + $0xbe0] sm:$0xff]
    %v3997 = vld [vmem:[#allocation7 + $0xbe8] sm:$0xf]
    %v3998 = vld [vmem:[#allocation7 + $0xbec] sm:$0xff]
    %v3999 = vld [vmem:[#allocation7 + $0xbf4] sm:$0xff]
    %v4000 = vld [vmem:[#allocation7 + $0xbfc] sm:$0xff]
    %v4001 = vld [vmem:[#allocation7 + $0xc04] sm:$0xf]
    %v4002 = vld [vmem:[#allocation7 + $0xc08] sm:$0xff]
    %v4003 = vld [vmem:[#allocation7 + $0xc10] sm:$0xff]
    %v4004 = vld [vmem:[#allocation7 + $0xc18] sm:$0xff]
    %v4005 = vld [vmem:[#allocation7 + $0xc20] sm:$0xf]
    %v4006 = vld [vmem:[#allocation7 + $0xc24] sm:$0xff]
    %v4007 = vld [vmem:[#allocation7 + $0xc2c] sm:$0xff]
    %v4008 = vld [vmem:[#allocation7 + $0xc34] sm:$0xff]
    %v4009 = vld [vmem:[#allocation7 + $0xc3c] sm:$0xf]
    %v4010 = vld [vmem:[#allocation7 + $0xc40] sm:$0xff]
    %v4011 = vld [vmem:[#allocation7 + $0xc48] sm:$0xff]
    %v4012 = vld [vmem:[#allocation7 + $0xc50] sm:$0xff]
    %v4013 = vld [vmem:[#allocation7 + $0xc58] sm:$0xf]
    %v4014 = vld [vmem:[#allocation7 + $0xc5c] sm:$0xff]
    %v4015 = vld [vmem:[#allocation7 + $0xc64] sm:$0xff]
    %v4016 = vld [vmem:[#allocation7 + $0xc6c] sm:$0xff]
    %v4017 = vld [vmem:[#allocation7 + $0xc74] sm:$0xf]
    %v4018 = vld [vmem:[#allocation7 + $0xc78] sm:$0xff]
    %v4019 = vld [vmem:[#allocation7 + $0xc80] sm:$0xff]
    %v4020 = vld [vmem:[#allocation7 + $0xc88] sm:$0xff]
    %v4021 = vld [vmem:[#allocation7 + $0xc90] sm:$0xf]
    %v4022 = vld [vmem:[#allocation7 + $0xc94] sm:$0xff]
    %v4023 = vld [vmem:[#allocation7 + $0xc9c] sm:$0xff]
    %v4024 = vld [vmem:[#allocation7 + $0xca4] sm:$0xff]
    %v4025 = vld [vmem:[#allocation7 + $0xcac] sm:$0xf]
    %v4026 = vld [vmem:[#allocation7 + $0xcb0] sm:$0xff]
    %v4027 = vld [vmem:[#allocation7 + $0xcb8] sm:$0xff]
    %v4028 = vld [vmem:[#allocation7 + $0xcc0] sm:$0xff]
    %v4029 = vld [vmem:[#allocation7 + $0xcc8] sm:$0xf]
    %v4030 = vld [vmem:[#allocation7 + $0xccc] sm:$0xff]
    %v4031 = vld [vmem:[#allocation7 + $0xcd4] sm:$0xff]
    %v4032 = vld [vmem:[#allocation7 + $0xcdc] sm:$0xff]
    %v4033 = vld [vmem:[#allocation7 + $0xce4] sm:$0xf]
    %v4034 = vld [vmem:[#allocation7 + $0xce8] sm:$0xff]
    %v4035 = vld [vmem:[#allocation7 + $0xcf0] sm:$0xff]
    %v4036 = vld [vmem:[#allocation7 + $0xcf8] sm:$0xff]
    %v4037 = vld [vmem:[#allocation7 + $0xd00] sm:$0xf]
    %v4038 = vld [vmem:[#allocation7 + $0xd04] sm:$0xff]
    %v4039 = vld [vmem:[#allocation7 + $0xd0c] sm:$0xff]
    %v4040 = vld [vmem:[#allocation7 + $0xd14] sm:$0xff]
    %v4041 = vld [vmem:[#allocation7 + $0xd1c] sm:$0xf]
    %v4042 = vld [vmem:[#allocation7 + $0xd20] sm:$0xff]
    %v4043 = vld [vmem:[#allocation7 + $0xd28] sm:$0xff]
    %v4044 = vld [vmem:[#allocation7 + $0xd30] sm:$0xff]
    %v4045 = vld [vmem:[#allocation7 + $0xd38] sm:$0xf]
    %v4046 = vld [vmem:[#allocation7 + $0xd3c] sm:$0xff]
    %v4047 = vld [vmem:[#allocation7 + $0xd44] sm:$0xff]
    %v4048 = vld [vmem:[#allocation7 + $0xd4c] sm:$0xff]
    %v4049 = vld [vmem:[#allocation7 + $0xd54] sm:$0xf]
    %v4050 = vld [vmem:[#allocation7 + $0xd58] sm:$0xff]
    %v4051 = vld [vmem:[#allocation7 + $0xd60] sm:$0xff]
    %v4052 = vld [vmem:[#allocation7 + $0xd68] sm:$0xff]
    %v4053 = vld [vmem:[#allocation7 + $0xd70] sm:$0xf]
    %v4054 = vld [vmem:[#allocation7 + $0xd74] sm:$0xff]
    %v4055 = vld [vmem:[#allocation7 + $0xd7c] sm:$0xff]
    %v4056 = vld [vmem:[#allocation7 + $0xd84] sm:$0xff]
    %v4057 = vld [vmem:[#allocation7 + $0xd8c] sm:$0xf]
    %v4058 = vld [vmem:[#allocation7 + $0xd90] sm:$0xff]
    %v4059 = vld [vmem:[#allocation7 + $0xd98] sm:$0xff]
    %v4060 = vld [vmem:[#allocation7 + $0xda0] sm:$0xff]
    %v4061 = vld [vmem:[#allocation7 + $0xda8] sm:$0xf]
    %v4062 = vld [vmem:[#allocation7 + $0xdac] sm:$0xff]
    %v4063 = vld [vmem:[#allocation7 + $0xdb4] sm:$0xff]
    %v4064 = vld [vmem:[#allocation7 + $0xdbc] sm:$0xff]
    %v4065 = vld [vmem:[#allocation7 + $0xdc4] sm:$0xf]
    %v4066 = vld [vmem:[#allocation7 + $0xdc8] sm:$0xff]
    %v4067 = vld [vmem:[#allocation7 + $0xdd0] sm:$0xff]
    %v4068 = vld [vmem:[#allocation7 + $0xdd8] sm:$0xff]
    %v4069 = vld [vmem:[#allocation7 + $0xde0] sm:$0xf]
    %v4070 = vld [vmem:[#allocation7 + $0xde4] sm:$0xff]
    %v4071 = vld [vmem:[#allocation7 + $0xdec] sm:$0xff]
    %v4072 = vld [vmem:[#allocation7 + $0xdf4] sm:$0xff]
    %v4073 = vld [vmem:[#allocation7 + $0xdfc] sm:$0xf]
    %v4074 = vld [vmem:[#allocation8] sm:$0xff]
    %v4076 = vperm.slane %v4074, 0
    %v4077 = vperm.slane %v4074, 1
    %v4078 = vperm.slane %v4074, 2
    %v4079 = vperm.slane %v4074, 3
    %v4080 = vperm.slane %v4074, 4
    %v4081 = vperm.slane %v4074, 5
    %v4082 = vperm.slane %v4074, 6
    %v4602 = vunpack.c.l.b16 %v3562
    %v4603 = vunpack.c.h.b16 %v3562
    %v4604 = vunpack.c.l.b16 %v3563
    %v4605 = vunpack.c.h.b16 %v3563
    %v4606 = vunpack.c.l.b16 %v3564
    %v4607 = vunpack.c.h.b16 %v3564
    %v4608 = vunpack.c.l.b16 %v3565
    %v4609 = vunpack.c.l.b16 %v3566
    %v4610 = vunpack.c.h.b16 %v3566
    %v4611 = vunpack.c.l.b16 %v3567
    %v4612 = vunpack.c.h.b16 %v3567
    %v4613 = vunpack.c.l.b16 %v3568
    %v4614 = vunpack.c.h.b16 %v3568
    %v4615 = vunpack.c.l.b16 %v3569
    %v4616 = vunpack.c.l.b16 %v3570
    %v4617 = vunpack.c.h.b16 %v3570
    %v4618 = vunpack.c.l.b16 %v3571
    %v4619 = vunpack.c.h.b16 %v3571
    %v4620 = vunpack.c.l.b16 %v3572
    %v4621 = vunpack.c.h.b16 %v3572
    %v4622 = vunpack.c.l.b16 %v3573
    %v4623 = vunpack.c.l.b16 %v3574
    %v4624 = vunpack.c.h.b16 %v3574
    %v4625 = vunpack.c.l.b16 %v3575
    %v4626 = vunpack.c.h.b16 %v3575
    %v4627 = vunpack.c.l.b16 %v3576
    %v4628 = vunpack.c.h.b16 %v3576
    %v4629 = vunpack.c.l.b16 %v3577
    %v4630 = vunpack.c.l.b16 %v3578
    %v4631 = vunpack.c.h.b16 %v3578
    %v4632 = vunpack.c.l.b16 %v3579
    %v4633 = vunpack.c.h.b16 %v3579
    %v4634 = vunpack.c.l.b16 %v3580
    %v4635 = vunpack.c.h.b16 %v3580
    %v4636 = vunpack.c.l.b16 %v3581
    %v4637 = vunpack.c.l.b16 %v3582
    %v4638 = vunpack.c.h.b16 %v3582
    %v4639 = vunpack.c.l.b16 %v3583
    %v4640 = vunpack.c.h.b16 %v3583
    %v4641 = vunpack.c.l.b16 %v3584
    %v4642 = vunpack.c.h.b16 %v3584
    %v4643 = vunpack.c.l.b16 %v3585
    %v4644 = vunpack.c.l.b16 %v3586
    %v4645 = vunpack.c.h.b16 %v3586
    %v4646 = vunpack.c.l.b16 %v3587
    %v4647 = vunpack.c.h.b16 %v3587
    %v4648 = vunpack.c.l.b16 %v3588
    %v4649 = vunpack.c.h.b16 %v3588
    %v4650 = vunpack.c.l.b16 %v3589
    %v4651 = vunpack.c.l.b16 %v3590
    %v4652 = vunpack.c.h.b16 %v3590
    %v4653 = vunpack.c.l.b16 %v3591
    %v4654 = vunpack.c.h.b16 %v3591
    %v4655 = vunpack.c.l.b16 %v3592
    %v4656 = vunpack.c.h.b16 %v3592
    %v4657 = vunpack.c.l.b16 %v3593
    %v4658 = vunpack.c.l.b16 %v3594
    %v4659 = vunpack.c.h.b16 %v3594
    %v4660 = vunpack.c.l.b16 %v3595
    %v4661 = vunpack.c.h.b16 %v3595
    %v4662 = vunpack.c.l.b16 %v3596
    %v4663 = vunpack.c.h.b16 %v3596
    %v4664 = vunpack.c.l.b16 %v3597
    %v4665 = vunpack.c.l.b16 %v3598
    %v4666 = vunpack.c.h.b16 %v3598
    %v4667 = vunpack.c.l.b16 %v3599
    %v4668 = vunpack.c.h.b16 %v3599
    %v4669 = vunpack.c.l.b16 %v3600
    %v4670 = vunpack.c.h.b16 %v3600
    %v4671 = vunpack.c.l.b16 %v3601
    %v4672 = vunpack.c.l.b16 %v3602
    %v4673 = vunpack.c.h.b16 %v3602
    %v4674 = vunpack.c.l.b16 %v3603
    %v4675 = vunpack.c.h.b16 %v3603
    %v4676 = vunpack.c.l.b16 %v3604
    %v4677 = vunpack.c.h.b16 %v3604
    %v4678 = vunpack.c.l.b16 %v3605
    %v4679 = vunpack.c.l.b16 %v3606
    %v4680 = vunpack.c.h.b16 %v3606
    %v4681 = vunpack.c.l.b16 %v3607
    %v4682 = vunpack.c.h.b16 %v3607
    %v4683 = vunpack.c.l.b16 %v3608
    %v4684 = vunpack.c.h.b16 %v3608
    %v4685 = vunpack.c.l.b16 %v3609
    %v4686 = vunpack.c.l.b16 %v3610
    %v4687 = vunpack.c.h.b16 %v3610
    %v4688 = vunpack.c.l.b16 %v3611
    %v4689 = vunpack.c.h.b16 %v3611
    %v4690 = vunpack.c.l.b16 %v3612
    %v4691 = vunpack.c.h.b16 %v3612
    %v4692 = vunpack.c.l.b16 %v3613
    %v4693 = vunpack.c.l.b16 %v3614
    %v4694 = vunpack.c.h.b16 %v3614
    %v4695 = vunpack.c.l.b16 %v3615
    %v4696 = vunpack.c.h.b16 %v3615
    %v4697 = vunpack.c.l.b16 %v3616
    %v4698 = vunpack.c.h.b16 %v3616
    %v4699 = vunpack.c.l.b16 %v3617
    %v4700 = vunpack.c.l.b16 %v3618
    %v4701 = vunpack.c.h.b16 %v3618
    %v4702 = vunpack.c.l.b16 %v3619
    %v4703 = vunpack.c.h.b16 %v3619
    %v4704 = vunpack.c.l.b16 %v3620
    %v4705 = vunpack.c.h.b16 %v3620
    %v4706 = vunpack.c.l.b16 %v3621
    %v4707 = vunpack.c.l.b16 %v3622
    %v4708 = vunpack.c.h.b16 %v3622
    %v4709 = vunpack.c.l.b16 %v3623
    %v4710 = vunpack.c.h.b16 %v3623
    %v4711 = vunpack.c.l.b16 %v3624
    %v4712 = vunpack.c.h.b16 %v3624
    %v4713 = vunpack.c.l.b16 %v3625
    %v4714 = vunpack.c.l.b16 %v3626
    %v4715 = vunpack.c.h.b16 %v3626
    %v4716 = vunpack.c.l.b16 %v3627
    %v4717 = vunpack.c.h.b16 %v3627
    %v4718 = vunpack.c.l.b16 %v3628
    %v4719 = vunpack.c.h.b16 %v3628
    %v4720 = vunpack.c.l.b16 %v3629
    %v4721 = vunpack.c.l.b16 %v3630
    %v4722 = vunpack.c.h.b16 %v3630
    %v4723 = vunpack.c.l.b16 %v3631
    %v4724 = vunpack.c.h.b16 %v3631
    %v4725 = vunpack.c.l.b16 %v3632
    %v4726 = vunpack.c.h.b16 %v3632
    %v4727 = vunpack.c.l.b16 %v3633
    %v4728 = vunpack.c.l.b16 %v3634
    %v4729 = vunpack.c.h.b16 %v3634
    %v4730 = vunpack.c.l.b16 %v3635
    %v4731 = vunpack.c.h.b16 %v3635
    %v4732 = vunpack.c.l.b16 %v3636
    %v4733 = vunpack.c.h.b16 %v3636
    %v4734 = vunpack.c.l.b16 %v3637
    %v4735 = vunpack.c.l.b16 %v3638
    %v4736 = vunpack.c.h.b16 %v3638
    %v4737 = vunpack.c.l.b16 %v3639
    %v4738 = vunpack.c.h.b16 %v3639
    %v4739 = vunpack.c.l.b16 %v3640
    %v4740 = vunpack.c.h.b16 %v3640
    %v4741 = vunpack.c.l.b16 %v3641
    %v4742 = vunpack.c.l.b16 %v3642
    %v4743 = vunpack.c.h.b16 %v3642
    %v4744 = vunpack.c.l.b16 %v3643
    %v4745 = vunpack.c.h.b16 %v3643
    %v4746 = vunpack.c.l.b16 %v3644
    %v4747 = vunpack.c.h.b16 %v3644
    %v4748 = vunpack.c.l.b16 %v3645
    %v4749 = vunpack.c.l.b16 %v3646
    %v4750 = vunpack.c.h.b16 %v3646
    %v4751 = vunpack.c.l.b16 %v3647
    %v4752 = vunpack.c.h.b16 %v3647
    %v4753 = vunpack.c.l.b16 %v3648
    %v4754 = vunpack.c.h.b16 %v3648
    %v4755 = vunpack.c.l.b16 %v3649
    %v4756 = vunpack.c.l.b16 %v3650
    %v4757 = vunpack.c.h.b16 %v3650
    %v4758 = vunpack.c.l.b16 %v3651
    %v4759 = vunpack.c.h.b16 %v3651
    %v4760 = vunpack.c.l.b16 %v3652
    %v4761 = vunpack.c.h.b16 %v3652
    %v4762 = vunpack.c.l.b16 %v3653
    %v4763 = vunpack.c.l.b16 %v3654
    %v4764 = vunpack.c.h.b16 %v3654
    %v4765 = vunpack.c.l.b16 %v3655
    %v4766 = vunpack.c.h.b16 %v3655
    %v4767 = vunpack.c.l.b16 %v3656
    %v4768 = vunpack.c.h.b16 %v3656
    %v4769 = vunpack.c.l.b16 %v3657
    %v4770 = vunpack.c.l.b16 %v3658
    %v4771 = vunpack.c.h.b16 %v3658
    %v4772 = vunpack.c.l.b16 %v3659
    %v4773 = vunpack.c.h.b16 %v3659
    %v4774 = vunpack.c.l.b16 %v3660
    %v4775 = vunpack.c.h.b16 %v3660
    %v4776 = vunpack.c.l.b16 %v3661
    %v4777 = vunpack.c.l.b16 %v3662
    %v4778 = vunpack.c.h.b16 %v3662
    %v4779 = vunpack.c.l.b16 %v3663
    %v4780 = vunpack.c.h.b16 %v3663
    %v4781 = vunpack.c.l.b16 %v3664
    %v4782 = vunpack.c.h.b16 %v3664
    %v4783 = vunpack.c.l.b16 %v3665
    %v4784 = vunpack.c.l.b16 %v3666
    %v4785 = vunpack.c.h.b16 %v3666
    %v4786 = vunpack.c.l.b16 %v3667
    %v4787 = vunpack.c.h.b16 %v3667
    %v4788 = vunpack.c.l.b16 %v3668
    %v4789 = vunpack.c.h.b16 %v3668
    %v4790 = vunpack.c.l.b16 %v3669
    %v4791 = vunpack.c.l.b16 %v3670
    %v4792 = vunpack.c.h.b16 %v3670
    %v4793 = vunpack.c.l.b16 %v3671
    %v4794 = vunpack.c.h.b16 %v3671
    %v4795 = vunpack.c.l.b16 %v3672
    %v4796 = vunpack.c.h.b16 %v3672
    %v4797 = vunpack.c.l.b16 %v3673
    %v4798 = vunpack.c.l.b16 %v3674
    %v4799 = vunpack.c.h.b16 %v3674
    %v4800 = vunpack.c.l.b16 %v3675
    %v4801 = vunpack.c.h.b16 %v3675
    %v4802 = vunpack.c.l.b16 %v3676
    %v4803 = vunpack.c.h.b16 %v3676
    %v4804 = vunpack.c.l.b16 %v3677
    %v4805 = vunpack.c.l.b16 %v3678
    %v4806 = vunpack.c.h.b16 %v3678
    %v4807 = vunpack.c.l.b16 %v3679
    %v4808 = vunpack.c.h.b16 %v3679
    %v4809 = vunpack.c.l.b16 %v3680
    %v4810 = vunpack.c.h.b16 %v3680
    %v4811 = vunpack.c.l.b16 %v3681
    %v4812 = vunpack.c.l.b16 %v3682
    %v4813 = vunpack.c.h.b16 %v3682
    %v4814 = vunpack.c.l.b16 %v3683
    %v4815 = vunpack.c.h.b16 %v3683
    %v4816 = vunpack.c.l.b16 %v3684
    %v4817 = vunpack.c.h.b16 %v3684
    %v4818 = vunpack.c.l.b16 %v3685
    %v4819 = vunpack.c.l.b16 %v3686
    %v4820 = vunpack.c.h.b16 %v3686
    %v4821 = vunpack.c.l.b16 %v3687
    %v4822 = vunpack.c.h.b16 %v3687
    %v4823 = vunpack.c.l.b16 %v3688
    %v4824 = vunpack.c.h.b16 %v3688
    %v4825 = vunpack.c.l.b16 %v3689
    %v4826 = vunpack.c.l.b16 %v3690
    %v4827 = vunpack.c.h.b16 %v3690
    %v4828 = vunpack.c.l.b16 %v3691
    %v4829 = vunpack.c.h.b16 %v3691
    %v4830 = vunpack.c.l.b16 %v3692
    %v4831 = vunpack.c.h.b16 %v3692
    %v4832 = vunpack.c.l.b16 %v3693
    %v4833 = vunpack.c.l.b16 %v3694
    %v4834 = vunpack.c.h.b16 %v3694
    %v4835 = vunpack.c.l.b16 %v3695
    %v4836 = vunpack.c.h.b16 %v3695
    %v4837 = vunpack.c.l.b16 %v3696
    %v4838 = vunpack.c.h.b16 %v3696
    %v4839 = vunpack.c.l.b16 %v3697
    %v4840 = vunpack.c.l.b16 %v3698
    %v4841 = vunpack.c.h.b16 %v3698
    %v4842 = vunpack.c.l.b16 %v3699
    %v4843 = vunpack.c.h.b16 %v3699
    %v4844 = vunpack.c.l.b16 %v3700
    %v4845 = vunpack.c.h.b16 %v3700
    %v4846 = vunpack.c.l.b16 %v3701
    %v4847 = vunpack.c.l.b16 %v3702
    %v4848 = vunpack.c.h.b16 %v3702
    %v4849 = vunpack.c.l.b16 %v3703
    %v4850 = vunpack.c.h.b16 %v3703
    %v4851 = vunpack.c.l.b16 %v3704
    %v4852 = vunpack.c.h.b16 %v3704
    %v4853 = vunpack.c.l.b16 %v3705
    %v4854 = vunpack.c.l.b16 %v3706
    %v4855 = vunpack.c.h.b16 %v3706
    %v4856 = vunpack.c.l.b16 %v3707
    %v4857 = vunpack.c.h.b16 %v3707
    %v4858 = vunpack.c.l.b16 %v3708
    %v4859 = vunpack.c.h.b16 %v3708
    %v4860 = vunpack.c.l.b16 %v3709
    %v4861 = vunpack.c.l.b16 %v3710
    %v4862 = vunpack.c.h.b16 %v3710
    %v4863 = vunpack.c.l.b16 %v3711
    %v4864 = vunpack.c.h.b16 %v3711
    %v4865 = vunpack.c.l.b16 %v3712
    %v4866 = vunpack.c.h.b16 %v3712
    %v4867 = vunpack.c.l.b16 %v3713
    %v4868 = vunpack.c.l.b16 %v3714
    %v4869 = vunpack.c.h.b16 %v3714
    %v4870 = vunpack.c.l.b16 %v3715
    %v4871 = vunpack.c.h.b16 %v3715
    %v4872 = vunpack.c.l.b16 %v3716
    %v4873 = vunpack.c.h.b16 %v3716
    %v4874 = vunpack.c.l.b16 %v3717
    %v4875 = vunpack.c.l.b16 %v3718
    %v4876 = vunpack.c.h.b16 %v3718
    %v4877 = vunpack.c.l.b16 %v3719
    %v4878 = vunpack.c.h.b16 %v3719
    %v4879 = vunpack.c.l.b16 %v3720
    %v4880 = vunpack.c.h.b16 %v3720
    %v4881 = vunpack.c.l.b16 %v3721
    %v4882 = vunpack.c.l.b16 %v3722
    %v4883 = vunpack.c.h.b16 %v3722
    %v4884 = vunpack.c.l.b16 %v3723
    %v4885 = vunpack.c.h.b16 %v3723
    %v4886 = vunpack.c.l.b16 %v3724
    %v4887 = vunpack.c.h.b16 %v3724
    %v4888 = vunpack.c.l.b16 %v3725
    %v4889 = vunpack.c.l.b16 %v3726
    %v4890 = vunpack.c.h.b16 %v3726
    %v4891 = vunpack.c.l.b16 %v3727
    %v4892 = vunpack.c.h.b16 %v3727
    %v4893 = vunpack.c.l.b16 %v3728
    %v4894 = vunpack.c.h.b16 %v3728
    %v4895 = vunpack.c.l.b16 %v3729
    %v4896 = vunpack.c.l.b16 %v3730
    %v4897 = vunpack.c.h.b16 %v3730
    %v4898 = vunpack.c.l.b16 %v3731
    %v4899 = vunpack.c.h.b16 %v3731
    %v4900 = vunpack.c.l.b16 %v3732
    %v4901 = vunpack.c.h.b16 %v3732
    %v4902 = vunpack.c.l.b16 %v3733
    %v4903 = vunpack.c.l.b16 %v3734
    %v4904 = vunpack.c.h.b16 %v3734
    %v4905 = vunpack.c.l.b16 %v3735
    %v4906 = vunpack.c.h.b16 %v3735
    %v4907 = vunpack.c.l.b16 %v3736
    %v4908 = vunpack.c.h.b16 %v3736
    %v4909 = vunpack.c.l.b16 %v3737
    %v4910 = vunpack.c.l.b16 %v3738
    %v4911 = vunpack.c.h.b16 %v3738
    %v4912 = vunpack.c.l.b16 %v3739
    %v4913 = vunpack.c.h.b16 %v3739
    %v4914 = vunpack.c.l.b16 %v3740
    %v4915 = vunpack.c.h.b16 %v3740
    %v4916 = vunpack.c.l.b16 %v3741
    %v4917 = vunpack.c.l.b16 %v3742
    %v4918 = vunpack.c.h.b16 %v3742
    %v4919 = vunpack.c.l.b16 %v3743
    %v4920 = vunpack.c.h.b16 %v3743
    %v4921 = vunpack.c.l.b16 %v3744
    %v4922 = vunpack.c.h.b16 %v3744
    %v4923 = vunpack.c.l.b16 %v3745
    %v4924 = vunpack.c.l.b16 %v3746
    %v4925 = vunpack.c.h.b16 %v3746
    %v4926 = vunpack.c.l.b16 %v3747
    %v4927 = vunpack.c.h.b16 %v3747
    %v4928 = vunpack.c.l.b16 %v3748
    %v4929 = vunpack.c.h.b16 %v3748
    %v4930 = vunpack.c.l.b16 %v3749
    %v4931 = vunpack.c.l.b16 %v3750
    %v4932 = vunpack.c.h.b16 %v3750
    %v4933 = vunpack.c.l.b16 %v3751
    %v4934 = vunpack.c.h.b16 %v3751
    %v4935 = vunpack.c.l.b16 %v3752
    %v4936 = vunpack.c.h.b16 %v3752
    %v4937 = vunpack.c.l.b16 %v3753
    %v4938 = vunpack.c.l.b16 %v3754
    %v4939 = vunpack.c.h.b16 %v3754
    %v4940 = vunpack.c.l.b16 %v3755
    %v4941 = vunpack.c.h.b16 %v3755
    %v4942 = vunpack.c.l.b16 %v3756
    %v4943 = vunpack.c.h.b16 %v3756
    %v4944 = vunpack.c.l.b16 %v3757
    %v4945 = vunpack.c.l.b16 %v3758
    %v4946 = vunpack.c.h.b16 %v3758
    %v4947 = vunpack.c.l.b16 %v3759
    %v4948 = vunpack.c.h.b16 %v3759
    %v4949 = vunpack.c.l.b16 %v3760
    %v4950 = vunpack.c.h.b16 %v3760
    %v4951 = vunpack.c.l.b16 %v3761
    %v4952 = vunpack.c.l.b16 %v3762
    %v4953 = vunpack.c.h.b16 %v3762
    %v4954 = vunpack.c.l.b16 %v3763
    %v4955 = vunpack.c.h.b16 %v3763
    %v4956 = vunpack.c.l.b16 %v3764
    %v4957 = vunpack.c.h.b16 %v3764
    %v4958 = vunpack.c.l.b16 %v3765
    %v4959 = vunpack.c.l.b16 %v3766
    %v4960 = vunpack.c.h.b16 %v3766
    %v4961 = vunpack.c.l.b16 %v3767
    %v4962 = vunpack.c.h.b16 %v3767
    %v4963 = vunpack.c.l.b16 %v3768
    %v4964 = vunpack.c.h.b16 %v3768
    %v4965 = vunpack.c.l.b16 %v3769
    %v4966 = vunpack.c.l.b16 %v3770
    %v4967 = vunpack.c.h.b16 %v3770
    %v4968 = vunpack.c.l.b16 %v3771
    %v4969 = vunpack.c.h.b16 %v3771
    %v4970 = vunpack.c.l.b16 %v3772
    %v4971 = vunpack.c.h.b16 %v3772
    %v4972 = vunpack.c.l.b16 %v3773
    %v4973 = vunpack.c.l.b16 %v3774
    %v4974 = vunpack.c.h.b16 %v3774
    %v4975 = vunpack.c.l.b16 %v3775
    %v4976 = vunpack.c.h.b16 %v3775
    %v4977 = vunpack.c.l.b16 %v3776
    %v4978 = vunpack.c.h.b16 %v3776
    %v4979 = vunpack.c.l.b16 %v3777
    %v4980 = vunpack.c.l.b16 %v3778
    %v4981 = vunpack.c.h.b16 %v3778
    %v4982 = vunpack.c.l.b16 %v3779
    %v4983 = vunpack.c.h.b16 %v3779
    %v4984 = vunpack.c.l.b16 %v3780
    %v4985 = vunpack.c.h.b16 %v3780
    %v4986 = vunpack.c.l.b16 %v3781
    %v4987 = vunpack.c.l.b16 %v3782
    %v4988 = vunpack.c.h.b16 %v3782
    %v4989 = vunpack.c.l.b16 %v3783
    %v4990 = vunpack.c.h.b16 %v3783
    %v4991 = vunpack.c.l.b16 %v3784
    %v4992 = vunpack.c.h.b16 %v3784
    %v4993 = vunpack.c.l.b16 %v3785
    %v4994 = vunpack.c.l.b16 %v3786
    %v4995 = vunpack.c.h.b16 %v3786
    %v4996 = vunpack.c.l.b16 %v3787
    %v4997 = vunpack.c.h.b16 %v3787
    %v4998 = vunpack.c.l.b16 %v3788
    %v4999 = vunpack.c.h.b16 %v3788
    %v5000 = vunpack.c.l.b16 %v3789
    %v5001 = vunpack.c.l.b16 %v3790
    %v5002 = vunpack.c.h.b16 %v3790
    %v5003 = vunpack.c.l.b16 %v3791
    %v5004 = vunpack.c.h.b16 %v3791
    %v5005 = vunpack.c.l.b16 %v3792
    %v5006 = vunpack.c.h.b16 %v3792
    %v5007 = vunpack.c.l.b16 %v3793
    %v5008 = vunpack.c.l.b16 %v3794
    %v5009 = vunpack.c.h.b16 %v3794
    %v5010 = vunpack.c.l.b16 %v3795
    %v5011 = vunpack.c.h.b16 %v3795
    %v5012 = vunpack.c.l.b16 %v3796
    %v5013 = vunpack.c.h.b16 %v3796
    %v5014 = vunpack.c.l.b16 %v3797
    %v5015 = vunpack.c.l.b16 %v3798
    %v5016 = vunpack.c.h.b16 %v3798
    %v5017 = vunpack.c.l.b16 %v3799
    %v5018 = vunpack.c.h.b16 %v3799
    %v5019 = vunpack.c.l.b16 %v3800
    %v5020 = vunpack.c.h.b16 %v3800
    %v5021 = vunpack.c.l.b16 %v3801
    %v5022 = vunpack.c.l.b16 %v3802
    %v5023 = vunpack.c.h.b16 %v3802
    %v5024 = vunpack.c.l.b16 %v3803
    %v5025 = vunpack.c.h.b16 %v3803
    %v5026 = vunpack.c.l.b16 %v3804
    %v5027 = vunpack.c.h.b16 %v3804
    %v5028 = vunpack.c.l.b16 %v3805
    %v5029 = vunpack.c.l.b16 %v3806
    %v5030 = vunpack.c.h.b16 %v3806
    %v5031 = vunpack.c.l.b16 %v3807
    %v5032 = vunpack.c.h.b16 %v3807
    %v5033 = vunpack.c.l.b16 %v3808
    %v5034 = vunpack.c.h.b16 %v3808
    %v5035 = vunpack.c.l.b16 %v3809
    %v5036 = vunpack.c.l.b16 %v3810
    %v5037 = vunpack.c.h.b16 %v3810
    %v5038 = vunpack.c.l.b16 %v3811
    %v5039 = vunpack.c.h.b16 %v3811
    %v5040 = vunpack.c.l.b16 %v3812
    %v5041 = vunpack.c.h.b16 %v3812
    %v5042 = vunpack.c.l.b16 %v3813
    %v5043 = vunpack.c.l.b16 %v3814
    %v5044 = vunpack.c.h.b16 %v3814
    %v5045 = vunpack.c.l.b16 %v3815
    %v5046 = vunpack.c.h.b16 %v3815
    %v5047 = vunpack.c.l.b16 %v3816
    %v5048 = vunpack.c.h.b16 %v3816
    %v5049 = vunpack.c.l.b16 %v3817
    %v5050 = vunpack.c.l.b16 %v3818
    %v5051 = vunpack.c.h.b16 %v3818
    %v5052 = vunpack.c.l.b16 %v3819
    %v5053 = vunpack.c.h.b16 %v3819
    %v5054 = vunpack.c.l.b16 %v3820
    %v5055 = vunpack.c.h.b16 %v3820
    %v5056 = vunpack.c.l.b16 %v3821
    %v5057 = vunpack.c.l.b16 %v3822
    %v5058 = vunpack.c.h.b16 %v3822
    %v5059 = vunpack.c.l.b16 %v3823
    %v5060 = vunpack.c.h.b16 %v3823
    %v5061 = vunpack.c.l.b16 %v3824
    %v5062 = vunpack.c.h.b16 %v3824
    %v5063 = vunpack.c.l.b16 %v3825
    %v5064 = vunpack.c.l.b16 %v3826
    %v5065 = vunpack.c.h.b16 %v3826
    %v5066 = vunpack.c.l.b16 %v3827
    %v5067 = vunpack.c.h.b16 %v3827
    %v5068 = vunpack.c.l.b16 %v3828
    %v5069 = vunpack.c.h.b16 %v3828
    %v5070 = vunpack.c.l.b16 %v3829
    %v5071 = vunpack.c.l.b16 %v3830
    %v5072 = vunpack.c.h.b16 %v3830
    %v5073 = vunpack.c.l.b16 %v3831
    %v5074 = vunpack.c.h.b16 %v3831
    %v5075 = vunpack.c.l.b16 %v3832
    %v5076 = vunpack.c.h.b16 %v3832
    %v5077 = vunpack.c.l.b16 %v3833
    %v5078 = vunpack.c.l.b16 %v3834
    %v5079 = vunpack.c.h.b16 %v3834
    %v5080 = vunpack.c.l.b16 %v3835
    %v5081 = vunpack.c.h.b16 %v3835
    %v5082 = vunpack.c.l.b16 %v3836
    %v5083 = vunpack.c.h.b16 %v3836
    %v5084 = vunpack.c.l.b16 %v3837
    %v5085 = vunpack.c.l.b16 %v3838
    %v5086 = vunpack.c.h.b16 %v3838
    %v5087 = vunpack.c.l.b16 %v3839
    %v5088 = vunpack.c.h.b16 %v3839
    %v5089 = vunpack.c.l.b16 %v3840
    %v5090 = vunpack.c.h.b16 %v3840
    %v5091 = vunpack.c.l.b16 %v3841
    %v5092 = vunpack.c.l.b16 %v3842
    %v5093 = vunpack.c.h.b16 %v3842
    %v5094 = vunpack.c.l.b16 %v3843
    %v5095 = vunpack.c.h.b16 %v3843
    %v5096 = vunpack.c.l.b16 %v3844
    %v5097 = vunpack.c.h.b16 %v3844
    %v5098 = vunpack.c.l.b16 %v3845
    %v5099 = vunpack.c.l.b16 %v3846
    %v5100 = vunpack.c.h.b16 %v3846
    %v5101 = vunpack.c.l.b16 %v3847
    %v5102 = vunpack.c.h.b16 %v3847
    %v5103 = vunpack.c.l.b16 %v3848
    %v5104 = vunpack.c.h.b16 %v3848
    %v5105 = vunpack.c.l.b16 %v3849
    %v5106 = vunpack.c.l.b16 %v3850
    %v5107 = vunpack.c.h.b16 %v3850
    %v5108 = vunpack.c.l.b16 %v3851
    %v5109 = vunpack.c.h.b16 %v3851
    %v5110 = vunpack.c.l.b16 %v3852
    %v5111 = vunpack.c.h.b16 %v3852
    %v5112 = vunpack.c.l.b16 %v3853
    %v5113 = vunpack.c.l.b16 %v3854
    %v5114 = vunpack.c.h.b16 %v3854
    %v5115 = vunpack.c.l.b16 %v3855
    %v5116 = vunpack.c.h.b16 %v3855
    %v5117 = vunpack.c.l.b16 %v3856
    %v5118 = vunpack.c.h.b16 %v3856
    %v5119 = vunpack.c.l.b16 %v3857
    %v5120 = vunpack.c.l.b16 %v3858
    %v5121 = vunpack.c.h.b16 %v3858
    %v5122 = vunpack.c.l.b16 %v3859
    %v5123 = vunpack.c.h.b16 %v3859
    %v5124 = vunpack.c.l.b16 %v3860
    %v5125 = vunpack.c.h.b16 %v3860
    %v5126 = vunpack.c.l.b16 %v3861
    %v5127 = vunpack.c.l.b16 %v3862
    %v5128 = vunpack.c.h.b16 %v3862
    %v5129 = vunpack.c.l.b16 %v3863
    %v5130 = vunpack.c.h.b16 %v3863
    %v5131 = vunpack.c.l.b16 %v3864
    %v5132 = vunpack.c.h.b16 %v3864
    %v5133 = vunpack.c.l.b16 %v3865
    %v5134 = vunpack.c.l.b16 %v3866
    %v5135 = vunpack.c.h.b16 %v3866
    %v5136 = vunpack.c.l.b16 %v3867
    %v5137 = vunpack.c.h.b16 %v3867
    %v5138 = vunpack.c.l.b16 %v3868
    %v5139 = vunpack.c.h.b16 %v3868
    %v5140 = vunpack.c.l.b16 %v3869
    %v5141 = vunpack.c.l.b16 %v3870
    %v5142 = vunpack.c.h.b16 %v3870
    %v5143 = vunpack.c.l.b16 %v3871
    %v5144 = vunpack.c.h.b16 %v3871
    %v5145 = vunpack.c.l.b16 %v3872
    %v5146 = vunpack.c.h.b16 %v3872
    %v5147 = vunpack.c.l.b16 %v3873
    %v5148 = vunpack.c.l.b16 %v3874
    %v5149 = vunpack.c.h.b16 %v3874
    %v5150 = vunpack.c.l.b16 %v3875
    %v5151 = vunpack.c.h.b16 %v3875
    %v5152 = vunpack.c.l.b16 %v3876
    %v5153 = vunpack.c.h.b16 %v3876
    %v5154 = vunpack.c.l.b16 %v3877
    %v5155 = vunpack.c.l.b16 %v3878
    %v5156 = vunpack.c.h.b16 %v3878
    %v5157 = vunpack.c.l.b16 %v3879
    %v5158 = vunpack.c.h.b16 %v3879
    %v5159 = vunpack.c.l.b16 %v3880
    %v5160 = vunpack.c.h.b16 %v3880
    %v5161 = vunpack.c.l.b16 %v3881
    %v5162 = vunpack.c.l.b16 %v3882
    %v5163 = vunpack.c.h.b16 %v3882
    %v5164 = vunpack.c.l.b16 %v3883
    %v5165 = vunpack.c.h.b16 %v3883
    %v5166 = vunpack.c.l.b16 %v3884
    %v5167 = vunpack.c.h.b16 %v3884
    %v5168 = vunpack.c.l.b16 %v3885
    %v5169 = vunpack.c.l.b16 %v3886
    %v5170 = vunpack.c.h.b16 %v3886
    %v5171 = vunpack.c.l.b16 %v3887
    %v5172 = vunpack.c.h.b16 %v3887
    %v5173 = vunpack.c.l.b16 %v3888
    %v5174 = vunpack.c.h.b16 %v3888
    %v5175 = vunpack.c.l.b16 %v3889
    %v5176 = vunpack.c.l.b16 %v3890
    %v5177 = vunpack.c.h.b16 %v3890
    %v5178 = vunpack.c.l.b16 %v3891
    %v5179 = vunpack.c.h.b16 %v3891
    %v5180 = vunpack.c.l.b16 %v3892
    %v5181 = vunpack.c.h.b16 %v3892
    %v5182 = vunpack.c.l.b16 %v3893
    %v5183 = vunpack.c.l.b16 %v3894
    %v5184 = vunpack.c.h.b16 %v3894
    %v5185 = vunpack.c.l.b16 %v3895
    %v5186 = vunpack.c.h.b16 %v3895
    %v5187 = vunpack.c.l.b16 %v3896
    %v5188 = vunpack.c.h.b16 %v3896
    %v5189 = vunpack.c.l.b16 %v3897
    %v5190 = vunpack.c.l.b16 %v3898
    %v5191 = vunpack.c.h.b16 %v3898
    %v5192 = vunpack.c.l.b16 %v3899
    %v5193 = vunpack.c.h.b16 %v3899
    %v5194 = vunpack.c.l.b16 %v3900
    %v5195 = vunpack.c.h.b16 %v3900
    %v5196 = vunpack.c.l.b16 %v3901
    %v5197 = vunpack.c.l.b16 %v3902
    %v5198 = vunpack.c.h.b16 %v3902
    %v5199 = vunpack.c.l.b16 %v3903
    %v5200 = vunpack.c.h.b16 %v3903
    %v5201 = vunpack.c.l.b16 %v3904
    %v5202 = vunpack.c.h.b16 %v3904
    %v5203 = vunpack.c.l.b16 %v3905
    %v5204 = vunpack.c.l.b16 %v3906
    %v5205 = vunpack.c.h.b16 %v3906
    %v5206 = vunpack.c.l.b16 %v3907
    %v5207 = vunpack.c.h.b16 %v3907
    %v5208 = vunpack.c.l.b16 %v3908
    %v5209 = vunpack.c.h.b16 %v3908
    %v5210 = vunpack.c.l.b16 %v3909
    %v5211 = vunpack.c.l.b16 %v3910
    %v5212 = vunpack.c.h.b16 %v3910
    %v5213 = vunpack.c.l.b16 %v3911
    %v5214 = vunpack.c.h.b16 %v3911
    %v5215 = vunpack.c.l.b16 %v3912
    %v5216 = vunpack.c.h.b16 %v3912
    %v5217 = vunpack.c.l.b16 %v3913
    %v5218 = vunpack.c.l.b16 %v3914
    %v5219 = vunpack.c.h.b16 %v3914
    %v5220 = vunpack.c.l.b16 %v3915
    %v5221 = vunpack.c.h.b16 %v3915
    %v5222 = vunpack.c.l.b16 %v3916
    %v5223 = vunpack.c.h.b16 %v3916
    %v5224 = vunpack.c.l.b16 %v3917
    %v5225 = vunpack.c.l.b16 %v3918
    %v5226 = vunpack.c.h.b16 %v3918
    %v5227 = vunpack.c.l.b16 %v3919
    %v5228 = vunpack.c.h.b16 %v3919
    %v5229 = vunpack.c.l.b16 %v3920
    %v5230 = vunpack.c.h.b16 %v3920
    %v5231 = vunpack.c.l.b16 %v3921
    %v5232 = vunpack.c.l.b16 %v3922
    %v5233 = vunpack.c.h.b16 %v3922
    %v5234 = vunpack.c.l.b16 %v3923
    %v5235 = vunpack.c.h.b16 %v3923
    %v5236 = vunpack.c.l.b16 %v3924
    %v5237 = vunpack.c.h.b16 %v3924
    %v5238 = vunpack.c.l.b16 %v3925
    %v5239 = vunpack.c.l.b16 %v3926
    %v5240 = vunpack.c.h.b16 %v3926
    %v5241 = vunpack.c.l.b16 %v3927
    %v5242 = vunpack.c.h.b16 %v3927
    %v5243 = vunpack.c.l.b16 %v3928
    %v5244 = vunpack.c.h.b16 %v3928
    %v5245 = vunpack.c.l.b16 %v3929
    %v5246 = vunpack.c.l.b16 %v3930
    %v5247 = vunpack.c.h.b16 %v3930
    %v5248 = vunpack.c.l.b16 %v3931
    %v5249 = vunpack.c.h.b16 %v3931
    %v5250 = vunpack.c.l.b16 %v3932
    %v5251 = vunpack.c.h.b16 %v3932
    %v5252 = vunpack.c.l.b16 %v3933
    %v5253 = vunpack.c.l.b16 %v3934
    %v5254 = vunpack.c.h.b16 %v3934
    %v5255 = vunpack.c.l.b16 %v3935
    %v5256 = vunpack.c.h.b16 %v3935
    %v5257 = vunpack.c.l.b16 %v3936
    %v5258 = vunpack.c.h.b16 %v3936
    %v5259 = vunpack.c.l.b16 %v3937
    %v5260 = vunpack.c.l.b16 %v3938
    %v5261 = vunpack.c.h.b16 %v3938
    %v5262 = vunpack.c.l.b16 %v3939
    %v5263 = vunpack.c.h.b16 %v3939
    %v5264 = vunpack.c.l.b16 %v3940
    %v5265 = vunpack.c.h.b16 %v3940
    %v5266 = vunpack.c.l.b16 %v3941
    %v5267 = vunpack.c.l.b16 %v3942
    %v5268 = vunpack.c.h.b16 %v3942
    %v5269 = vunpack.c.l.b16 %v3943
    %v5270 = vunpack.c.h.b16 %v3943
    %v5271 = vunpack.c.l.b16 %v3944
    %v5272 = vunpack.c.h.b16 %v3944
    %v5273 = vunpack.c.l.b16 %v3945
    %v5274 = vunpack.c.l.b16 %v3946
    %v5275 = vunpack.c.h.b16 %v3946
    %v5276 = vunpack.c.l.b16 %v3947
    %v5277 = vunpack.c.h.b16 %v3947
    %v5278 = vunpack.c.l.b16 %v3948
    %v5279 = vunpack.c.h.b16 %v3948
    %v5280 = vunpack.c.l.b16 %v3949
    %v5281 = vunpack.c.l.b16 %v3950
    %v5282 = vunpack.c.h.b16 %v3950
    %v5283 = vunpack.c.l.b16 %v3951
    %v5284 = vunpack.c.h.b16 %v3951
    %v5285 = vunpack.c.l.b16 %v3952
    %v5286 = vunpack.c.h.b16 %v3952
    %v5287 = vunpack.c.l.b16 %v3953
    %v5288 = vunpack.c.l.b16 %v3954
    %v5289 = vunpack.c.h.b16 %v3954
    %v5290 = vunpack.c.l.b16 %v3955
    %v5291 = vunpack.c.h.b16 %v3955
    %v5292 = vunpack.c.l.b16 %v3956
    %v5293 = vunpack.c.h.b16 %v3956
    %v5294 = vunpack.c.l.b16 %v3957
    %v5295 = vunpack.c.l.b16 %v3958
    %v5296 = vunpack.c.h.b16 %v3958
    %v5297 = vunpack.c.l.b16 %v3959
    %v5298 = vunpack.c.h.b16 %v3959
    %v5299 = vunpack.c.l.b16 %v3960
    %v5300 = vunpack.c.h.b16 %v3960
    %v5301 = vunpack.c.l.b16 %v3961
    %v5302 = vunpack.c.l.b16 %v3962
    %v5303 = vunpack.c.h.b16 %v3962
    %v5304 = vunpack.c.l.b16 %v3963
    %v5305 = vunpack.c.h.b16 %v3963
    %v5306 = vunpack.c.l.b16 %v3964
    %v5307 = vunpack.c.h.b16 %v3964
    %v5308 = vunpack.c.l.b16 %v3965
    %v5309 = vunpack.c.l.b16 %v3966
    %v5310 = vunpack.c.h.b16 %v3966
    %v5311 = vunpack.c.l.b16 %v3967
    %v5312 = vunpack.c.h.b16 %v3967
    %v5313 = vunpack.c.l.b16 %v3968
    %v5314 = vunpack.c.h.b16 %v3968
    %v5315 = vunpack.c.l.b16 %v3969
    %v5316 = vunpack.c.l.b16 %v3970
    %v5317 = vunpack.c.h.b16 %v3970
    %v5318 = vunpack.c.l.b16 %v3971
    %v5319 = vunpack.c.h.b16 %v3971
    %v5320 = vunpack.c.l.b16 %v3972
    %v5321 = vunpack.c.h.b16 %v3972
    %v5322 = vunpack.c.l.b16 %v3973
    %v5323 = vunpack.c.l.b16 %v3974
    %v5324 = vunpack.c.h.b16 %v3974
    %v5325 = vunpack.c.l.b16 %v3975
    %v5326 = vunpack.c.h.b16 %v3975
    %v5327 = vunpack.c.l.b16 %v3976
    %v5328 = vunpack.c.h.b16 %v3976
    %v5329 = vunpack.c.l.b16 %v3977
    %v5330 = vunpack.c.l.b16 %v3978
    %v5331 = vunpack.c.h.b16 %v3978
    %v5332 = vunpack.c.l.b16 %v3979
    %v5333 = vunpack.c.h.b16 %v3979
    %v5334 = vunpack.c.l.b16 %v3980
    %v5335 = vunpack.c.h.b16 %v3980
    %v5336 = vunpack.c.l.b16 %v3981
    %v5337 = vunpack.c.l.b16 %v3982
    %v5338 = vunpack.c.h.b16 %v3982
    %v5339 = vunpack.c.l.b16 %v3983
    %v5340 = vunpack.c.h.b16 %v3983
    %v5341 = vunpack.c.l.b16 %v3984
    %v5342 = vunpack.c.h.b16 %v3984
    %v5343 = vunpack.c.l.b16 %v3985
    %v5344 = vunpack.c.l.b16 %v3986
    %v5345 = vunpack.c.h.b16 %v3986
    %v5346 = vunpack.c.l.b16 %v3987
    %v5347 = vunpack.c.h.b16 %v3987
    %v5348 = vunpack.c.l.b16 %v3988
    %v5349 = vunpack.c.h.b16 %v3988
    %v5350 = vunpack.c.l.b16 %v3989
    %v5351 = vunpack.c.l.b16 %v3990
    %v5352 = vunpack.c.h.b16 %v3990
    %v5353 = vunpack.c.l.b16 %v3991
    %v5354 = vunpack.c.h.b16 %v3991
    %v5355 = vunpack.c.l.b16 %v3992
    %v5356 = vunpack.c.h.b16 %v3992
    %v5357 = vunpack.c.l.b16 %v3993
    %v5358 = vunpack.c.l.b16 %v3994
    %v5359 = vunpack.c.h.b16 %v3994
    %v5360 = vunpack.c.l.b16 %v3995
    %v5361 = vunpack.c.h.b16 %v3995
    %v5362 = vunpack.c.l.b16 %v3996
    %v5363 = vunpack.c.h.b16 %v3996
    %v5364 = vunpack.c.l.b16 %v3997
    %v5365 = vunpack.c.l.b16 %v3998
    %v5366 = vunpack.c.h.b16 %v3998
    %v5367 = vunpack.c.l.b16 %v3999
    %v5368 = vunpack.c.h.b16 %v3999
    %v5369 = vunpack.c.l.b16 %v4000
    %v5370 = vunpack.c.h.b16 %v4000
    %v5371 = vunpack.c.l.b16 %v4001
    %v5372 = vunpack.c.l.b16 %v4002
    %v5373 = vunpack.c.h.b16 %v4002
    %v5374 = vunpack.c.l.b16 %v4003
    %v5375 = vunpack.c.h.b16 %v4003
    %v5376 = vunpack.c.l.b16 %v4004
    %v5377 = vunpack.c.h.b16 %v4004
    %v5378 = vunpack.c.l.b16 %v4005
    %v5379 = vunpack.c.l.b16 %v4006
    %v5380 = vunpack.c.h.b16 %v4006
    %v5381 = vunpack.c.l.b16 %v4007
    %v5382 = vunpack.c.h.b16 %v4007
    %v5383 = vunpack.c.l.b16 %v4008
    %v5384 = vunpack.c.h.b16 %v4008
    %v5385 = vunpack.c.l.b16 %v4009
    %v5386 = vunpack.c.l.b16 %v4010
    %v5387 = vunpack.c.h.b16 %v4010
    %v5388 = vunpack.c.l.b16 %v4011
    %v5389 = vunpack.c.h.b16 %v4011
    %v5390 = vunpack.c.l.b16 %v4012
    %v5391 = vunpack.c.h.b16 %v4012
    %v5392 = vunpack.c.l.b16 %v4013
    %v5393 = vunpack.c.l.b16 %v4014
    %v5394 = vunpack.c.h.b16 %v4014
    %v5395 = vunpack.c.l.b16 %v4015
    %v5396 = vunpack.c.h.b16 %v4015
    %v5397 = vunpack.c.l.b16 %v4016
    %v5398 = vunpack.c.h.b16 %v4016
    %v5399 = vunpack.c.l.b16 %v4017
    %v5400 = vunpack.c.l.b16 %v4018
    %v5401 = vunpack.c.h.b16 %v4018
    %v5402 = vunpack.c.l.b16 %v4019
    %v5403 = vunpack.c.h.b16 %v4019
    %v5404 = vunpack.c.l.b16 %v4020
    %v5405 = vunpack.c.h.b16 %v4020
    %v5406 = vunpack.c.l.b16 %v4021
    %v5407 = vunpack.c.l.b16 %v4022
    %v5408 = vunpack.c.h.b16 %v4022
    %v5409 = vunpack.c.l.b16 %v4023
    %v5410 = vunpack.c.h.b16 %v4023
    %v5411 = vunpack.c.l.b16 %v4024
    %v5412 = vunpack.c.h.b16 %v4024
    %v5413 = vunpack.c.l.b16 %v4025
    %v5414 = vunpack.c.l.b16 %v4026
    %v5415 = vunpack.c.h.b16 %v4026
    %v5416 = vunpack.c.l.b16 %v4027
    %v5417 = vunpack.c.h.b16 %v4027
    %v5418 = vunpack.c.l.b16 %v4028
    %v5419 = vunpack.c.h.b16 %v4028
    %v5420 = vunpack.c.l.b16 %v4029
    %v5421 = vunpack.c.l.b16 %v4030
    %v5422 = vunpack.c.h.b16 %v4030
    %v5423 = vunpack.c.l.b16 %v4031
    %v5424 = vunpack.c.h.b16 %v4031
    %v5425 = vunpack.c.l.b16 %v4032
    %v5426 = vunpack.c.h.b16 %v4032
    %v5427 = vunpack.c.l.b16 %v4033
    %v5428 = vunpack.c.l.b16 %v4034
    %v5429 = vunpack.c.h.b16 %v4034
    %v5430 = vunpack.c.l.b16 %v4035
    %v5431 = vunpack.c.h.b16 %v4035
    %v5432 = vunpack.c.l.b16 %v4036
    %v5433 = vunpack.c.h.b16 %v4036
    %v5434 = vunpack.c.l.b16 %v4037
    %v5435 = vunpack.c.l.b16 %v4038
    %v5436 = vunpack.c.h.b16 %v4038
    %v5437 = vunpack.c.l.b16 %v4039
    %v5438 = vunpack.c.h.b16 %v4039
    %v5439 = vunpack.c.l.b16 %v4040
    %v5440 = vunpack.c.h.b16 %v4040
    %v5441 = vunpack.c.l.b16 %v4041
    %v5442 = vunpack.c.l.b16 %v4042
    %v5443 = vunpack.c.h.b16 %v4042
    %v5444 = vunpack.c.l.b16 %v4043
    %v5445 = vunpack.c.h.b16 %v4043
    %v5446 = vunpack.c.l.b16 %v4044
    %v5447 = vunpack.c.h.b16 %v4044
    %v5448 = vunpack.c.l.b16 %v4045
    %v5449 = vunpack.c.l.b16 %v4046
    %v5450 = vunpack.c.h.b16 %v4046
    %v5451 = vunpack.c.l.b16 %v4047
    %v5452 = vunpack.c.h.b16 %v4047
    %v5453 = vunpack.c.l.b16 %v4048
    %v5454 = vunpack.c.h.b16 %v4048
    %v5455 = vunpack.c.l.b16 %v4049
    %v5456 = vunpack.c.l.b16 %v4050
    %v5457 = vunpack.c.h.b16 %v4050
    %v5458 = vunpack.c.l.b16 %v4051
    %v5459 = vunpack.c.h.b16 %v4051
    %v5460 = vunpack.c.l.b16 %v4052
    %v5461 = vunpack.c.h.b16 %v4052
    %v5462 = vunpack.c.l.b16 %v4053
    %v5463 = vunpack.c.l.b16 %v4054
    %v5464 = vunpack.c.h.b16 %v4054
    %v5465 = vunpack.c.l.b16 %v4055
    %v5466 = vunpack.c.h.b16 %v4055
    %v5467 = vunpack.c.l.b16 %v4056
    %v5468 = vunpack.c.h.b16 %v4056
    %v5469 = vunpack.c.l.b16 %v4057
    %v5470 = vunpack.c.l.b16 %v4058
    %v5471 = vunpack.c.h.b16 %v4058
    %v5472 = vunpack.c.l.b16 %v4059
    %v5473 = vunpack.c.h.b16 %v4059
    %v5474 = vunpack.c.l.b16 %v4060
    %v5475 = vunpack.c.h.b16 %v4060
    %v5476 = vunpack.c.l.b16 %v4061
    %v5477 = vunpack.c.l.b16 %v4062
    %v5478 = vunpack.c.h.b16 %v4062
    %v5479 = vunpack.c.l.b16 %v4063
    %v5480 = vunpack.c.h.b16 %v4063
    %v5481 = vunpack.c.l.b16 %v4064
    %v5482 = vunpack.c.h.b16 %v4064
    %v5483 = vunpack.c.l.b16 %v4065
    %v5484 = vunpack.c.l.b16 %v4066
    %v5485 = vunpack.c.h.b16 %v4066
    %v5486 = vunpack.c.l.b16 %v4067
    %v5487 = vunpack.c.h.b16 %v4067
    %v5488 = vunpack.c.l.b16 %v4068
    %v5489 = vunpack.c.h.b16 %v4068
    %v5490 = vunpack.c.l.b16 %v4069
    %v5491 = vunpack.c.l.b16 %v4070
    %v5492 = vunpack.c.h.b16 %v4070
    %v5493 = vunpack.c.l.b16 %v4071
    %v5494 = vunpack.c.h.b16 %v4071
    %v5495 = vunpack.c.l.b16 %v4072
    %v5496 = vunpack.c.h.b16 %v4072
    %v5497 = vunpack.c.l.b16 %v4073
    %v5498 = vpack.c.b16 %v4609, %v4602
    %v5499 = vpack.c.b16 %v4610, %v4603
    %v5500 = vpack.c.b16 %v4611, %v4604
    %v5501 = vpack.c.b16 %v4612, %v4605
    %v5502 = vpack.c.b16 %v4613, %v4606
    %v5503 = vpack.c.b16 %v4614, %v4607
    %v5504 = vpack.c.b16 %v4615, %v4608
    %v5505 = vpack.c.b16 %v4623, %v4616
    %v5506 = vpack.c.b16 %v4624, %v4617
    %v5507 = vpack.c.b16 %v4625, %v4618
    %v5508 = vpack.c.b16 %v4626, %v4619
    %v5509 = vpack.c.b16 %v4627, %v4620
    %v5510 = vpack.c.b16 %v4628, %v4621
    %v5511 = vpack.c.b16 %v4629, %v4622
    %v5512 = vpack.c.b16 %v4637, %v4630
    %v5513 = vpack.c.b16 %v4638, %v4631
    %v5514 = vpack.c.b16 %v4639, %v4632
    %v5515 = vpack.c.b16 %v4640, %v4633
    %v5516 = vpack.c.b16 %v4641, %v4634
    %v5517 = vpack.c.b16 %v4642, %v4635
    %v5518 = vpack.c.b16 %v4643, %v4636
    %v5519 = vpack.c.b16 %v4651, %v4644
    %v5520 = vpack.c.b16 %v4652, %v4645
    %v5521 = vpack.c.b16 %v4653, %v4646
    %v5522 = vpack.c.b16 %v4654, %v4647
    %v5523 = vpack.c.b16 %v4655, %v4648
    %v5524 = vpack.c.b16 %v4656, %v4649
    %v5525 = vpack.c.b16 %v4657, %v4650
    %v5526 = vpack.c.b16 %v4665, %v4658
    %v5527 = vpack.c.b16 %v4666, %v4659
    %v5528 = vpack.c.b16 %v4667, %v4660
    %v5529 = vpack.c.b16 %v4668, %v4661
    %v5530 = vpack.c.b16 %v4669, %v4662
    %v5531 = vpack.c.b16 %v4670, %v4663
    %v5532 = vpack.c.b16 %v4671, %v4664
    %v5533 = vpack.c.b16 %v4679, %v4672
    %v5534 = vpack.c.b16 %v4680, %v4673
    %v5535 = vpack.c.b16 %v4681, %v4674
    %v5536 = vpack.c.b16 %v4682, %v4675
    %v5537 = vpack.c.b16 %v4683, %v4676
    %v5538 = vpack.c.b16 %v4684, %v4677
    %v5539 = vpack.c.b16 %v4685, %v4678
    %v5540 = vpack.c.b16 %v4693, %v4686
    %v5541 = vpack.c.b16 %v4694, %v4687
    %v5542 = vpack.c.b16 %v4695, %v4688
    %v5543 = vpack.c.b16 %v4696, %v4689
    %v5544 = vpack.c.b16 %v4697, %v4690
    %v5545 = vpack.c.b16 %v4698, %v4691
    %v5546 = vpack.c.b16 %v4699, %v4692
    %v5547 = vpack.c.b16 %v4707, %v4700
    %v5548 = vpack.c.b16 %v4708, %v4701
    %v5549 = vpack.c.b16 %v4709, %v4702
    %v5550 = vpack.c.b16 %v4710, %v4703
    %v5551 = vpack.c.b16 %v4711, %v4704
    %v5552 = vpack.c.b16 %v4712, %v4705
    %v5553 = vpack.c.b16 %v4713, %v4706
    %v5554 = vpack.c.b16 %v4721, %v4714
    %v5555 = vpack.c.b16 %v4722, %v4715
    %v5556 = vpack.c.b16 %v4723, %v4716
    %v5557 = vpack.c.b16 %v4724, %v4717
    %v5558 = vpack.c.b16 %v4725, %v4718
    %v5559 = vpack.c.b16 %v4726, %v4719
    %v5560 = vpack.c.b16 %v4727, %v4720
    %v5561 = vpack.c.b16 %v4735, %v4728
    %v5562 = vpack.c.b16 %v4736, %v4729
    %v5563 = vpack.c.b16 %v4737, %v4730
    %v5564 = vpack.c.b16 %v4738, %v4731
    %v5565 = vpack.c.b16 %v4739, %v4732
    %v5566 = vpack.c.b16 %v4740, %v4733
    %v5567 = vpack.c.b16 %v4741, %v4734
    %v5568 = vpack.c.b16 %v4749, %v4742
    %v5569 = vpack.c.b16 %v4750, %v4743
    %v5570 = vpack.c.b16 %v4751, %v4744
    %v5571 = vpack.c.b16 %v4752, %v4745
    %v5572 = vpack.c.b16 %v4753, %v4746
    %v5573 = vpack.c.b16 %v4754, %v4747
    %v5574 = vpack.c.b16 %v4755, %v4748
    %v5575 = vpack.c.b16 %v4763, %v4756
    %v5576 = vpack.c.b16 %v4764, %v4757
    %v5577 = vpack.c.b16 %v4765, %v4758
    %v5578 = vpack.c.b16 %v4766, %v4759
    %v5579 = vpack.c.b16 %v4767, %v4760
    %v5580 = vpack.c.b16 %v4768, %v4761
    %v5581 = vpack.c.b16 %v4769, %v4762
    %v5582 = vpack.c.b16 %v4777, %v4770
    %v5583 = vpack.c.b16 %v4778, %v4771
    %v5584 = vpack.c.b16 %v4779, %v4772
    %v5585 = vpack.c.b16 %v4780, %v4773
    %v5586 = vpack.c.b16 %v4781, %v4774
    %v5587 = vpack.c.b16 %v4782, %v4775
    %v5588 = vpack.c.b16 %v4783, %v4776
    %v5589 = vpack.c.b16 %v4791, %v4784
    %v5590 = vpack.c.b16 %v4792, %v4785
    %v5591 = vpack.c.b16 %v4793, %v4786
    %v5592 = vpack.c.b16 %v4794, %v4787
    %v5593 = vpack.c.b16 %v4795, %v4788
    %v5594 = vpack.c.b16 %v4796, %v4789
    %v5595 = vpack.c.b16 %v4797, %v4790
    %v5596 = vpack.c.b16 %v4805, %v4798
    %v5597 = vpack.c.b16 %v4806, %v4799
    %v5598 = vpack.c.b16 %v4807, %v4800
    %v5599 = vpack.c.b16 %v4808, %v4801
    %v5600 = vpack.c.b16 %v4809, %v4802
    %v5601 = vpack.c.b16 %v4810, %v4803
    %v5602 = vpack.c.b16 %v4811, %v4804
    %v5603 = vpack.c.b16 %v4819, %v4812
    %v5604 = vpack.c.b16 %v4820, %v4813
    %v5605 = vpack.c.b16 %v4821, %v4814
    %v5606 = vpack.c.b16 %v4822, %v4815
    %v5607 = vpack.c.b16 %v4823, %v4816
    %v5608 = vpack.c.b16 %v4824, %v4817
    %v5609 = vpack.c.b16 %v4825, %v4818
    %v5610 = vpack.c.b16 %v4833, %v4826
    %v5611 = vpack.c.b16 %v4834, %v4827
    %v5612 = vpack.c.b16 %v4835, %v4828
    %v5613 = vpack.c.b16 %v4836, %v4829
    %v5614 = vpack.c.b16 %v4837, %v4830
    %v5615 = vpack.c.b16 %v4838, %v4831
    %v5616 = vpack.c.b16 %v4839, %v4832
    %v5617 = vpack.c.b16 %v4847, %v4840
    %v5618 = vpack.c.b16 %v4848, %v4841
    %v5619 = vpack.c.b16 %v4849, %v4842
    %v5620 = vpack.c.b16 %v4850, %v4843
    %v5621 = vpack.c.b16 %v4851, %v4844
    %v5622 = vpack.c.b16 %v4852, %v4845
    %v5623 = vpack.c.b16 %v4853, %v4846
    %v5624 = vpack.c.b16 %v4861, %v4854
    %v5625 = vpack.c.b16 %v4862, %v4855
    %v5626 = vpack.c.b16 %v4863, %v4856
    %v5627 = vpack.c.b16 %v4864, %v4857
    %v5628 = vpack.c.b16 %v4865, %v4858
    %v5629 = vpack.c.b16 %v4866, %v4859
    %v5630 = vpack.c.b16 %v4867, %v4860
    %v5631 = vpack.c.b16 %v4875, %v4868
    %v5632 = vpack.c.b16 %v4876, %v4869
    %v5633 = vpack.c.b16 %v4877, %v4870
    %v5634 = vpack.c.b16 %v4878, %v4871
    %v5635 = vpack.c.b16 %v4879, %v4872
    %v5636 = vpack.c.b16 %v4880, %v4873
    %v5637 = vpack.c.b16 %v4881, %v4874
    %v5638 = vpack.c.b16 %v4889, %v4882
    %v5639 = vpack.c.b16 %v4890, %v4883
    %v5640 = vpack.c.b16 %v4891, %v4884
    %v5641 = vpack.c.b16 %v4892, %v4885
    %v5642 = vpack.c.b16 %v4893, %v4886
    %v5643 = vpack.c.b16 %v4894, %v4887
    %v5644 = vpack.c.b16 %v4895, %v4888
    %v5645 = vpack.c.b16 %v4903, %v4896
    %v5646 = vpack.c.b16 %v4904, %v4897
    %v5647 = vpack.c.b16 %v4905, %v4898
    %v5648 = vpack.c.b16 %v4906, %v4899
    %v5649 = vpack.c.b16 %v4907, %v4900
    %v5650 = vpack.c.b16 %v4908, %v4901
    %v5651 = vpack.c.b16 %v4909, %v4902
    %v5652 = vpack.c.b16 %v4917, %v4910
    %v5653 = vpack.c.b16 %v4918, %v4911
    %v5654 = vpack.c.b16 %v4919, %v4912
    %v5655 = vpack.c.b16 %v4920, %v4913
    %v5656 = vpack.c.b16 %v4921, %v4914
    %v5657 = vpack.c.b16 %v4922, %v4915
    %v5658 = vpack.c.b16 %v4923, %v4916
    %v5659 = vpack.c.b16 %v4931, %v4924
    %v5660 = vpack.c.b16 %v4932, %v4925
    %v5661 = vpack.c.b16 %v4933, %v4926
    %v5662 = vpack.c.b16 %v4934, %v4927
    %v5663 = vpack.c.b16 %v4935, %v4928
    %v5664 = vpack.c.b16 %v4936, %v4929
    %v5665 = vpack.c.b16 %v4937, %v4930
    %v5666 = vpack.c.b16 %v4945, %v4938
    %v5667 = vpack.c.b16 %v4946, %v4939
    %v5668 = vpack.c.b16 %v4947, %v4940
    %v5669 = vpack.c.b16 %v4948, %v4941
    %v5670 = vpack.c.b16 %v4949, %v4942
    %v5671 = vpack.c.b16 %v4950, %v4943
    %v5672 = vpack.c.b16 %v4951, %v4944
    %v5673 = vpack.c.b16 %v4959, %v4952
    %v5674 = vpack.c.b16 %v4960, %v4953
    %v5675 = vpack.c.b16 %v4961, %v4954
    %v5676 = vpack.c.b16 %v4962, %v4955
    %v5677 = vpack.c.b16 %v4963, %v4956
    %v5678 = vpack.c.b16 %v4964, %v4957
    %v5679 = vpack.c.b16 %v4965, %v4958
    %v5680 = vpack.c.b16 %v4973, %v4966
    %v5681 = vpack.c.b16 %v4974, %v4967
    %v5682 = vpack.c.b16 %v4975, %v4968
    %v5683 = vpack.c.b16 %v4976, %v4969
    %v5684 = vpack.c.b16 %v4977, %v4970
    %v5685 = vpack.c.b16 %v4978, %v4971
    %v5686 = vpack.c.b16 %v4979, %v4972
    %v5687 = vpack.c.b16 %v4987, %v4980
    %v5688 = vpack.c.b16 %v4988, %v4981
    %v5689 = vpack.c.b16 %v4989, %v4982
    %v5690 = vpack.c.b16 %v4990, %v4983
    %v5691 = vpack.c.b16 %v4991, %v4984
    %v5692 = vpack.c.b16 %v4992, %v4985
    %v5693 = vpack.c.b16 %v4993, %v4986
    %v5694 = vpack.c.b16 %v5001, %v4994
    %v5695 = vpack.c.b16 %v5002, %v4995
    %v5696 = vpack.c.b16 %v5003, %v4996
    %v5697 = vpack.c.b16 %v5004, %v4997
    %v5698 = vpack.c.b16 %v5005, %v4998
    %v5699 = vpack.c.b16 %v5006, %v4999
    %v5700 = vpack.c.b16 %v5007, %v5000
    %v5701 = vpack.c.b16 %v5015, %v5008
    %v5702 = vpack.c.b16 %v5016, %v5009
    %v5703 = vpack.c.b16 %v5017, %v5010
    %v5704 = vpack.c.b16 %v5018, %v5011
    %v5705 = vpack.c.b16 %v5019, %v5012
    %v5706 = vpack.c.b16 %v5020, %v5013
    %v5707 = vpack.c.b16 %v5021, %v5014
    %v5708 = vpack.c.b16 %v5029, %v5022
    %v5709 = vpack.c.b16 %v5030, %v5023
    %v5710 = vpack.c.b16 %v5031, %v5024
    %v5711 = vpack.c.b16 %v5032, %v5025
    %v5712 = vpack.c.b16 %v5033, %v5026
    %v5713 = vpack.c.b16 %v5034, %v5027
    %v5714 = vpack.c.b16 %v5035, %v5028
    %v5715 = vpack.c.b16 %v5043, %v5036
    %v5716 = vpack.c.b16 %v5044, %v5037
    %v5717 = vpack.c.b16 %v5045, %v5038
    %v5718 = vpack.c.b16 %v5046, %v5039
    %v5719 = vpack.c.b16 %v5047, %v5040
    %v5720 = vpack.c.b16 %v5048, %v5041
    %v5721 = vpack.c.b16 %v5049, %v5042
    %v5722 = vpack.c.b16 %v5057, %v5050
    %v5723 = vpack.c.b16 %v5058, %v5051
    %v5724 = vpack.c.b16 %v5059, %v5052
    %v5725 = vpack.c.b16 %v5060, %v5053
    %v5726 = vpack.c.b16 %v5061, %v5054
    %v5727 = vpack.c.b16 %v5062, %v5055
    %v5728 = vpack.c.b16 %v5063, %v5056
    %v5729 = vpack.c.b16 %v5071, %v5064
    %v5730 = vpack.c.b16 %v5072, %v5065
    %v5731 = vpack.c.b16 %v5073, %v5066
    %v5732 = vpack.c.b16 %v5074, %v5067
    %v5733 = vpack.c.b16 %v5075, %v5068
    %v5734 = vpack.c.b16 %v5076, %v5069
    %v5735 = vpack.c.b16 %v5077, %v5070
    %v5736 = vpack.c.b16 %v5085, %v5078
    %v5737 = vpack.c.b16 %v5086, %v5079
    %v5738 = vpack.c.b16 %v5087, %v5080
    %v5739 = vpack.c.b16 %v5088, %v5081
    %v5740 = vpack.c.b16 %v5089, %v5082
    %v5741 = vpack.c.b16 %v5090, %v5083
    %v5742 = vpack.c.b16 %v5091, %v5084
    %v5743 = vpack.c.b16 %v5099, %v5092
    %v5744 = vpack.c.b16 %v5100, %v5093
    %v5745 = vpack.c.b16 %v5101, %v5094
    %v5746 = vpack.c.b16 %v5102, %v5095
    %v5747 = vpack.c.b16 %v5103, %v5096
    %v5748 = vpack.c.b16 %v5104, %v5097
    %v5749 = vpack.c.b16 %v5105, %v5098
    %v5750 = vpack.c.b16 %v5113, %v5106
    %v5751 = vpack.c.b16 %v5114, %v5107
    %v5752 = vpack.c.b16 %v5115, %v5108
    %v5753 = vpack.c.b16 %v5116, %v5109
    %v5754 = vpack.c.b16 %v5117, %v5110
    %v5755 = vpack.c.b16 %v5118, %v5111
    %v5756 = vpack.c.b16 %v5119, %v5112
    %v5757 = vpack.c.b16 %v5127, %v5120
    %v5758 = vpack.c.b16 %v5128, %v5121
    %v5759 = vpack.c.b16 %v5129, %v5122
    %v5760 = vpack.c.b16 %v5130, %v5123
    %v5761 = vpack.c.b16 %v5131, %v5124
    %v5762 = vpack.c.b16 %v5132, %v5125
    %v5763 = vpack.c.b16 %v5133, %v5126
    %v5764 = vpack.c.b16 %v5141, %v5134
    %v5765 = vpack.c.b16 %v5142, %v5135
    %v5766 = vpack.c.b16 %v5143, %v5136
    %v5767 = vpack.c.b16 %v5144, %v5137
    %v5768 = vpack.c.b16 %v5145, %v5138
    %v5769 = vpack.c.b16 %v5146, %v5139
    %v5770 = vpack.c.b16 %v5147, %v5140
    %v5771 = vpack.c.b16 %v5155, %v5148
    %v5772 = vpack.c.b16 %v5156, %v5149
    %v5773 = vpack.c.b16 %v5157, %v5150
    %v5774 = vpack.c.b16 %v5158, %v5151
    %v5775 = vpack.c.b16 %v5159, %v5152
    %v5776 = vpack.c.b16 %v5160, %v5153
    %v5777 = vpack.c.b16 %v5161, %v5154
    %v5778 = vpack.c.b16 %v5169, %v5162
    %v5779 = vpack.c.b16 %v5170, %v5163
    %v5780 = vpack.c.b16 %v5171, %v5164
    %v5781 = vpack.c.b16 %v5172, %v5165
    %v5782 = vpack.c.b16 %v5173, %v5166
    %v5783 = vpack.c.b16 %v5174, %v5167
    %v5784 = vpack.c.b16 %v5175, %v5168
    %v5785 = vpack.c.b16 %v5183, %v5176
    %v5786 = vpack.c.b16 %v5184, %v5177
    %v5787 = vpack.c.b16 %v5185, %v5178
    %v5788 = vpack.c.b16 %v5186, %v5179
    %v5789 = vpack.c.b16 %v5187, %v5180
    %v5790 = vpack.c.b16 %v5188, %v5181
    %v5791 = vpack.c.b16 %v5189, %v5182
    %v5792 = vpack.c.b16 %v5197, %v5190
    %v5793 = vpack.c.b16 %v5198, %v5191
    %v5794 = vpack.c.b16 %v5199, %v5192
    %v5795 = vpack.c.b16 %v5200, %v5193
    %v5796 = vpack.c.b16 %v5201, %v5194
    %v5797 = vpack.c.b16 %v5202, %v5195
    %v5798 = vpack.c.b16 %v5203, %v5196
    %v5799 = vpack.c.b16 %v5211, %v5204
    %v5800 = vpack.c.b16 %v5212, %v5205
    %v5801 = vpack.c.b16 %v5213, %v5206
    %v5802 = vpack.c.b16 %v5214, %v5207
    %v5803 = vpack.c.b16 %v5215, %v5208
    %v5804 = vpack.c.b16 %v5216, %v5209
    %v5805 = vpack.c.b16 %v5217, %v5210
    %v5806 = vpack.c.b16 %v5225, %v5218
    %v5807 = vpack.c.b16 %v5226, %v5219
    %v5808 = vpack.c.b16 %v5227, %v5220
    %v5809 = vpack.c.b16 %v5228, %v5221
    %v5810 = vpack.c.b16 %v5229, %v5222
    %v5811 = vpack.c.b16 %v5230, %v5223
    %v5812 = vpack.c.b16 %v5231, %v5224
    %v5813 = vpack.c.b16 %v5239, %v5232
    %v5814 = vpack.c.b16 %v5240, %v5233
    %v5815 = vpack.c.b16 %v5241, %v5234
    %v5816 = vpack.c.b16 %v5242, %v5235
    %v5817 = vpack.c.b16 %v5243, %v5236
    %v5818 = vpack.c.b16 %v5244, %v5237
    %v5819 = vpack.c.b16 %v5245, %v5238
    %v5820 = vpack.c.b16 %v5253, %v5246
    %v5821 = vpack.c.b16 %v5254, %v5247
    %v5822 = vpack.c.b16 %v5255, %v5248
    %v5823 = vpack.c.b16 %v5256, %v5249
    %v5824 = vpack.c.b16 %v5257, %v5250
    %v5825 = vpack.c.b16 %v5258, %v5251
    %v5826 = vpack.c.b16 %v5259, %v5252
    %v5827 = vpack.c.b16 %v5267, %v5260
    %v5828 = vpack.c.b16 %v5268, %v5261
    %v5829 = vpack.c.b16 %v5269, %v5262
    %v5830 = vpack.c.b16 %v5270, %v5263
    %v5831 = vpack.c.b16 %v5271, %v5264
    %v5832 = vpack.c.b16 %v5272, %v5265
    %v5833 = vpack.c.b16 %v5273, %v5266
    %v5834 = vpack.c.b16 %v5281, %v5274
    %v5835 = vpack.c.b16 %v5282, %v5275
    %v5836 = vpack.c.b16 %v5283, %v5276
    %v5837 = vpack.c.b16 %v5284, %v5277
    %v5838 = vpack.c.b16 %v5285, %v5278
    %v5839 = vpack.c.b16 %v5286, %v5279
    %v5840 = vpack.c.b16 %v5287, %v5280
    %v5841 = vpack.c.b16 %v5295, %v5288
    %v5842 = vpack.c.b16 %v5296, %v5289
    %v5843 = vpack.c.b16 %v5297, %v5290
    %v5844 = vpack.c.b16 %v5298, %v5291
    %v5845 = vpack.c.b16 %v5299, %v5292
    %v5846 = vpack.c.b16 %v5300, %v5293
    %v5847 = vpack.c.b16 %v5301, %v5294
    %v5848 = vpack.c.b16 %v5309, %v5302
    %v5849 = vpack.c.b16 %v5310, %v5303
    %v5850 = vpack.c.b16 %v5311, %v5304
    %v5851 = vpack.c.b16 %v5312, %v5305
    %v5852 = vpack.c.b16 %v5313, %v5306
    %v5853 = vpack.c.b16 %v5314, %v5307
    %v5854 = vpack.c.b16 %v5315, %v5308
    %v5855 = vpack.c.b16 %v5323, %v5316
    %v5856 = vpack.c.b16 %v5324, %v5317
    %v5857 = vpack.c.b16 %v5325, %v5318
    %v5858 = vpack.c.b16 %v5326, %v5319
    %v5859 = vpack.c.b16 %v5327, %v5320
    %v5860 = vpack.c.b16 %v5328, %v5321
    %v5861 = vpack.c.b16 %v5329, %v5322
    %v5862 = vpack.c.b16 %v5337, %v5330
    %v5863 = vpack.c.b16 %v5338, %v5331
    %v5864 = vpack.c.b16 %v5339, %v5332
    %v5865 = vpack.c.b16 %v5340, %v5333
    %v5866 = vpack.c.b16 %v5341, %v5334
    %v5867 = vpack.c.b16 %v5342, %v5335
    %v5868 = vpack.c.b16 %v5343, %v5336
    %v5869 = vpack.c.b16 %v5351, %v5344
    %v5870 = vpack.c.b16 %v5352, %v5345
    %v5871 = vpack.c.b16 %v5353, %v5346
    %v5872 = vpack.c.b16 %v5354, %v5347
    %v5873 = vpack.c.b16 %v5355, %v5348
    %v5874 = vpack.c.b16 %v5356, %v5349
    %v5875 = vpack.c.b16 %v5357, %v5350
    %v5876 = vpack.c.b16 %v5365, %v5358
    %v5877 = vpack.c.b16 %v5366, %v5359
    %v5878 = vpack.c.b16 %v5367, %v5360
    %v5879 = vpack.c.b16 %v5368, %v5361
    %v5880 = vpack.c.b16 %v5369, %v5362
    %v5881 = vpack.c.b16 %v5370, %v5363
    %v5882 = vpack.c.b16 %v5371, %v5364
    %v5883 = vpack.c.b16 %v5379, %v5372
    %v5884 = vpack.c.b16 %v5380, %v5373
    %v5885 = vpack.c.b16 %v5381, %v5374
    %v5886 = vpack.c.b16 %v5382, %v5375
    %v5887 = vpack.c.b16 %v5383, %v5376
    %v5888 = vpack.c.b16 %v5384, %v5377
    %v5889 = vpack.c.b16 %v5385, %v5378
    %v5890 = vpack.c.b16 %v5393, %v5386
    %v5891 = vpack.c.b16 %v5394, %v5387
    %v5892 = vpack.c.b16 %v5395, %v5388
    %v5893 = vpack.c.b16 %v5396, %v5389
    %v5894 = vpack.c.b16 %v5397, %v5390
    %v5895 = vpack.c.b16 %v5398, %v5391
    %v5896 = vpack.c.b16 %v5399, %v5392
    %v5897 = vpack.c.b16 %v5407, %v5400
    %v5898 = vpack.c.b16 %v5408, %v5401
    %v5899 = vpack.c.b16 %v5409, %v5402
    %v5900 = vpack.c.b16 %v5410, %v5403
    %v5901 = vpack.c.b16 %v5411, %v5404
    %v5902 = vpack.c.b16 %v5412, %v5405
    %v5903 = vpack.c.b16 %v5413, %v5406
    %v5904 = vpack.c.b16 %v5421, %v5414
    %v5905 = vpack.c.b16 %v5422, %v5415
    %v5906 = vpack.c.b16 %v5423, %v5416
    %v5907 = vpack.c.b16 %v5424, %v5417
    %v5908 = vpack.c.b16 %v5425, %v5418
    %v5909 = vpack.c.b16 %v5426, %v5419
    %v5910 = vpack.c.b16 %v5427, %v5420
    %v5911 = vpack.c.b16 %v5435, %v5428
    %v5912 = vpack.c.b16 %v5436, %v5429
    %v5913 = vpack.c.b16 %v5437, %v5430
    %v5914 = vpack.c.b16 %v5438, %v5431
    %v5915 = vpack.c.b16 %v5439, %v5432
    %v5916 = vpack.c.b16 %v5440, %v5433
    %v5917 = vpack.c.b16 %v5441, %v5434
    %v5918 = vpack.c.b16 %v5449, %v5442
    %v5919 = vpack.c.b16 %v5450, %v5443
    %v5920 = vpack.c.b16 %v5451, %v5444
    %v5921 = vpack.c.b16 %v5452, %v5445
    %v5922 = vpack.c.b16 %v5453, %v5446
    %v5923 = vpack.c.b16 %v5454, %v5447
    %v5924 = vpack.c.b16 %v5455, %v5448
    %v5925 = vpack.c.b16 %v5463, %v5456
    %v5926 = vpack.c.b16 %v5464, %v5457
    %v5927 = vpack.c.b16 %v5465, %v5458
    %v5928 = vpack.c.b16 %v5466, %v5459
    %v5929 = vpack.c.b16 %v5467, %v5460
    %v5930 = vpack.c.b16 %v5468, %v5461
    %v5931 = vpack.c.b16 %v5469, %v5462
    %v5932 = vpack.c.b16 %v5477, %v5470
    %v5933 = vpack.c.b16 %v5478, %v5471
    %v5934 = vpack.c.b16 %v5479, %v5472
    %v5935 = vpack.c.b16 %v5480, %v5473
    %v5936 = vpack.c.b16 %v5481, %v5474
    %v5937 = vpack.c.b16 %v5482, %v5475
    %v5938 = vpack.c.b16 %v5483, %v5476
    %v5939 = vpack.c.b16 %v5491, %v5484
    %v5940 = vpack.c.b16 %v5492, %v5485
    %v5941 = vpack.c.b16 %v5493, %v5486
    %v5942 = vpack.c.b16 %v5494, %v5487
    %v5943 = vpack.c.b16 %v5495, %v5488
    %v5944 = vpack.c.b16 %v5496, %v5489
    %v5945 = vpack.c.b16 %v5497, %v5490
    %6394 = vmatpush.bf16.msra.mxu0 %v5547
    %6395 = vmatpush.bf16.msra.mxu0 %v5540
    %6396 = vmatpush.bf16.msra.mxu0 %v5533
    %6397 = vmatpush.bf16.msra.mxu0 %v5526
    %6398 = vmatpush.bf16.msra.mxu0 %v5519
    %6399 = vmatpush.bf16.msra.mxu0 %v5512
    %6400 = vmatpush.bf16.msra.mxu0 %v5505
    %6401 = vmatpush.bf16.msra.mxu0 %v5498
    %6402 = vmatmul.bf16.gmra.mxu0 %v3554
    %v6403 = vpop.f32.mrf.mxu0
    %v6404 = vadd.f32 %v4076, %v6403
    %v6405 = vpop.f32.mrf.mxu0
    %6406 = vdwg.mxu0
    %6407 = vmatpush.bf16.msra.mxu0 %v5603
    %6408 = vmatpush.bf16.msra.mxu0 %v5596
    %6409 = vmatpush.bf16.msra.mxu0 %v5589
    %6410 = vmatpush.bf16.msra.mxu0 %v5582
    %6411 = vmatpush.bf16.msra.mxu0 %v5575
    %6412 = vmatpush.bf16.msra.mxu0 %v5568
    %6413 = vmatpush.bf16.msra.mxu0 %v5561
    %6414 = vmatpush.bf16.msra.mxu0 %v5554
    %6415 = vmatmul.bf16.gmra.mxu0 %v3555
    %v6416 = vpop.f32.mrf.mxu0
    %v6417 = vadd.f32 %v6404, %v6416
    %v6418 = vpop.f32.mrf.mxu0
    %6419 = vdwg.mxu0
    %6420 = vmatpush.bf16.msra.mxu0 %v5659
    %6421 = vmatpush.bf16.msra.mxu0 %v5652
    %6422 = vmatpush.bf16.msra.mxu0 %v5645
    %6423 = vmatpush.bf16.msra.mxu0 %v5638
    %6424 = vmatpush.bf16.msra.mxu0 %v5631
    %6425 = vmatpush.bf16.msra.mxu0 %v5624
    %6426 = vmatpush.bf16.msra.mxu0 %v5617
    %6427 = vmatpush.bf16.msra.mxu0 %v5610
    %6428 = vmatmul.bf16.gmra.mxu0 %v3556
    %v6429 = vpop.f32.mrf.mxu0
    %v6430 = vadd.f32 %v6417, %v6429
    %v6431 = vpop.f32.mrf.mxu0
    %6432 = vdwg.mxu0
    %6433 = vmatpush.bf16.msra.mxu0 %v5715
    %6434 = vmatpush.bf16.msra.mxu0 %v5708
    %6435 = vmatpush.bf16.msra.mxu0 %v5701
    %6436 = vmatpush.bf16.msra.mxu0 %v5694
    %6437 = vmatpush.bf16.msra.mxu0 %v5687
    %6438 = vmatpush.bf16.msra.mxu0 %v5680
    %6439 = vmatpush.bf16.msra.mxu0 %v5673
    %6440 = vmatpush.bf16.msra.mxu0 %v5666
    %6441 = vmatmul.bf16.gmra.mxu0 %v3557
    %v6442 = vpop.f32.mrf.mxu0
    %v6443 = vadd.f32 %v6430, %v6442
    %v6444 = vpop.f32.mrf.mxu0
    %6445 = vdwg.mxu0
    %6446 = vmatpush.bf16.msra.mxu0 %v5771
    %6447 = vmatpush.bf16.msra.mxu0 %v5764
    %6448 = vmatpush.bf16.msra.mxu0 %v5757
    %6449 = vmatpush.bf16.msra.mxu0 %v5750
    %6450 = vmatpush.bf16.msra.mxu0 %v5743
    %6451 = vmatpush.bf16.msra.mxu0 %v5736
    %6452 = vmatpush.bf16.msra.mxu0 %v5729
    %6453 = vmatpush.bf16.msra.mxu0 %v5722
    %6454 = vmatmul.bf16.gmra.mxu0 %v3558
    %v6455 = vpop.f32.mrf.mxu0
    %v6456 = vadd.f32 %v6443, %v6455
    %v6457 = vpop.f32.mrf.mxu0
    %6458 = vdwg.mxu0
    %6459 = vmatpush.bf16.msra.mxu0 %v5827
    %6460 = vmatpush.bf16.msra.mxu0 %v5820
    %6461 = vmatpush.bf16.msra.mxu0 %v5813
    %6462 = vmatpush.bf16.msra.mxu0 %v5806
    %6463 = vmatpush.bf16.msra.mxu0 %v5799
    %6464 = vmatpush.bf16.msra.mxu0 %v5792
    %6465 = vmatpush.bf16.msra.mxu0 %v5785
    %6466 = vmatpush.bf16.msra.mxu0 %v5778
    %6467 = vmatmul.bf16.gmra.mxu0 %v3559
    %v6468 = vpop.f32.mrf.mxu0
    %v6469 = vadd.f32 %v6456, %v6468
    %v6470 = vpop.f32.mrf.mxu0
    %6471 = vdwg.mxu0
    %6472 = vmatpush.bf16.msra.mxu0 %v5883
    %6473 = vmatpush.bf16.msra.mxu0 %v5876
    %6474 = vmatpush.bf16.msra.mxu0 %v5869
    %6475 = vmatpush.bf16.msra.mxu0 %v5862
    %6476 = vmatpush.bf16.msra.mxu0 %v5855
    %6477 = vmatpush.bf16.msra.mxu0 %v5848
    %6478 = vmatpush.bf16.msra.mxu0 %v5841
    %6479 = vmatpush.bf16.msra.mxu0 %v5834
    %6480 = vmatmul.bf16.gmra.mxu0 %v3560
    %v6481 = vpop.f32.mrf.mxu0
    %v6482 = vadd.f32 %v6469, %v6481
    %v6483 = vpop.f32.mrf.mxu0
    %6484 = vdwg.mxu0
    %6485 = vmatpush.bf16.msra.mxu0 %v5939
    %6486 = vmatpush.bf16.msra.mxu0 %v5932
    %6487 = vmatpush.bf16.msra.mxu0 %v5925
    %6488 = vmatpush.bf16.msra.mxu0 %v5918
    %6489 = vmatpush.bf16.msra.mxu0 %v5911
    %6490 = vmatpush.bf16.msra.mxu0 %v5904
    %6491 = vmatpush.bf16.msra.mxu0 %v5897
    %6492 = vmatpush.bf16.msra.mxu0 %v5890
    %6493 = vmatmul.bf16.gmra.mxu0 %v3561
    %v6494 = vpop.f32.mrf.mxu0
    %v6495 = vadd.f32 %v6482, %v6494
    %v6496 = vpop.f32.mrf.mxu0
    %6497 = vdwg.mxu0
    %6498 = vmatpush.bf16.msra.mxu0 %v5548
    %6499 = vmatpush.bf16.msra.mxu0 %v5541
    %6500 = vmatpush.bf16.msra.mxu0 %v5534
    %6501 = vmatpush.bf16.msra.mxu0 %v5527
    %6502 = vmatpush.bf16.msra.mxu0 %v5520
    %6503 = vmatpush.bf16.msra.mxu0 %v5513
    %6504 = vmatpush.bf16.msra.mxu0 %v5506
    %6505 = vmatpush.bf16.msra.mxu0 %v5499
    %6506 = vmatmul.bf16.gmra.mxu0 %v3554
    %v6507 = vpop.f32.mrf.mxu0
    %v6508 = vadd.f32 %v4077, %v6507
    %v6509 = vpop.f32.mrf.mxu0
    %6510 = vdwg.mxu0
    %6511 = vmatpush.bf16.msra.mxu0 %v5604
    %6512 = vmatpush.bf16.msra.mxu0 %v5597
    %6513 = vmatpush.bf16.msra.mxu0 %v5590
    %6514 = vmatpush.bf16.msra.mxu0 %v5583
    %6515 = vmatpush.bf16.msra.mxu0 %v5576
    %6516 = vmatpush.bf16.msra.mxu0 %v5569
    %6517 = vmatpush.bf16.msra.mxu0 %v5562
    %6518 = vmatpush.bf16.msra.mxu0 %v5555
    %6519 = vmatmul.bf16.gmra.mxu0 %v3555
    %v6520 = vpop.f32.mrf.mxu0
    %v6521 = vadd.f32 %v6508, %v6520
    %v6522 = vpop.f32.mrf.mxu0
    %6523 = vdwg.mxu0
    %6524 = vmatpush.bf16.msra.mxu0 %v5660
    %6525 = vmatpush.bf16.msra.mxu0 %v5653
    %6526 = vmatpush.bf16.msra.mxu0 %v5646
    %6527 = vmatpush.bf16.msra.mxu0 %v5639
    %6528 = vmatpush.bf16.msra.mxu0 %v5632
    %6529 = vmatpush.bf16.msra.mxu0 %v5625
    %6530 = vmatpush.bf16.msra.mxu0 %v5618
    %6531 = vmatpush.bf16.msra.mxu0 %v5611
    %6532 = vmatmul.bf16.gmra.mxu0 %v3556
    %v6533 = vpop.f32.mrf.mxu0
    %v6534 = vadd.f32 %v6521, %v6533
    %v6535 = vpop.f32.mrf.mxu0
    %6536 = vdwg.mxu0
    %6537 = vmatpush.bf16.msra.mxu0 %v5716
    %6538 = vmatpush.bf16.msra.mxu0 %v5709
    %6539 = vmatpush.bf16.msra.mxu0 %v5702
    %6540 = vmatpush.bf16.msra.mxu0 %v5695
    %6541 = vmatpush.bf16.msra.mxu0 %v5688
    %6542 = vmatpush.bf16.msra.mxu0 %v5681
    %6543 = vmatpush.bf16.msra.mxu0 %v5674
    %6544 = vmatpush.bf16.msra.mxu0 %v5667
    %6545 = vmatmul.bf16.gmra.mxu0 %v3557
    %v6546 = vpop.f32.mrf.mxu0
    %v6547 = vadd.f32 %v6534, %v6546
    %v6548 = vpop.f32.mrf.mxu0
    %6549 = vdwg.mxu0
    %6550 = vmatpush.bf16.msra.mxu0 %v5772
    %6551 = vmatpush.bf16.msra.mxu0 %v5765
    %6552 = vmatpush.bf16.msra.mxu0 %v5758
    %6553 = vmatpush.bf16.msra.mxu0 %v5751
    %6554 = vmatpush.bf16.msra.mxu0 %v5744
    %6555 = vmatpush.bf16.msra.mxu0 %v5737
    %6556 = vmatpush.bf16.msra.mxu0 %v5730
    %6557 = vmatpush.bf16.msra.mxu0 %v5723
    %6558 = vmatmul.bf16.gmra.mxu0 %v3558
    %v6559 = vpop.f32.mrf.mxu0
    %v6560 = vadd.f32 %v6547, %v6559
    %v6561 = vpop.f32.mrf.mxu0
    %6562 = vdwg.mxu0
    %6563 = vmatpush.bf16.msra.mxu0 %v5828
    %6564 = vmatpush.bf16.msra.mxu0 %v5821
    %6565 = vmatpush.bf16.msra.mxu0 %v5814
    %6566 = vmatpush.bf16.msra.mxu0 %v5807
    %6567 = vmatpush.bf16.msra.mxu0 %v5800
    %6568 = vmatpush.bf16.msra.mxu0 %v5793
    %6569 = vmatpush.bf16.msra.mxu0 %v5786
    %6570 = vmatpush.bf16.msra.mxu0 %v5779
    %6571 = vmatmul.bf16.gmra.mxu0 %v3559
    %v6572 = vpop.f32.mrf.mxu0
    %v6573 = vadd.f32 %v6560, %v6572
    %v6574 = vpop.f32.mrf.mxu0
    %6575 = vdwg.mxu0
    %6576 = vmatpush.bf16.msra.mxu0 %v5884
    %6577 = vmatpush.bf16.msra.mxu0 %v5877
    %6578 = vmatpush.bf16.msra.mxu0 %v5870
    %6579 = vmatpush.bf16.msra.mxu0 %v5863
    %6580 = vmatpush.bf16.msra.mxu0 %v5856
    %6581 = vmatpush.bf16.msra.mxu0 %v5849
    %6582 = vmatpush.bf16.msra.mxu0 %v5842
    %6583 = vmatpush.bf16.msra.mxu0 %v5835
    %6584 = vmatmul.bf16.gmra.mxu0 %v3560
    %v6585 = vpop.f32.mrf.mxu0
    %v6586 = vadd.f32 %v6573, %v6585
    %v6587 = vpop.f32.mrf.mxu0
    %6588 = vdwg.mxu0
    %6589 = vmatpush.bf16.msra.mxu0 %v5940
    %6590 = vmatpush.bf16.msra.mxu0 %v5933
    %6591 = vmatpush.bf16.msra.mxu0 %v5926
    %6592 = vmatpush.bf16.msra.mxu0 %v5919
    %6593 = vmatpush.bf16.msra.mxu0 %v5912
    %6594 = vmatpush.bf16.msra.mxu0 %v5905
    %6595 = vmatpush.bf16.msra.mxu0 %v5898
    %6596 = vmatpush.bf16.msra.mxu0 %v5891
    %6597 = vmatmul.bf16.gmra.mxu0 %v3561
    %v6598 = vpop.f32.mrf.mxu0
    %v6599 = vadd.f32 %v6586, %v6598
    %v6600 = vpop.f32.mrf.mxu0
    %6601 = vdwg.mxu0
    %6602 = vmatpush.bf16.msra.mxu0 %v5549
    %6603 = vmatpush.bf16.msra.mxu0 %v5542
    %6604 = vmatpush.bf16.msra.mxu0 %v5535
    %6605 = vmatpush.bf16.msra.mxu0 %v5528
    %6606 = vmatpush.bf16.msra.mxu0 %v5521
    %6607 = vmatpush.bf16.msra.mxu0 %v5514
    %6608 = vmatpush.bf16.msra.mxu0 %v5507
    %6609 = vmatpush.bf16.msra.mxu0 %v5500
    %6610 = vmatmul.bf16.gmra.mxu0 %v3554
    %v6611 = vpop.f32.mrf.mxu0
    %v6612 = vadd.f32 %v4078, %v6611
    %v6613 = vpop.f32.mrf.mxu0
    %6614 = vdwg.mxu0
    %6615 = vmatpush.bf16.msra.mxu0 %v5605
    %6616 = vmatpush.bf16.msra.mxu0 %v5598
    %6617 = vmatpush.bf16.msra.mxu0 %v5591
    %6618 = vmatpush.bf16.msra.mxu0 %v5584
    %6619 = vmatpush.bf16.msra.mxu0 %v5577
    %6620 = vmatpush.bf16.msra.mxu0 %v5570
    %6621 = vmatpush.bf16.msra.mxu0 %v5563
    %6622 = vmatpush.bf16.msra.mxu0 %v5556
    %6623 = vmatmul.bf16.gmra.mxu0 %v3555
    %v6624 = vpop.f32.mrf.mxu0
    %v6625 = vadd.f32 %v6612, %v6624
    %v6626 = vpop.f32.mrf.mxu0
    %6627 = vdwg.mxu0
    %6628 = vmatpush.bf16.msra.mxu0 %v5661
    %6629 = vmatpush.bf16.msra.mxu0 %v5654
    %6630 = vmatpush.bf16.msra.mxu0 %v5647
    %6631 = vmatpush.bf16.msra.mxu0 %v5640
    %6632 = vmatpush.bf16.msra.mxu0 %v5633
    %6633 = vmatpush.bf16.msra.mxu0 %v5626
    %6634 = vmatpush.bf16.msra.mxu0 %v5619
    %6635 = vmatpush.bf16.msra.mxu0 %v5612
    %6636 = vmatmul.bf16.gmra.mxu0 %v3556
    %v6637 = vpop.f32.mrf.mxu0
    %v6638 = vadd.f32 %v6625, %v6637
    %v6639 = vpop.f32.mrf.mxu0
    %6640 = vdwg.mxu0
    %6641 = vmatpush.bf16.msra.mxu0 %v5717
    %6642 = vmatpush.bf16.msra.mxu0 %v5710
    %6643 = vmatpush.bf16.msra.mxu0 %v5703
    %6644 = vmatpush.bf16.msra.mxu0 %v5696
    %6645 = vmatpush.bf16.msra.mxu0 %v5689
    %6646 = vmatpush.bf16.msra.mxu0 %v5682
    %6647 = vmatpush.bf16.msra.mxu0 %v5675
    %6648 = vmatpush.bf16.msra.mxu0 %v5668
    %6649 = vmatmul.bf16.gmra.mxu0 %v3557
    %v6650 = vpop.f32.mrf.mxu0
    %v6651 = vadd.f32 %v6638, %v6650
    %v6652 = vpop.f32.mrf.mxu0
    %6653 = vdwg.mxu0
    %6654 = vmatpush.bf16.msra.mxu0 %v5773
    %6655 = vmatpush.bf16.msra.mxu0 %v5766
    %6656 = vmatpush.bf16.msra.mxu0 %v5759
    %6657 = vmatpush.bf16.msra.mxu0 %v5752
    %6658 = vmatpush.bf16.msra.mxu0 %v5745
    %6659 = vmatpush.bf16.msra.mxu0 %v5738
    %6660 = vmatpush.bf16.msra.mxu0 %v5731
    %6661 = vmatpush.bf16.msra.mxu0 %v5724
    %6662 = vmatmul.bf16.gmra.mxu0 %v3558
    %v6663 = vpop.f32.mrf.mxu0
    %v6664 = vadd.f32 %v6651, %v6663
    %v6665 = vpop.f32.mrf.mxu0
    %6666 = vdwg.mxu0
    %6667 = vmatpush.bf16.msra.mxu0 %v5829
    %6668 = vmatpush.bf16.msra.mxu0 %v5822
    %6669 = vmatpush.bf16.msra.mxu0 %v5815
    %6670 = vmatpush.bf16.msra.mxu0 %v5808
    %6671 = vmatpush.bf16.msra.mxu0 %v5801
    %6672 = vmatpush.bf16.msra.mxu0 %v5794
    %6673 = vmatpush.bf16.msra.mxu0 %v5787
    %6674 = vmatpush.bf16.msra.mxu0 %v5780
    %6675 = vmatmul.bf16.gmra.mxu0 %v3559
    %v6676 = vpop.f32.mrf.mxu0
    %v6677 = vadd.f32 %v6664, %v6676
    %v6678 = vpop.f32.mrf.mxu0
    %6679 = vdwg.mxu0
    %6680 = vmatpush.bf16.msra.mxu0 %v5885
    %6681 = vmatpush.bf16.msra.mxu0 %v5878
    %6682 = vmatpush.bf16.msra.mxu0 %v5871
    %6683 = vmatpush.bf16.msra.mxu0 %v5864
    %6684 = vmatpush.bf16.msra.mxu0 %v5857
    %6685 = vmatpush.bf16.msra.mxu0 %v5850
    %6686 = vmatpush.bf16.msra.mxu0 %v5843
    %6687 = vmatpush.bf16.msra.mxu0 %v5836
    %6688 = vmatmul.bf16.gmra.mxu0 %v3560
    %v6689 = vpop.f32.mrf.mxu0
    %v6690 = vadd.f32 %v6677, %v6689
    %v6691 = vpop.f32.mrf.mxu0
    %6692 = vdwg.mxu0
    %6693 = vmatpush.bf16.msra.mxu0 %v5941
    %6694 = vmatpush.bf16.msra.mxu0 %v5934
    %6695 = vmatpush.bf16.msra.mxu0 %v5927
    %6696 = vmatpush.bf16.msra.mxu0 %v5920
    %6697 = vmatpush.bf16.msra.mxu0 %v5913
    %6698 = vmatpush.bf16.msra.mxu0 %v5906
    %6699 = vmatpush.bf16.msra.mxu0 %v5899
    %6700 = vmatpush.bf16.msra.mxu0 %v5892
    %6701 = vmatmul.bf16.gmra.mxu0 %v3561
    %v6702 = vpop.f32.mrf.mxu0
    %v6703 = vadd.f32 %v6690, %v6702
    %v6704 = vpop.f32.mrf.mxu0
    %6705 = vdwg.mxu0
    %6706 = vmatpush.bf16.msra.mxu0 %v5550
    %6707 = vmatpush.bf16.msra.mxu0 %v5543
    %6708 = vmatpush.bf16.msra.mxu0 %v5536
    %6709 = vmatpush.bf16.msra.mxu0 %v5529
    %6710 = vmatpush.bf16.msra.mxu0 %v5522
    %6711 = vmatpush.bf16.msra.mxu0 %v5515
    %6712 = vmatpush.bf16.msra.mxu0 %v5508
    %6713 = vmatpush.bf16.msra.mxu0 %v5501
    %6714 = vmatmul.bf16.gmra.mxu0 %v3554
    %v6715 = vpop.f32.mrf.mxu0
    %v6716 = vadd.f32 %v4079, %v6715
    %v6717 = vpop.f32.mrf.mxu0
    %6718 = vdwg.mxu0
    %6719 = vmatpush.bf16.msra.mxu0 %v5606
    %6720 = vmatpush.bf16.msra.mxu0 %v5599
    %6721 = vmatpush.bf16.msra.mxu0 %v5592
    %6722 = vmatpush.bf16.msra.mxu0 %v5585
    %6723 = vmatpush.bf16.msra.mxu0 %v5578
    %6724 = vmatpush.bf16.msra.mxu0 %v5571
    %6725 = vmatpush.bf16.msra.mxu0 %v5564
    %6726 = vmatpush.bf16.msra.mxu0 %v5557
    %6727 = vmatmul.bf16.gmra.mxu0 %v3555
    %v6728 = vpop.f32.mrf.mxu0
    %v6729 = vadd.f32 %v6716, %v6728
    %v6730 = vpop.f32.mrf.mxu0
    %6731 = vdwg.mxu0
    %6732 = vmatpush.bf16.msra.mxu0 %v5662
    %6733 = vmatpush.bf16.msra.mxu0 %v5655
    %6734 = vmatpush.bf16.msra.mxu0 %v5648
    %6735 = vmatpush.bf16.msra.mxu0 %v5641
    %6736 = vmatpush.bf16.msra.mxu0 %v5634
    %6737 = vmatpush.bf16.msra.mxu0 %v5627
    %6738 = vmatpush.bf16.msra.mxu0 %v5620
    %6739 = vmatpush.bf16.msra.mxu0 %v5613
    %6740 = vmatmul.bf16.gmra.mxu0 %v3556
    %v6741 = vpop.f32.mrf.mxu0
    %v6742 = vadd.f32 %v6729, %v6741
    %v6743 = vpop.f32.mrf.mxu0
    %6744 = vdwg.mxu0
    %6745 = vmatpush.bf16.msra.mxu0 %v5718
    %6746 = vmatpush.bf16.msra.mxu0 %v5711
    %6747 = vmatpush.bf16.msra.mxu0 %v5704
    %6748 = vmatpush.bf16.msra.mxu0 %v5697
    %6749 = vmatpush.bf16.msra.mxu0 %v5690
    %6750 = vmatpush.bf16.msra.mxu0 %v5683
    %6751 = vmatpush.bf16.msra.mxu0 %v5676
    %6752 = vmatpush.bf16.msra.mxu0 %v5669
    %6753 = vmatmul.bf16.gmra.mxu0 %v3557
    %v6754 = vpop.f32.mrf.mxu0
    %v6755 = vadd.f32 %v6742, %v6754
    %v6756 = vpop.f32.mrf.mxu0
    %6757 = vdwg.mxu0
    %6758 = vmatpush.bf16.msra.mxu0 %v5774
    %6759 = vmatpush.bf16.msra.mxu0 %v5767
    %6760 = vmatpush.bf16.msra.mxu0 %v5760
    %6761 = vmatpush.bf16.msra.mxu0 %v5753
    %6762 = vmatpush.bf16.msra.mxu0 %v5746
    %6763 = vmatpush.bf16.msra.mxu0 %v5739
    %6764 = vmatpush.bf16.msra.mxu0 %v5732
    %6765 = vmatpush.bf16.msra.mxu0 %v5725
    %6766 = vmatmul.bf16.gmra.mxu0 %v3558
    %v6767 = vpop.f32.mrf.mxu0
    %v6768 = vadd.f32 %v6755, %v6767
    %v6769 = vpop.f32.mrf.mxu0
    %6770 = vdwg.mxu0
    %6771 = vmatpush.bf16.msra.mxu0 %v5830
    %6772 = vmatpush.bf16.msra.mxu0 %v5823
    %6773 = vmatpush.bf16.msra.mxu0 %v5816
    %6774 = vmatpush.bf16.msra.mxu0 %v5809
    %6775 = vmatpush.bf16.msra.mxu0 %v5802
    %6776 = vmatpush.bf16.msra.mxu0 %v5795
    %6777 = vmatpush.bf16.msra.mxu0 %v5788
    %6778 = vmatpush.bf16.msra.mxu0 %v5781
    %6779 = vmatmul.bf16.gmra.mxu0 %v3559
    %v6780 = vpop.f32.mrf.mxu0
    %v6781 = vadd.f32 %v6768, %v6780
    %v6782 = vpop.f32.mrf.mxu0
    %6783 = vdwg.mxu0
    %6784 = vmatpush.bf16.msra.mxu0 %v5886
    %6785 = vmatpush.bf16.msra.mxu0 %v5879
    %6786 = vmatpush.bf16.msra.mxu0 %v5872
    %6787 = vmatpush.bf16.msra.mxu0 %v5865
    %6788 = vmatpush.bf16.msra.mxu0 %v5858
    %6789 = vmatpush.bf16.msra.mxu0 %v5851
    %6790 = vmatpush.bf16.msra.mxu0 %v5844
    %6791 = vmatpush.bf16.msra.mxu0 %v5837
    %6792 = vmatmul.bf16.gmra.mxu0 %v3560
    %v6793 = vpop.f32.mrf.mxu0
    %v6794 = vadd.f32 %v6781, %v6793
    %v6795 = vpop.f32.mrf.mxu0
    %6796 = vdwg.mxu0
    %6797 = vmatpush.bf16.msra.mxu0 %v5942
    %6798 = vmatpush.bf16.msra.mxu0 %v5935
    %6799 = vmatpush.bf16.msra.mxu0 %v5928
    %6800 = vmatpush.bf16.msra.mxu0 %v5921
    %6801 = vmatpush.bf16.msra.mxu0 %v5914
    %6802 = vmatpush.bf16.msra.mxu0 %v5907
    %6803 = vmatpush.bf16.msra.mxu0 %v5900
    %6804 = vmatpush.bf16.msra.mxu0 %v5893
    %6805 = vmatmul.bf16.gmra.mxu0 %v3561
    %v6806 = vpop.f32.mrf.mxu0
    %v6807 = vadd.f32 %v6794, %v6806
    %v6808 = vpop.f32.mrf.mxu0
    %6809 = vdwg.mxu0
    %6810 = vmatpush.bf16.msra.mxu0 %v5551
    %6811 = vmatpush.bf16.msra.mxu0 %v5544
    %6812 = vmatpush.bf16.msra.mxu0 %v5537
    %6813 = vmatpush.bf16.msra.mxu0 %v5530
    %6814 = vmatpush.bf16.msra.mxu0 %v5523
    %6815 = vmatpush.bf16.msra.mxu0 %v5516
    %6816 = vmatpush.bf16.msra.mxu0 %v5509
    %6817 = vmatpush.bf16.msra.mxu0 %v5502
    %6818 = vmatmul.bf16.gmra.mxu0 %v3554
    %v6819 = vpop.f32.mrf.mxu0
    %v6820 = vadd.f32 %v4080, %v6819
    %v6821 = vpop.f32.mrf.mxu0
    %6822 = vdwg.mxu0
    %6823 = vmatpush.bf16.msra.mxu0 %v5607
    %6824 = vmatpush.bf16.msra.mxu0 %v5600
    %6825 = vmatpush.bf16.msra.mxu0 %v5593
    %6826 = vmatpush.bf16.msra.mxu0 %v5586
    %6827 = vmatpush.bf16.msra.mxu0 %v5579
    %6828 = vmatpush.bf16.msra.mxu0 %v5572
    %6829 = vmatpush.bf16.msra.mxu0 %v5565
    %6830 = vmatpush.bf16.msra.mxu0 %v5558
    %6831 = vmatmul.bf16.gmra.mxu0 %v3555
    %v6832 = vpop.f32.mrf.mxu0
    %v6833 = vadd.f32 %v6820, %v6832
    %v6834 = vpop.f32.mrf.mxu0
    %6835 = vdwg.mxu0
    %6836 = vmatpush.bf16.msra.mxu0 %v5663
    %6837 = vmatpush.bf16.msra.mxu0 %v5656
    %6838 = vmatpush.bf16.msra.mxu0 %v5649
    %6839 = vmatpush.bf16.msra.mxu0 %v5642
    %6840 = vmatpush.bf16.msra.mxu0 %v5635
    %6841 = vmatpush.bf16.msra.mxu0 %v5628
    %6842 = vmatpush.bf16.msra.mxu0 %v5621
    %6843 = vmatpush.bf16.msra.mxu0 %v5614
    %6844 = vmatmul.bf16.gmra.mxu0 %v3556
    %v6845 = vpop.f32.mrf.mxu0
    %v6846 = vadd.f32 %v6833, %v6845
    %v6847 = vpop.f32.mrf.mxu0
    %6848 = vdwg.mxu0
    %6849 = vmatpush.bf16.msra.mxu0 %v5719
    %6850 = vmatpush.bf16.msra.mxu0 %v5712
    %6851 = vmatpush.bf16.msra.mxu0 %v5705
    %6852 = vmatpush.bf16.msra.mxu0 %v5698
    %6853 = vmatpush.bf16.msra.mxu0 %v5691
    %6854 = vmatpush.bf16.msra.mxu0 %v5684
    %6855 = vmatpush.bf16.msra.mxu0 %v5677
    %6856 = vmatpush.bf16.msra.mxu0 %v5670
    %6857 = vmatmul.bf16.gmra.mxu0 %v3557
    %v6858 = vpop.f32.mrf.mxu0
    %v6859 = vadd.f32 %v6846, %v6858
    %v6860 = vpop.f32.mrf.mxu0
    %6861 = vdwg.mxu0
    %6862 = vmatpush.bf16.msra.mxu0 %v5775
    %6863 = vmatpush.bf16.msra.mxu0 %v5768
    %6864 = vmatpush.bf16.msra.mxu0 %v5761
    %6865 = vmatpush.bf16.msra.mxu0 %v5754
    %6866 = vmatpush.bf16.msra.mxu0 %v5747
    %6867 = vmatpush.bf16.msra.mxu0 %v5740
    %6868 = vmatpush.bf16.msra.mxu0 %v5733
    %6869 = vmatpush.bf16.msra.mxu0 %v5726
    %6870 = vmatmul.bf16.gmra.mxu0 %v3558
    %v6871 = vpop.f32.mrf.mxu0
    %v6872 = vadd.f32 %v6859, %v6871
    %v6873 = vpop.f32.mrf.mxu0
    %6874 = vdwg.mxu0
    %6875 = vmatpush.bf16.msra.mxu0 %v5831
    %6876 = vmatpush.bf16.msra.mxu0 %v5824
    %6877 = vmatpush.bf16.msra.mxu0 %v5817
    %6878 = vmatpush.bf16.msra.mxu0 %v5810
    %6879 = vmatpush.bf16.msra.mxu0 %v5803
    %6880 = vmatpush.bf16.msra.mxu0 %v5796
    %6881 = vmatpush.bf16.msra.mxu0 %v5789
    %6882 = vmatpush.bf16.msra.mxu0 %v5782
    %6883 = vmatmul.bf16.gmra.mxu0 %v3559
    %v6884 = vpop.f32.mrf.mxu0
    %v6885 = vadd.f32 %v6872, %v6884
    %v6886 = vpop.f32.mrf.mxu0
    %6887 = vdwg.mxu0
    %6888 = vmatpush.bf16.msra.mxu0 %v5887
    %6889 = vmatpush.bf16.msra.mxu0 %v5880
    %6890 = vmatpush.bf16.msra.mxu0 %v5873
    %6891 = vmatpush.bf16.msra.mxu0 %v5866
    %6892 = vmatpush.bf16.msra.mxu0 %v5859
    %6893 = vmatpush.bf16.msra.mxu0 %v5852
    %6894 = vmatpush.bf16.msra.mxu0 %v5845
    %6895 = vmatpush.bf16.msra.mxu0 %v5838
    %6896 = vmatmul.bf16.gmra.mxu0 %v3560
    %v6897 = vpop.f32.mrf.mxu0
    %v6898 = vadd.f32 %v6885, %v6897
    %v6899 = vpop.f32.mrf.mxu0
    %6900 = vdwg.mxu0
    %6901 = vmatpush.bf16.msra.mxu0 %v5943
    %6902 = vmatpush.bf16.msra.mxu0 %v5936
    %6903 = vmatpush.bf16.msra.mxu0 %v5929
    %6904 = vmatpush.bf16.msra.mxu0 %v5922
    %6905 = vmatpush.bf16.msra.mxu0 %v5915
    %6906 = vmatpush.bf16.msra.mxu0 %v5908
    %6907 = vmatpush.bf16.msra.mxu0 %v5901
    %6908 = vmatpush.bf16.msra.mxu0 %v5894
    %6909 = vmatmul.bf16.gmra.mxu0 %v3561
    %v6910 = vpop.f32.mrf.mxu0
    %v6911 = vadd.f32 %v6898, %v6910
    %v6912 = vpop.f32.mrf.mxu0
    %6913 = vdwg.mxu0
    %6914 = vmatpush.bf16.msra.mxu0 %v5552
    %6915 = vmatpush.bf16.msra.mxu0 %v5545
    %6916 = vmatpush.bf16.msra.mxu0 %v5538
    %6917 = vmatpush.bf16.msra.mxu0 %v5531
    %6918 = vmatpush.bf16.msra.mxu0 %v5524
    %6919 = vmatpush.bf16.msra.mxu0 %v5517
    %6920 = vmatpush.bf16.msra.mxu0 %v5510
    %6921 = vmatpush.bf16.msra.mxu0 %v5503
    %6922 = vmatmul.bf16.gmra.mxu0 %v3554
    %v6923 = vpop.f32.mrf.mxu0
    %v6924 = vadd.f32 %v4081, %v6923
    %v6925 = vpop.f32.mrf.mxu0
    %6926 = vdwg.mxu0
    %6927 = vmatpush.bf16.msra.mxu0 %v5608
    %6928 = vmatpush.bf16.msra.mxu0 %v5601
    %6929 = vmatpush.bf16.msra.mxu0 %v5594
    %6930 = vmatpush.bf16.msra.mxu0 %v5587
    %6931 = vmatpush.bf16.msra.mxu0 %v5580
    %6932 = vmatpush.bf16.msra.mxu0 %v5573
    %6933 = vmatpush.bf16.msra.mxu0 %v5566
    %6934 = vmatpush.bf16.msra.mxu0 %v5559
    %6935 = vmatmul.bf16.gmra.mxu0 %v3555
    %v6936 = vpop.f32.mrf.mxu0
    %v6937 = vadd.f32 %v6924, %v6936
    %v6938 = vpop.f32.mrf.mxu0
    %6939 = vdwg.mxu0
    %6940 = vmatpush.bf16.msra.mxu0 %v5664
    %6941 = vmatpush.bf16.msra.mxu0 %v5657
    %6942 = vmatpush.bf16.msra.mxu0 %v5650
    %6943 = vmatpush.bf16.msra.mxu0 %v5643
    %6944 = vmatpush.bf16.msra.mxu0 %v5636
    %6945 = vmatpush.bf16.msra.mxu0 %v5629
    %6946 = vmatpush.bf16.msra.mxu0 %v5622
    %6947 = vmatpush.bf16.msra.mxu0 %v5615
    %6948 = vmatmul.bf16.gmra.mxu0 %v3556
    %v6949 = vpop.f32.mrf.mxu0
    %v6950 = vadd.f32 %v6937, %v6949
    %v6951 = vpop.f32.mrf.mxu0
    %6952 = vdwg.mxu0
    %6953 = vmatpush.bf16.msra.mxu0 %v5720
    %6954 = vmatpush.bf16.msra.mxu0 %v5713
    %6955 = vmatpush.bf16.msra.mxu0 %v5706
    %6956 = vmatpush.bf16.msra.mxu0 %v5699
    %6957 = vmatpush.bf16.msra.mxu0 %v5692
    %6958 = vmatpush.bf16.msra.mxu0 %v5685
    %6959 = vmatpush.bf16.msra.mxu0 %v5678
    %6960 = vmatpush.bf16.msra.mxu0 %v5671
    %6961 = vmatmul.bf16.gmra.mxu0 %v3557
    %v6962 = vpop.f32.mrf.mxu0
    %v6963 = vadd.f32 %v6950, %v6962
    %v6964 = vpop.f32.mrf.mxu0
    %6965 = vdwg.mxu0
    %6966 = vmatpush.bf16.msra.mxu0 %v5776
    %6967 = vmatpush.bf16.msra.mxu0 %v5769
    %6968 = vmatpush.bf16.msra.mxu0 %v5762
    %6969 = vmatpush.bf16.msra.mxu0 %v5755
    %6970 = vmatpush.bf16.msra.mxu0 %v5748
    %6971 = vmatpush.bf16.msra.mxu0 %v5741
    %6972 = vmatpush.bf16.msra.mxu0 %v5734
    %6973 = vmatpush.bf16.msra.mxu0 %v5727
    %6974 = vmatmul.bf16.gmra.mxu0 %v3558
    %v6975 = vpop.f32.mrf.mxu0
    %v6976 = vadd.f32 %v6963, %v6975
    %v6977 = vpop.f32.mrf.mxu0
    %6978 = vdwg.mxu0
    %6979 = vmatpush.bf16.msra.mxu0 %v5832
    %6980 = vmatpush.bf16.msra.mxu0 %v5825
    %6981 = vmatpush.bf16.msra.mxu0 %v5818
    %6982 = vmatpush.bf16.msra.mxu0 %v5811
    %6983 = vmatpush.bf16.msra.mxu0 %v5804
    %6984 = vmatpush.bf16.msra.mxu0 %v5797
    %6985 = vmatpush.bf16.msra.mxu0 %v5790
    %6986 = vmatpush.bf16.msra.mxu0 %v5783
    %6987 = vmatmul.bf16.gmra.mxu0 %v3559
    %v6988 = vpop.f32.mrf.mxu0
    %v6989 = vadd.f32 %v6976, %v6988
    %v6990 = vpop.f32.mrf.mxu0
    %6991 = vdwg.mxu0
    %6992 = vmatpush.bf16.msra.mxu0 %v5888
    %6993 = vmatpush.bf16.msra.mxu0 %v5881
    %6994 = vmatpush.bf16.msra.mxu0 %v5874
    %6995 = vmatpush.bf16.msra.mxu0 %v5867
    %6996 = vmatpush.bf16.msra.mxu0 %v5860
    %6997 = vmatpush.bf16.msra.mxu0 %v5853
    %6998 = vmatpush.bf16.msra.mxu0 %v5846
    %6999 = vmatpush.bf16.msra.mxu0 %v5839
    %7000 = vmatmul.bf16.gmra.mxu0 %v3560
    %v7001 = vpop.f32.mrf.mxu0
    %v7002 = vadd.f32 %v6989, %v7001
    %v7003 = vpop.f32.mrf.mxu0
    %7004 = vdwg.mxu0
    %7005 = vmatpush.bf16.msra.mxu0 %v5944
    %7006 = vmatpush.bf16.msra.mxu0 %v5937
    %7007 = vmatpush.bf16.msra.mxu0 %v5930
    %7008 = vmatpush.bf16.msra.mxu0 %v5923
    %7009 = vmatpush.bf16.msra.mxu0 %v5916
    %7010 = vmatpush.bf16.msra.mxu0 %v5909
    %7011 = vmatpush.bf16.msra.mxu0 %v5902
    %7012 = vmatpush.bf16.msra.mxu0 %v5895
    %7013 = vmatmul.bf16.gmra.mxu0 %v3561
    %v7014 = vpop.f32.mrf.mxu0
    %v7015 = vadd.f32 %v7002, %v7014
    %v7016 = vpop.f32.mrf.mxu0
    %7017 = vdwg.mxu0
    %7018 = vmatpush.bf16.msra.mxu0 %v5553
    %7019 = vmatpush.bf16.msra.mxu0 %v5546
    %7020 = vmatpush.bf16.msra.mxu0 %v5539
    %7021 = vmatpush.bf16.msra.mxu0 %v5532
    %7022 = vmatpush.bf16.msra.mxu0 %v5525
    %7023 = vmatpush.bf16.msra.mxu0 %v5518
    %7024 = vmatpush.bf16.msra.mxu0 %v5511
    %7025 = vmatpush.bf16.msra.mxu0 %v5504
    %7026 = vmatmul.bf16.gmra.mxu0 %v3554
    %v7027 = vpop.f32.mrf.mxu0
    %v7028 = vadd.f32 %v4082, %v7027
    %v7029 = vpop.f32.mrf.mxu0
    %7030 = vdwg.mxu0
    %7031 = vmatpush.bf16.msra.mxu0 %v5609
    %7032 = vmatpush.bf16.msra.mxu0 %v5602
    %7033 = vmatpush.bf16.msra.mxu0 %v5595
    %7034 = vmatpush.bf16.msra.mxu0 %v5588
    %7035 = vmatpush.bf16.msra.mxu0 %v5581
    %7036 = vmatpush.bf16.msra.mxu0 %v5574
    %7037 = vmatpush.bf16.msra.mxu0 %v5567
    %7038 = vmatpush.bf16.msra.mxu0 %v5560
    %7039 = vmatmul.bf16.gmra.mxu0 %v3555
    %v7040 = vpop.f32.mrf.mxu0
    %v7041 = vadd.f32 %v7028, %v7040
    %v7042 = vpop.f32.mrf.mxu0
    %7043 = vdwg.mxu0
    %7044 = vmatpush.bf16.msra.mxu0 %v5665
    %7045 = vmatpush.bf16.msra.mxu0 %v5658
    %7046 = vmatpush.bf16.msra.mxu0 %v5651
    %7047 = vmatpush.bf16.msra.mxu0 %v5644
    %7048 = vmatpush.bf16.msra.mxu0 %v5637
    %7049 = vmatpush.bf16.msra.mxu0 %v5630
    %7050 = vmatpush.bf16.msra.mxu0 %v5623
    %7051 = vmatpush.bf16.msra.mxu0 %v5616
    %7052 = vmatmul.bf16.gmra.mxu0 %v3556
    %v7053 = vpop.f32.mrf.mxu0
    %v7054 = vadd.f32 %v7041, %v7053
    %v7055 = vpop.f32.mrf.mxu0
    %7056 = vdwg.mxu0
    %7057 = vmatpush.bf16.msra.mxu0 %v5721
    %7058 = vmatpush.bf16.msra.mxu0 %v5714
    %7059 = vmatpush.bf16.msra.mxu0 %v5707
    %7060 = vmatpush.bf16.msra.mxu0 %v5700
    %7061 = vmatpush.bf16.msra.mxu0 %v5693
    %7062 = vmatpush.bf16.msra.mxu0 %v5686
    %7063 = vmatpush.bf16.msra.mxu0 %v5679
    %7064 = vmatpush.bf16.msra.mxu0 %v5672
    %7065 = vmatmul.bf16.gmra.mxu0 %v3557
    %v7066 = vpop.f32.mrf.mxu0
    %v7067 = vadd.f32 %v7054, %v7066
    %v7068 = vpop.f32.mrf.mxu0
    %7069 = vdwg.mxu0
    %7070 = vmatpush.bf16.msra.mxu0 %v5777
    %7071 = vmatpush.bf16.msra.mxu0 %v5770
    %7072 = vmatpush.bf16.msra.mxu0 %v5763
    %7073 = vmatpush.bf16.msra.mxu0 %v5756
    %7074 = vmatpush.bf16.msra.mxu0 %v5749
    %7075 = vmatpush.bf16.msra.mxu0 %v5742
    %7076 = vmatpush.bf16.msra.mxu0 %v5735
    %7077 = vmatpush.bf16.msra.mxu0 %v5728
    %7078 = vmatmul.bf16.gmra.mxu0 %v3558
    %v7079 = vpop.f32.mrf.mxu0
    %v7080 = vadd.f32 %v7067, %v7079
    %v7081 = vpop.f32.mrf.mxu0
    %7082 = vdwg.mxu0
    %7083 = vmatpush.bf16.msra.mxu0 %v5833
    %7084 = vmatpush.bf16.msra.mxu0 %v5826
    %7085 = vmatpush.bf16.msra.mxu0 %v5819
    %7086 = vmatpush.bf16.msra.mxu0 %v5812
    %7087 = vmatpush.bf16.msra.mxu0 %v5805
    %7088 = vmatpush.bf16.msra.mxu0 %v5798
    %7089 = vmatpush.bf16.msra.mxu0 %v5791
    %7090 = vmatpush.bf16.msra.mxu0 %v5784
    %7091 = vmatmul.bf16.gmra.mxu0 %v3559
    %v7092 = vpop.f32.mrf.mxu0
    %v7093 = vadd.f32 %v7080, %v7092
    %v7094 = vpop.f32.mrf.mxu0
    %7095 = vdwg.mxu0
    %7096 = vmatpush.bf16.msra.mxu0 %v5889
    %7097 = vmatpush.bf16.msra.mxu0 %v5882
    %7098 = vmatpush.bf16.msra.mxu0 %v5875
    %7099 = vmatpush.bf16.msra.mxu0 %v5868
    %7100 = vmatpush.bf16.msra.mxu0 %v5861
    %7101 = vmatpush.bf16.msra.mxu0 %v5854
    %7102 = vmatpush.bf16.msra.mxu0 %v5847
    %7103 = vmatpush.bf16.msra.mxu0 %v5840
    %7104 = vmatmul.bf16.gmra.mxu0 %v3560
    %v7105 = vpop.f32.mrf.mxu0
    %v7106 = vadd.f32 %v7093, %v7105
    %v7107 = vpop.f32.mrf.mxu0
    %7108 = vdwg.mxu0
    %7109 = vmatpush.bf16.msra.mxu0 %v5945
    %7110 = vmatpush.bf16.msra.mxu0 %v5938
    %7111 = vmatpush.bf16.msra.mxu0 %v5931
    %7112 = vmatpush.bf16.msra.mxu0 %v5924
    %7113 = vmatpush.bf16.msra.mxu0 %v5917
    %7114 = vmatpush.bf16.msra.mxu0 %v5910
    %7115 = vmatpush.bf16.msra.mxu0 %v5903
    %7116 = vmatpush.bf16.msra.mxu0 %v5896
    %7117 = vmatmul.bf16.gmra.mxu0 %v3561
    %v7118 = vpop.f32.mrf.mxu0
    %v7119 = vadd.f32 %v7106, %v7118
    %v7120 = vpop.f32.mrf.mxu0
    %7121 = vdwg.mxu0
    %7122 = vst [vmem:[#allocation11] sm:$0xff] %v6495
    %7123 = vst [vmem:[#allocation11 + $0x8] sm:$0xff] %v6599
    %7124 = vst [vmem:[#allocation11 + $0x10] sm:$0xff] %v6703
    %7125 = vst [vmem:[#allocation11 + $0x18] sm:$0xff] %v6807
    %7126 = vst [vmem:[#allocation11 + $0x20] sm:$0xff] %v6911
    %7127 = vst [vmem:[#allocation11 + $0x28] sm:$0xff] %v7015
    %7128 = vst [vmem:[#allocation11 + $0x30] sm:$0xff] %v7119
    // Predicated region
    $region38: #{_lambda_.1} parent=1 // pred_check
      _
    $region39: #{_lambda_.1} parent=1 // pred_check_branch
      %7130 = sbr.rel (0) target = $region41
    $region40: #{_lambda_.1} parent=1 // pred_region
      %7132 = vsyncadd [#allocation4], 0
      %s7134 = sshll.u32 [#allocation10], 4
      %s7135 = int_to_ptr.vmem [resolvable:$true] %s7134
      %s7136 = sshll.u32 %s5, 4
      %s7137 = int_to_ptr.hbm [resolvable:$true] %s7136
      %7139 = dma.vmem_to_hbm [thread:$0]  %s7135, 1024, %s7137, [#allocation4]
    $region41: #{_lambda_.1} parent=1 // pred_fallthru
      _
    // Predicated region
    $region42: #{_lambda_.1} parent=1 // pred_check
      _
    $region43: #{_lambda_.1} parent=1 // pred_check_branch
      %7141 = sbr.rel (0) target = $region45
    $region44: #{_lambda_.1} parent=1 // pred_region
      %7143 = vsyncadd [#allocation12], 0
      %s7145 = sshll.u32 [#allocation11], 4
      %s7146 = int_to_ptr.vmem [resolvable:$true] %s7145
      %s7147 = sshll.u32 %s6, 4
      %s7148 = int_to_ptr.hbm [resolvable:$true] %s7147
      %7150 = dma.vmem_to_hbm [thread:$0]  %s7146, 896, %s7148, [#allocation12]
    $region45: #{_lambda_.1} parent=1 // pred_fallthru
      _
    // Predicated region
    $region46: #{_lambda_.1} parent=1 // pred_check
      _
    $region47: #{_lambda_.1} parent=1 // pred_check_branch
      %7152 = sbr.rel (0) target = $region49
    $region48: #{_lambda_.1} parent=1 // pred_region
      %7154 = dma.done [#allocation4], 1024
    $region49: #{_lambda_.1} parent=1 // pred_fallthru
      _
    // Predicated region
    $region50: #{_lambda_.1} parent=1 // pred_check
      _
    $region51: #{_lambda_.1} parent=1 // pred_check_branch
      %7156 = sbr.rel (0) target = $region53
    $region52: #{_lambda_.1} parent=1 // pred_region
      %7158 = dma.done [#allocation12], 896
    $region53: #{_lambda_.1} parent=1 // pred_fallthru
      _
    %7159 = vsyncpa [#allocation3], 1
    %7160 = vsyncpa [#allocation6], 1
    %7161 = vsyncpa [#allocation9], 1
    %7162 = vsyncpa [#allocation4], 1
    %7163 = vsyncpa [#allocation12], 1

</llo_original>
